<compile_context>
chip_gen: v7x
topology: tpu7x:2x2x1
jax: 0.10.0
libtpu: 0.0.40
codegen_flags: <defaults>
</compile_context>

<pallas_src>
import functools

import jax
import jax.numpy as jnp
from jax import lax
from jax.experimental import pallas as pl
from jax.experimental.pallas import tpu as pltpu


def _round_up(x, m):
    return ((x + m - 1) // m) * m


# Per-generation sizing: bigger row bands on 128 MiB-VMEM parts, conservative
# band + scoped limit on 64 MiB parts (v7x).
try:
    _VMEM_CAP = int(pltpu.get_tpu_info().vmem_capacity_bytes)
except Exception:  # unknown attr / no device at import time
    _VMEM_CAP = 64 * 1024 * 1024
_BIG_VMEM = _VMEM_CAP >= 100 * 1024 * 1024
_TILE_PIXELS = 48 * 1024 if _BIG_VMEM else 16 * 1024   # output pixels per grid step
_VMEM_LIMIT = (64 if _BIG_VMEM else 32) * 1024 * 1024


# ---------------------------------------------------------------------------
# Fused Pallas kernel: backbone 3x3 -> head 1x1 -> seg 3x3 + sigmoid
# ---------------------------------------------------------------------------
def _fused_det_kernel(x_hbm, colmask_ref, w1_ref, b1_ref, w2_ref, b2_ref,
                      w3_ref, b3_ref, o_ref, xbuf, dma_sem, *,
                      H, TH, Wp, N0, N1, N_out):
    # x_hbm      : (B, Cin_p, (Hpad+6)*Wp)  bf16  padded image, flat rows (HBM / pl.ANY)
    # colmask_ref: (1, N1)                  f32   1.0 on real image columns
    # w1_ref     : (Cb_p, 9*Cin_p)          bf16  backbone 3x3, taps stacked on K
    # b1_ref     : (Cb_p, 1)                f32
    # w2_ref     : (Ci_p, Cb_p)             bf16  head 1x1
    # b2_ref     : (Ci_p, 1)                f32
    # w3_ref     : (8, 9*Ci_p)              bf16  seg 3x3 taps stacked on K (row 0 real)
    # b3_ref     : (1, 1)                   f32
    # o_ref      : (1, 1, 1, N_out)         f32   sigmoid probability map (lane dense)
    # xbuf       : (Cin_p, N0)              bf16  VMEM halo-band scratch
    b = pl.program_id(0)
    t = pl.program_id(1)

    # ---- fetch this step's (TH+6)-row halo band straight from HBM -----------
    # (no halo-duplicated copy of the input is ever materialized in HBM)
    off = pl.multiple_of(t * (TH * Wp), 128)
    cp = pltpu.make_async_copy(x_hbm.at[b, :, pl.ds(off, N0)], xbuf, dma_sem.at[0])
    cp.start()
    cp.wait()
    # TODO(synk): double-buffer this band fetch across grid steps; it is small
    # relative to the per-step compute so the serial DMA is cheap for now.
    xv = xbuf[...]                                           # (Cin_p, N0) bf16

    # ---- column shifts (+1, +2 lanes) materialized once, reused per row tap --
    L1 = N1 + 2 * Wp
    x1 = xv[:, 1:1 + L1]
    x2 = xv[:, 2:2 + L1]
    xsh = (xv, x1, x2)

    # ---- backbone 3x3 + ReLU : ONE K-stacked matmul (K = 9*Cin_p) ------------
    # row-tap offsets dr*Wp are lane-aligned (Wp % 128 == 0)
    xcat = jnp.concatenate(
        [xsh[dc][:, dr * Wp: dr * Wp + N1] for dr in range(3) for dc in range(3)],
        axis=0)                                              # (9*Cin_p, N1) bf16
    h1 = jnp.dot(w1_ref[...], xcat, preferred_element_type=jnp.float32)
    h1 = jnp.maximum(h1 + b1_ref[...], 0.0).astype(jnp.bfloat16)    # (Cb_p, N1)

    # ---- head 1x1 + ReLU ------------------------------------------------------
    h2 = jnp.dot(w2_ref[...], h1, preferred_element_type=jnp.float32)
    h2 = jnp.maximum(h2 + b2_ref[...], 0.0)                  # (Ci_p, N1) f32

    # ---- zero the halo ring (reproduces the zero 'same' padding seg_out sees) -
    pos = lax.broadcasted_iota(jnp.int32, (1, N1), 1)
    row_lo = (1 - t * TH) * Wp
    row_ok = (pos >= row_lo) & (pos < row_lo + H * Wp)
    mask = jnp.where(row_ok, colmask_ref[...], 0.0)          # (1, N1)
    h2m = (h2 * mask).astype(jnp.bfloat16)                   # (Ci_p, N1)

    # ---- seg_out 3x3 + sigmoid : ONE K-stacked matmul (K = 9*Ci_p) ------------
    Lo = N_out + 2 * Wp
    h_1 = h2m[:, 1:1 + Lo]
    h_2 = h2m[:, 2:2 + Lo]
    hsh = (h2m, h_1, h_2)
    hcat = jnp.concatenate(
        [hsh[dc][:, dr * Wp: dr * Wp + N_out] for dr in range(3) for dc in range(3)],
        axis=0)                                              # (9*Ci_p, N_out) bf16
    acc3 = jnp.dot(w3_ref[...], hcat, preferred_element_type=jnp.float32)  # (8, N_out)
    logits = acc3[0:1, :] + b3_ref[...]                      # (1, N_out) f32
    o_ref[0, 0] = jax.nn.sigmoid(logits).astype(o_ref.dtype)


def _run_fused(x_flat, colmask, w1s, b1, w2s, b2, w3s, b3, *, B, n_tiles,
               Cin_p, Cb_p, Ci_p, H, TH, Wp, N0, N1, N_out):
    kernel = functools.partial(_fused_det_kernel, H=H, TH=TH, Wp=Wp,
                               N0=N0, N1=N1, N_out=N_out)
    return pl.pallas_call(
        kernel,
        out_shape=jax.ShapeDtypeStruct((B, n_tiles, 1, N_out), jnp.float32),
        grid=(B, n_tiles),
        in_specs=[
            pl.BlockSpec(memory_space=pl.ANY),                       # padded image (HBM)
            pl.BlockSpec((1, N1), lambda b, t: (0, 0)),
            pl.BlockSpec((Cb_p, 9 * Cin_p), lambda b, t: (0, 0)),
            pl.BlockSpec((Cb_p, 1), lambda b, t: (0, 0)),
            pl.BlockSpec((Ci_p, Cb_p), lambda b, t: (0, 0)),
            pl.BlockSpec((Ci_p, 1), lambda b, t: (0, 0)),
            pl.BlockSpec((8, 9 * Ci_p), lambda b, t: (0, 0)),
            pl.BlockSpec((1, 1), lambda b, t: (0, 0)),
        ],
        out_specs=pl.BlockSpec((1, 1, 1, N_out), lambda b, t: (b, t, 0, 0)),
        scratch_shapes=[
            pltpu.VMEM((Cin_p, N0), jnp.bfloat16),
            pltpu.SemaphoreType.DMA((1,)),
        ],
        compiler_params=pltpu.CompilerParams(
            dimension_semantics=("parallel", "parallel"),
            vmem_limit_bytes=_VMEM_LIMIT,
        ),
    )(x_flat, colmask, w1s, b1, w2s, b2, w3s, b3)


# ---------------------------------------------------------------------------
# DetModel (eval / inference path): backbone -> head -> seg_out
# ---------------------------------------------------------------------------
def init_det_model_params(key, in_channels=3, backbone_channels=8,
                          inner_channels=16):
    k = jax.random.split(key, 6)
    scale = 0.1
    return {
        "backbone_w": scale * jax.random.normal(
            k[0], (3, 3, in_channels, backbone_channels), jnp.float32),
        "backbone_b": scale * jax.random.normal(
            k[1], (backbone_channels,), jnp.float32),
        "head_w": scale * jax.random.normal(
            k[2], (1, 1, backbone_channels, inner_channels), jnp.float32),
        "head_b": scale * jax.random.normal(
            k[3], (inner_channels,), jnp.float32),
        "seg_w": scale * jax.random.normal(
            k[4], (3, 3, inner_channels, 1), jnp.float32),
        "seg_b": scale * jax.random.normal(k[5], (1,), jnp.float32),
    }


def _det_model_forward(params, img_nchw, tile_rows=None):
    # TODO(synk): DB adaptive-threshold branch (thresh / approx-binary maps) and
    # the training-mode gt plumbing are training-only; eval returns the binarize map.
    B, Cin, H, W = img_nchw.shape
    Cb = params["backbone_w"].shape[-1]
    Ci = params["head_w"].shape[-1]
    Cin_p = _round_up(Cin, 4)        # pair-aligned sublane concat, cheap HBM pad
    Cb_p = _round_up(Cb, 8)
    Ci_p = _round_up(Ci, 8)

    # --- lane-aligned flat layout, row-band tiling with a halo ring -----------
    Wp = _round_up(W + 4, 128)       # 2 zero cols each side, row stride % 128 == 0
    if tile_rows is None:
        TH = max(1, min(H, _TILE_PIXELS // Wp))
    else:
        TH = max(1, min(H, int(tile_rows)))
    n_tiles = -(-H // TH)
    Hpad = n_tiles * TH
    N0 = (TH + 6) * Wp               # input halo band per grid step (flattened)
    N1 = (TH + 3) * Wp               # backbone / head activation length
    N_out = TH * Wp                  # seg output length per grid step

    # padded image stored ONCE in HBM (bf16); halo bands are DMA'd per grid step
    x = img_nchw.astype(jnp.bfloat16)
    xp = jnp.pad(x, ((0, 0), (0, Cin_p - Cin), (2, Hpad - H + 4), (2, Wp - W - 2)))
    x_flat = xp.reshape(B, Cin_p, (Hpad + 6) * Wp)

    # 1.0 on real image columns of the flat activation (period Wp)
    col = jnp.arange(N1, dtype=jnp.int32) % Wp
    colmask = ((col >= 1) & (col <= W)).astype(jnp.float32)[None, :]

    # --- weights: 3x3 taps stacked along the contraction axis (zero-padded chans)
    w1 = jnp.pad(params["backbone_w"],
                 ((0, 0), (0, 0), (0, Cin_p - Cin), (0, Cb_p - Cb)))
    w1s = w1.reshape(9 * Cin_p, Cb_p).T.astype(jnp.bfloat16)          # (Cb_p, 9*Cin_p)
    b1 = jnp.pad(params["backbone_b"], (0, Cb_p - Cb)).reshape(Cb_p, 1)
    b1 = b1.astype(jnp.float32)

    w2 = jnp.pad(params["head_w"].reshape(Cb, Ci), ((0, Cb_p - Cb), (0, Ci_p - Ci)))
    w2s = w2.T.astype(jnp.bfloat16)                                   # (Ci_p, Cb_p)
    b2 = jnp.pad(params["head_b"], (0, Ci_p - Ci)).reshape(Ci_p, 1)
    b2 = b2.astype(jnp.float32)

    w3 = jnp.pad(params["seg_w"].reshape(9, Ci, 1), ((0, 0), (0, Ci_p - Ci), (0, 7)))
    w3s = w3.reshape(9 * Ci_p, 8).T.astype(jnp.bfloat16)              # (8, 9*Ci_p)
    b3 = params["seg_b"].reshape(1, 1).astype(jnp.float32)

    out = _run_fused(x_flat, colmask, w1s, b1, w2s, b2, w3s, b3,
                     B=B, n_tiles=n_tiles, Cin_p=Cin_p, Cb_p=Cb_p, Ci_p=Ci_p,
                     H=H, TH=TH, Wp=Wp, N0=N0, N1=N1, N_out=N_out)

    prob = out.reshape(B, Hpad, Wp)[:, :H, :W]
    return prob[:, None, :, :]                                        # (B, 1, H, W)


det_model_forward = jax.jit(_det_model_forward, static_argnames=("tile_rows",))


# ---------------------------------------------------------------------------
# Pure-JAX reference of the same chain (f32) for a numerical sanity check
# ---------------------------------------------------------------------------
def _reference_forward(params, img):
    def conv(x, w, b):
        y = lax.conv_general_dilated(x, w, (1, 1), "SAME",
                                     dimension_numbers=("NCHW", "HWIO", "NCHW"))
        return y + b.reshape(1, -1, 1, 1)

    x = img.astype(jnp.float32)
    x = jax.nn.relu(conv(x, params["backbone_w"], params["backbone_b"]))
    x = jax.nn.relu(conv(x, params["head_w"], params["head_b"]))
    return jax.nn.sigmoid(conv(x, params["seg_w"], params["seg_b"]))


if __name__ == "__main__":
    key = jax.random.PRNGKey(0)
    k_img, k_par, k_img2 = jax.random.split(key, 3)
    params = init_det_model_params(k_par)

    # small shapes: batch=2, in_channels=3, spatial=16x16
    img = jax.random.normal(k_img, (2, 3, 16, 16), jnp.float32)
    out = jax.block_until_ready(det_model_forward(params, img))

    assert out.shape == (2, 1, 16, 16), out.shape
    assert out.dtype == jnp.float32
    assert bool(jnp.all(jnp.isfinite(out)))
    # sigmoid output must be in (0, 1)
    assert bool(jnp.all((out > 0.0) & (out < 1.0)))

    ref = _reference_forward(params, img)
    err = float(jnp.max(jnp.abs(out - ref)))
    assert err < 5e-2, f"max abs error vs reference: {err}"

    # multi row-band path: n_tiles = 3 with a partial last band (validates the
    # halo re-fetch + row masking across band boundaries, per the review).
    img2 = jax.random.normal(k_img2, (1, 3, 40, 20), jnp.float32)
    out2 = jax.block_until_ready(det_model_forward(params, img2, tile_rows=16))
    assert out2.shape == (1, 1, 40, 20), out2.shape
    ref2 = _reference_forward(params, img2)
    err2 = float(jnp.max(jnp.abs(out2 - ref2)))
    assert err2 < 5e-2, f"multi-band max abs error vs reference: {err2}"

    print("KERNEL_OK")
</pallas_src>

<mosaic_0001>
module attributes {stable_mosaic.version = 11 : i64} {
  func.func @_fused_det_kernel(%arg0: i32, %arg1: i32, %arg2: memref<2x4x2816xbf16, #tpu.memory_space<any>>, %arg3: memref<1x2432xf32, #tpu.memory_space<vmem>>, %arg4: memref<8x36xbf16, #tpu.memory_space<vmem>>, %arg5: memref<8x1xf32, #tpu.memory_space<vmem>>, %arg6: memref<16x8xbf16, #tpu.memory_space<vmem>>, %arg7: memref<16x1xf32, #tpu.memory_space<vmem>>, %arg8: memref<8x144xbf16, #tpu.memory_space<vmem>>, %arg9: memref<1x1xf32, #tpu.memory_space<vmem>>, %arg10: memref<1x1x1x2048xf32, #tpu.memory_space<vmem>>, %arg11: memref<4x2816xbf16, #tpu.memory_space<vmem>>, %arg12: memref<1x!tpu.dma_semaphore, #tpu.memory_space<semaphore_mem>>) attributes {dimension_semantics = [#tpu.dimension_semantics<parallel>, #tpu.dimension_semantics<parallel>], iteration_bounds = array<i64: 2, 1>, scalar_prefetch = 0 : i64, scratch_operands = 2 : i64, tpu.core_type = #tpu.core_type<tc>, window_params = [{}, {pipeline_mode = #tpu.pipeline_mode<synchronous>, transform_indices = @transform_1, window_bounds = array<i64: 1, 2432>}, {pipeline_mode = #tpu.pipeline_mode<synchronous>, transform_indices = @transform_2, window_bounds = array<i64: 8, 36>}, {pipeline_mode = #tpu.pipeline_mode<synchronous>, transform_indices = @transform_3, window_bounds = array<i64: 8, 1>}, {pipeline_mode = #tpu.pipeline_mode<synchronous>, transform_indices = @transform_4, window_bounds = array<i64: 16, 8>}, {pipeline_mode = #tpu.pipeline_mode<synchronous>, transform_indices = @transform_5, window_bounds = array<i64: 16, 1>}, {pipeline_mode = #tpu.pipeline_mode<synchronous>, transform_indices = @transform_6, window_bounds = array<i64: 8, 144>}, {pipeline_mode = #tpu.pipeline_mode<synchronous>, transform_indices = @transform_7, window_bounds = array<i64: 1, 1>}, {transform_indices = @transform_8, window_bounds = array<i64: 1, 1, 1, 2048>}]} {
    %c2048_i32 = arith.constant 2048 : i32
    %0 = arith.muli %arg1, %c2048_i32 : i32
    %1 = tpu.assume_multiple %0, 128 : i32
    %c0_i32 = arith.constant 0 : i32
    %c0_i32_0 = arith.constant 0 : i32
    %2 = tpu.memref_slice %arg2[%arg0, %c0_i32_0, %1] : memref<2x4x2816xbf16, #tpu.memory_space<any>> -> memref<1x4x2816xbf16, #tpu.memory_space<any>>
    %3 = tpu.memref_squeeze %2 : memref<1x4x2816xbf16, #tpu.memory_space<any>> -> memref<4x2816xbf16, #tpu.memory_space<any>>
    %4 = tpu.memref_slice %arg12[%c0_i32] : memref<1x!tpu.dma_semaphore, #tpu.memory_space<semaphore_mem>> -> memref<1x!tpu.dma_semaphore, #tpu.memory_space<semaphore_mem>>
    %5 = tpu.memref_squeeze %4 : memref<1x!tpu.dma_semaphore, #tpu.memory_space<semaphore_mem>> -> memref<!tpu.dma_semaphore, #tpu.memory_space<semaphore_mem>>
    tpu.enqueue_dma source(%3 : memref<4x2816xbf16, #tpu.memory_space<any>>) target(%arg11 : memref<4x2816xbf16, #tpu.memory_space<vmem>>) target_semaphore(%5 : memref<!tpu.dma_semaphore, #tpu.memory_space<semaphore_mem>>)
    %c0_i32_1 = arith.constant 0 : i32
    %c0_i32_2 = arith.constant 0 : i32
    %6 = tpu.memref_slice %arg2[%arg0, %c0_i32_2, %1] : memref<2x4x2816xbf16, #tpu.memory_space<any>> -> memref<1x4x2816xbf16, #tpu.memory_space<any>>
    %7 = tpu.memref_squeeze %6 : memref<1x4x2816xbf16, #tpu.memory_space<any>> -> memref<4x2816xbf16, #tpu.memory_space<any>>
    %8 = tpu.memref_slice %arg12[%c0_i32_1] : memref<1x!tpu.dma_semaphore, #tpu.memory_space<semaphore_mem>> -> memref<1x!tpu.dma_semaphore, #tpu.memory_space<semaphore_mem>>
    %9 = tpu.memref_squeeze %8 : memref<1x!tpu.dma_semaphore, #tpu.memory_space<semaphore_mem>> -> memref<!tpu.dma_semaphore, #tpu.memory_space<semaphore_mem>>
    tpu.wait_dma2 semaphore(%9 : memref<!tpu.dma_semaphore, #tpu.memory_space<semaphore_mem>>) src(%7 : memref<4x2816xbf16, #tpu.memory_space<any>>) dst(%arg11 : memref<4x2816xbf16, #tpu.memory_space<vmem>>)
    %c0 = arith.constant 0 : index
    %c0_3 = arith.constant 0 : index
    %10 = vector.load %arg11[%c0, %c0_3] : memref<4x2816xbf16, #tpu.memory_space<vmem>>, vector<4x2816xbf16>
    %11 = vector.extract_strided_slice %10 {offsets = [0, 1], sizes = [4, 2688], strides = [1, 1]} : vector<4x2816xbf16> to vector<4x2688xbf16>
    %12 = vector.extract_strided_slice %10 {offsets = [0, 2], sizes = [4, 2688], strides = [1, 1]} : vector<4x2816xbf16> to vector<4x2688xbf16>
    %13 = vector.extract_strided_slice %10 {offsets = [0, 0], sizes = [4, 2432], strides = [1, 1]} : vector<4x2816xbf16> to vector<4x2432xbf16>
    %14 = vector.extract_strided_slice %11 {offsets = [0, 0], sizes = [4, 2432], strides = [1, 1]} : vector<4x2688xbf16> to vector<4x2432xbf16>
    %15 = vector.extract_strided_slice %12 {offsets = [0, 0], sizes = [4, 2432], strides = [1, 1]} : vector<4x2688xbf16> to vector<4x2432xbf16>
    %16 = vector.extract_strided_slice %10 {offsets = [0, 128], sizes = [4, 2432], strides = [1, 1]} : vector<4x2816xbf16> to vector<4x2432xbf16>
    %17 = vector.extract_strided_slice %11 {offsets = [0, 128], sizes = [4, 2432], strides = [1, 1]} : vector<4x2688xbf16> to vector<4x2432xbf16>
    %18 = vector.extract_strided_slice %12 {offsets = [0, 128], sizes = [4, 2432], strides = [1, 1]} : vector<4x2688xbf16> to vector<4x2432xbf16>
    %19 = vector.extract_strided_slice %10 {offsets = [0, 256], sizes = [4, 2432], strides = [1, 1]} : vector<4x2816xbf16> to vector<4x2432xbf16>
    %20 = vector.extract_strided_slice %11 {offsets = [0, 256], sizes = [4, 2432], strides = [1, 1]} : vector<4x2688xbf16> to vector<4x2432xbf16>
    %21 = vector.extract_strided_slice %12 {offsets = [0, 256], sizes = [4, 2432], strides = [1, 1]} : vector<4x2688xbf16> to vector<4x2432xbf16>
    %22 = tpu.concatenate %13, %14, %15, %16, %17, %18, %19, %20, %21 in 0 : vector<4x2432xbf16>, vector<4x2432xbf16>, vector<4x2432xbf16>, vector<4x2432xbf16>, vector<4x2432xbf16>, vector<4x2432xbf16>, vector<4x2432xbf16>, vector<4x2432xbf16>, vector<4x2432xbf16> -> vector<36x2432xbf16>
    %c0_4 = arith.constant 0 : index
    %c0_5 = arith.constant 0 : index
    %23 = vector.load %arg4[%c0_4, %c0_5] : memref<8x36xbf16, #tpu.memory_space<vmem>>, vector<8x36xbf16>
    %cst = arith.constant dense<0.000000e+00> : vector<8x2432xf32>
    %24 = tpu.matmul %23, %22, %cst {dimension_numbers = #tpu.dot_dimension_numbers<[1], [0], [0], [1], [0, 0, 1, 1], [], []>} : vector<8x36xbf16>, vector<36x2432xbf16>, vector<8x2432xf32> -> vector<8x2432xf32>
    %c0_6 = arith.constant 0 : index
    %c0_7 = arith.constant 0 : index
    %25 = vector.load %arg5[%c0_6, %c0_7] : memref<8x1xf32, #tpu.memory_space<vmem>>, vector<8x1xf32>
    %26 = vector.broadcast %25 : vector<8x1xf32> to vector<8x2432xf32>
    %27 = arith.addf %24, %26 : vector<8x2432xf32>
    %cst_8 = arith.constant 0.000000e+00 : f32
    %28 = vector.broadcast %cst_8 : f32 to vector<8x2432xf32>
    %29 = arith.maximumf %27, %28 : vector<8x2432xf32>
    %30 = arith.truncf %29 : vector<8x2432xf32> to vector<8x2432xbf16>
    %c0_9 = arith.constant 0 : index
    %c0_10 = arith.constant 0 : index
    %31 = vector.load %arg6[%c0_9, %c0_10] : memref<16x8xbf16, #tpu.memory_space<vmem>>, vector<16x8xbf16>
    %cst_11 = arith.constant dense<0.000000e+00> : vector<16x2432xf32>
    %32 = tpu.matmul %31, %30, %cst_11 {dimension_numbers = #tpu.dot_dimension_numbers<[1], [0], [0], [1], [0, 0, 1, 1], [], []>} : vector<16x8xbf16>, vector<8x2432xbf16>, vector<16x2432xf32> -> vector<16x2432xf32>
    %c0_12 = arith.constant 0 : index
    %c0_13 = arith.constant 0 : index
    %33 = vector.load %arg7[%c0_12, %c0_13] : memref<16x1xf32, #tpu.memory_space<vmem>>, vector<16x1xf32>
    %34 = vector.broadcast %33 : vector<16x1xf32> to vector<16x2432xf32>
    %35 = arith.addf %32, %34 : vector<16x2432xf32>
    %cst_14 = arith.constant 0.000000e+00 : f32
    %36 = vector.broadcast %cst_14 : f32 to vector<16x2432xf32>
    %37 = arith.maximumf %35, %36 : vector<16x2432xf32>
    %38 = tpu.iota {dimensions = array<i32: 1>} : vector<1x2432xi32>
    %c16_i32 = arith.constant 16 : i32
    %39 = arith.muli %arg1, %c16_i32 : i32
    %c1_i32 = arith.constant 1 : i32
    %40 = arith.subi %c1_i32, %39 : i32
    %c128_i32 = arith.constant 128 : i32
    %41 = arith.muli %40, %c128_i32 : i32
    %42 = vector.broadcast %41 : i32 to vector<1x2432xi32>
    %43 = arith.cmpi sge, %38, %42 : vector<1x2432xi32>
    %c2048_i32_15 = arith.constant 2048 : i32
    %44 = arith.addi %41, %c2048_i32_15 : i32
    %45 = vector.broadcast %44 : i32 to vector<1x2432xi32>
    %46 = arith.cmpi slt, %38, %45 : vector<1x2432xi32>
    %47 = arith.andi %43, %46 : vector<1x2432xi1>
    %c0_16 = arith.constant 0 : index
    %c0_17 = arith.constant 0 : index
    %48 = vector.load %arg3[%c0_16, %c0_17] : memref<1x2432xf32, #tpu.memory_space<vmem>>, vector<1x2432xf32>
    %cst_18 = arith.constant 0.000000e+00 : f32
    %49 = vector.broadcast %cst_18 : f32 to vector<1x2432xf32>
    %50 = arith.select %47, %48, %49 : vector<1x2432xi1>, vector<1x2432xf32>
    %51 = vector.broadcast %50 : vector<1x2432xf32> to vector<16x2432xf32>
    %52 = arith.mulf %37, %51 : vector<16x2432xf32>
    %53 = arith.truncf %52 : vector<16x2432xf32> to vector<16x2432xbf16>
    %54 = vector.extract_strided_slice %53 {offsets = [0, 1], sizes = [16, 2304], strides = [1, 1]} : vector<16x2432xbf16> to vector<16x2304xbf16>
    %55 = vector.extract_strided_slice %53 {offsets = [0, 2], sizes = [16, 2304], strides = [1, 1]} : vector<16x2432xbf16> to vector<16x2304xbf16>
    %56 = vector.extract_strided_slice %53 {offsets = [0, 0], sizes = [16, 2048], strides = [1, 1]} : vector<16x2432xbf16> to vector<16x2048xbf16>
    %57 = vector.extract_strided_slice %54 {offsets = [0, 0], sizes = [16, 2048], strides = [1, 1]} : vector<16x2304xbf16> to vector<16x2048xbf16>
    %58 = vector.extract_strided_slice %55 {offsets = [0, 0], sizes = [16, 2048], strides = [1, 1]} : vector<16x2304xbf16> to vector<16x2048xbf16>
    %59 = vector.extract_strided_slice %53 {offsets = [0, 128], sizes = [16, 2048], strides = [1, 1]} : vector<16x2432xbf16> to vector<16x2048xbf16>
    %60 = vector.extract_strided_slice %54 {offsets = [0, 128], sizes = [16, 2048], strides = [1, 1]} : vector<16x2304xbf16> to vector<16x2048xbf16>
    %61 = vector.extract_strided_slice %55 {offsets = [0, 128], sizes = [16, 2048], strides = [1, 1]} : vector<16x2304xbf16> to vector<16x2048xbf16>
    %62 = vector.extract_strided_slice %53 {offsets = [0, 256], sizes = [16, 2048], strides = [1, 1]} : vector<16x2432xbf16> to vector<16x2048xbf16>
    %63 = vector.extract_strided_slice %54 {offsets = [0, 256], sizes = [16, 2048], strides = [1, 1]} : vector<16x2304xbf16> to vector<16x2048xbf16>
    %64 = vector.extract_strided_slice %55 {offsets = [0, 256], sizes = [16, 2048], strides = [1, 1]} : vector<16x2304xbf16> to vector<16x2048xbf16>
    %65 = tpu.concatenate %56, %57, %58, %59, %60, %61, %62, %63, %64 in 0 : vector<16x2048xbf16>, vector<16x2048xbf16>, vector<16x2048xbf16>, vector<16x2048xbf16>, vector<16x2048xbf16>, vector<16x2048xbf16>, vector<16x2048xbf16>, vector<16x2048xbf16>, vector<16x2048xbf16> -> vector<144x2048xbf16>
    %c0_19 = arith.constant 0 : index
    %c0_20 = arith.constant 0 : index
    %66 = vector.load %arg8[%c0_19, %c0_20] : memref<8x144xbf16, #tpu.memory_space<vmem>>, vector<8x144xbf16>
    %cst_21 = arith.constant dense<0.000000e+00> : vector<8x2048xf32>
    %67 = tpu.matmul %66, %65, %cst_21 {dimension_numbers = #tpu.dot_dimension_numbers<[1], [0], [0], [1], [0, 0, 1, 1], [], []>} : vector<8x144xbf16>, vector<144x2048xbf16>, vector<8x2048xf32> -> vector<8x2048xf32>
    %68 = vector.extract_strided_slice %67 {offsets = [0, 0], sizes = [1, 2048], strides = [1, 1]} : vector<8x2048xf32> to vector<1x2048xf32>
    %c0_22 = arith.constant 0 : index
    %c0_23 = arith.constant 0 : index
    %69 = vector.load %arg9[%c0_22, %c0_23] : memref<1x1xf32, #tpu.memory_space<vmem>>, vector<1x1xf32>
    %70 = vector.broadcast %69 : vector<1x1xf32> to vector<1x2048xf32>
    %71 = arith.addf %68, %70 : vector<1x2048xf32>
    %72 = arith.negf %71 : vector<1x2048xf32>
    %73 = math.exp %72 : vector<1x2048xf32>
    %cst_24 = arith.constant 1.000000e+00 : f32
    %74 = vector.broadcast %cst_24 : f32 to vector<1x2048xf32>
    %75 = arith.addf %74, %73 : vector<1x2048xf32>
    %76 = arith.divf %74, %75 : vector<1x2048xf32>
    %c0_25 = arith.constant 0 : index
    %c0_26 = arith.constant 0 : index
    %c0_27 = arith.constant 0 : index
    %c0_28 = arith.constant 0 : index
    %77 = vector.load %arg10[%c0_25, %c0_26, %c0_27, %c0_28] : memref<1x1x1x2048xf32, #tpu.memory_space<vmem>>, vector<1x1x1x2048xf32>
    %78 = vector.shape_cast %77 : vector<1x1x1x2048xf32> to vector<1x2048xf32>
    %79 = vector.shape_cast %76 : vector<1x2048xf32> to vector<1x1x1x2048xf32>
    tpu.vector_store %arg10[%c0_25, %c0_26, %c0_27, %c0_28], %79 {strides = array<i32>} : memref<1x1x1x2048xf32, #tpu.memory_space<vmem>>, vector<1x1x1x2048xf32>,
    return
  }
  func.func @transform_1(%arg0: i32, %arg1: i32) -> (i32, i32) {
    %c0_i32 = arith.constant 0 : i32
    %c0_i32_0 = arith.constant 0 : i32
    %c0_i32_1 = arith.constant 0 : i32
    return %c0_i32, %c0_i32_0 : i32, i32
  }
  func.func @transform_2(%arg0: i32, %arg1: i32) -> (i32, i32) {
    %c0_i32 = arith.constant 0 : i32
    %c0_i32_0 = arith.constant 0 : i32
    %c0_i32_1 = arith.constant 0 : i32
    return %c0_i32, %c0_i32_0 : i32, i32
  }
  func.func @transform_3(%arg0: i32, %arg1: i32) -> (i32, i32) {
    %c0_i32 = arith.constant 0 : i32
    %c0_i32_0 = arith.constant 0 : i32
    %c0_i32_1 = arith.constant 0 : i32
    return %c0_i32, %c0_i32_0 : i32, i32
  }
  func.func @transform_4(%arg0: i32, %arg1: i32) -> (i32, i32) {
    %c0_i32 = arith.constant 0 : i32
    %c0_i32_0 = arith.constant 0 : i32
    %c0_i32_1 = arith.constant 0 : i32
    return %c0_i32, %c0_i32_0 : i32, i32
  }
  func.func @transform_5(%arg0: i32, %arg1: i32) -> (i32, i32) {
    %c0_i32 = arith.constant 0 : i32
    %c0_i32_0 = arith.constant 0 : i32
    %c0_i32_1 = arith.constant 0 : i32
    return %c0_i32, %c0_i32_0 : i32, i32
  }
  func.func @transform_6(%arg0: i32, %arg1: i32) -> (i32, i32) {
    %c0_i32 = arith.constant 0 : i32
    %c0_i32_0 = arith.constant 0 : i32
    %c0_i32_1 = arith.constant 0 : i32
    return %c0_i32, %c0_i32_0 : i32, i32
  }
  func.func @transform_7(%arg0: i32, %arg1: i32) -> (i32, i32) {
    %c0_i32 = arith.constant 0 : i32
    %c0_i32_0 = arith.constant 0 : i32
    %c0_i32_1 = arith.constant 0 : i32
    return %c0_i32, %c0_i32_0 : i32, i32
  }
  func.func @transform_8(%arg0: i32, %arg1: i32) -> (i32, i32, i32, i32) {
    %c0_i32 = arith.constant 0 : i32
    %c0_i32_0 = arith.constant 0 : i32
    %c0_i32_1 = arith.constant 0 : i32
    return %arg0, %arg1, %c0_i32, %c0_i32_0 : i32, i32, i32, i32
  }
}

</mosaic_0001>

<llo_original>
// kernel: _det_model_forward.1
$region0: #{_det_model_forward.1}
  #allocation0 [shape = 'u32[]', space=smem, size = 0x4, offset = 0x4, fixed_abs, tag = 'smem constant byte address 0x4 - core index']
  #allocation1 [shape = 'u32[144,128]{1,0:T(1,128)}', space=vmem, size = 0x12000, scoped, tag = 'internal scratch']
  #allocation2 [shape = 'bf16[4,2816]{1,0:T(4,128)(2,1)}', space=vmem, size = 0x5800, scoped, tag = 'scratch operand']
  #allocation3 [shape = 's32[1]{0}', space=sflag, size = 0x4, scoped, tag = 'scratch operand']
  #allocation4 [shape = 'f32[1,1]{1,0:T(1,128)S(1)}', space=vmem, size = 0x200, scoped, tag = 'scoped memory for _det_model_forward.1']
  #allocation5 [shape = 's32[]', space=sflag, size = 0x4, offset = 0, fixed_abs, tag = 'sflag constant byte address 0x0 - dummy sync flag']
  %s0 = inlined_call_operand.vmem [shape: bf16[2,4,2816], index: 0, kind: input, shape index: {}]
  %s1 = inlined_call_operand.vmem [shape: f32[1,2432], index: 1, kind: input, shape index: {}]
  %s2 = inlined_call_operand.vmem [shape: bf16[8,36], index: 2, kind: input, shape index: {}]
  %s3 = inlined_call_operand.vmem [shape: f32[8,1], index: 3, kind: input, shape index: {}]
  %s4 = inlined_call_operand.vmem [shape: bf16[16,8], index: 4, kind: input, shape index: {}]
  %s5 = inlined_call_operand.vmem [shape: f32[16,1], index: 5, kind: input, shape index: {}]
  %s6 = inlined_call_operand.vmem [shape: bf16[8,144], index: 6, kind: input, shape index: {}]
  %s7 = inlined_call_operand.<no memory space> [shape: f32[1,1], index: 7, kind: input, shape index: {}]
  %s8 = inlined_call_operand.vmem [shape: f32[2,1,1,2048], index: 8, kind: output, shape index: {}]
  %s9 = sld [smem:[#allocation0]]
  $region98: #{_det_model_forward.1} parent=0
    _
  %s11 = ssub.s32 1, %s9
  %s12 = scalar_select 0, %s11, %s9
  %v13 = vstv %s7
  %14 = vst [vmem:[#allocation4] sm:$0x1] %v13
  loop: start=0, step=1, limit=4
  $region2: #{_det_model_forward.1} parent=0 // loop_pre_header
    _
  $region3: #{_det_model_forward.1} parent=0 // loop_header
    %s16 = sphi 0, %s20
    %p17 = scmp.ge.s32.totalorder %s16, 4
    %s23 = sphi 0, %s35
    %s24 = sphi 0, %s31
    %s25 = sphi 0, %s23
    %s26 = sphi 0, %s24
    %s27 = sphi 0, %s25
    %s28 = sphi 0, %s26
    %s36 = sphi 0, %s36
    %s38 = sphi 0, %s36
    %s39 = sphi 0, %s38
    %s53 = sphi 0, %s39
    %s57 = sphi 0, %s57
    %s59 = sphi 0, %s57
    %s60 = sphi 0, %s59
    %s74 = sphi 0, %s60
    %s78 = sphi 0, %s78
    %s80 = sphi 0, %s78
    %s81 = sphi 0, %s80
    %s95 = sphi 0, %s81
    %s99 = sphi 0, %s99
    %s101 = sphi 0, %s99
    %s102 = sphi 0, %s101
    %s116 = sphi 0, %s102
    %s120 = sphi 0, %s120
    %s122 = sphi 0, %s120
    %s123 = sphi 0, %s122
    %s137 = sphi 0, %s123
    %s141 = sphi 0, %s141
    %s143 = sphi 0, %s141
    %s144 = sphi 0, %s143
    %s158 = sphi 0, %s144
    %s162 = sphi 0, %s162
    %s164 = sphi 0, %s162
    %s165 = sphi 0, %s164
    %s179 = sphi 0, %s165
    %s187 = sphi 0, %s189
    %s190 = sphi 0, %s187
    %s191 = sphi 0, %s190
    %s207 = sphi 0, %s191
  $region4: #{_det_model_forward.1} parent=0 // loop_header_branch
    %19 = sbr.rel (%p17) target = $region8
  $region5: #{_det_model_forward.1} parent=0 // loop_body
    %s21 = ssub.s32 %s16, 1
    %s22 = ssub.s32 %s16, 2
    %s29 = sadd.s32 1, %s24
    %p30 = scmp.ge.s32.totalorder %s29, 1
    %s31 = scalar_select %p30, 0, %s29
    %s32 = sadd.s32 1, %s23
    %s33 = scalar_select %p30, %s32, %s23
    %p34 = scmp.ge.s32.totalorder %s33, 2
    %s35 = scalar_select %p34, 0, %s33
    %s37 = sadd.s32 %s36, 1
    %p40 = scmp.eq.s32.totalorder %s16, 1
    %p41 = scmp.ne.s32.totalorder %s36, %s38
    %p42 = scmp.eq.s32.totalorder %s16, 0
    %p43 = por %p41, %p42
    %p44 = scmp.ne.s32.totalorder %s36, %s38
    %p45 = scmp.eq.s32.totalorder %s21, 1
    %p46 = por %p44, %p45
    %p47 = scmp.ne.s32.totalorder %s38, %s39
    %p48 = scmp.eq.s32.totalorder %s21, 0
    %p49 = por %p47, %p48
    %p50 = scmp.ne.s32.totalorder %s38, %s39
    %p51 = scmp.eq.s32.totalorder %s22, 1
    %p52 = por %p50, %p51
    %p54 = scmp.ne.s32.totalorder %s39, %s53
    %p55 = scmp.eq.s32.totalorder %s22, 0
    %p56 = por %p54, %p55
    %s58 = sadd.s32 %s57, 1
    %p61 = scmp.eq.s32.totalorder %s16, 1
    %p62 = scmp.ne.s32.totalorder %s57, %s59
    %p63 = scmp.eq.s32.totalorder %s16, 0
    %p64 = por %p62, %p63
    %p65 = scmp.ne.s32.totalorder %s57, %s59
    %p66 = scmp.eq.s32.totalorder %s21, 1
    %p67 = por %p65, %p66
    %p68 = scmp.ne.s32.totalorder %s59, %s60
    %p69 = scmp.eq.s32.totalorder %s21, 0
    %p70 = por %p68, %p69
    %p71 = scmp.ne.s32.totalorder %s59, %s60
    %p72 = scmp.eq.s32.totalorder %s22, 1
    %p73 = por %p71, %p72
    %p75 = scmp.ne.s32.totalorder %s60, %s74
    %p76 = scmp.eq.s32.totalorder %s22, 0
    %p77 = por %p75, %p76
    %s79 = sadd.s32 %s78, 1
    %p82 = scmp.eq.s32.totalorder %s16, 1
    %p83 = scmp.ne.s32.totalorder %s78, %s80
    %p84 = scmp.eq.s32.totalorder %s16, 0
    %p85 = por %p83, %p84
    %p86 = scmp.ne.s32.totalorder %s78, %s80
    %p87 = scmp.eq.s32.totalorder %s21, 1
    %p88 = por %p86, %p87
    %p89 = scmp.ne.s32.totalorder %s80, %s81
    %p90 = scmp.eq.s32.totalorder %s21, 0
    %p91 = por %p89, %p90
    %p92 = scmp.ne.s32.totalorder %s80, %s81
    %p93 = scmp.eq.s32.totalorder %s22, 1
    %p94 = por %p92, %p93
    %p96 = scmp.ne.s32.totalorder %s81, %s95
    %p97 = scmp.eq.s32.totalorder %s22, 0
    %p98 = por %p96, %p97
    %s100 = sadd.s32 %s99, 1
    %p103 = scmp.eq.s32.totalorder %s16, 1
    %p104 = scmp.ne.s32.totalorder %s99, %s101
    %p105 = scmp.eq.s32.totalorder %s16, 0
    %p106 = por %p104, %p105
    %p107 = scmp.ne.s32.totalorder %s99, %s101
    %p108 = scmp.eq.s32.totalorder %s21, 1
    %p109 = por %p107, %p108
    %p110 = scmp.ne.s32.totalorder %s101, %s102
    %p111 = scmp.eq.s32.totalorder %s21, 0
    %p112 = por %p110, %p111
    %p113 = scmp.ne.s32.totalorder %s101, %s102
    %p114 = scmp.eq.s32.totalorder %s22, 1
    %p115 = por %p113, %p114
    %p117 = scmp.ne.s32.totalorder %s102, %s116
    %p118 = scmp.eq.s32.totalorder %s22, 0
    %p119 = por %p117, %p118
    %s121 = sadd.s32 %s120, 1
    %p124 = scmp.eq.s32.totalorder %s16, 1
    %p125 = scmp.ne.s32.totalorder %s120, %s122
    %p126 = scmp.eq.s32.totalorder %s16, 0
    %p127 = por %p125, %p126
    %p128 = scmp.ne.s32.totalorder %s120, %s122
    %p129 = scmp.eq.s32.totalorder %s21, 1
    %p130 = por %p128, %p129
    %p131 = scmp.ne.s32.totalorder %s122, %s123
    %p132 = scmp.eq.s32.totalorder %s21, 0
    %p133 = por %p131, %p132
    %p134 = scmp.ne.s32.totalorder %s122, %s123
    %p135 = scmp.eq.s32.totalorder %s22, 1
    %p136 = por %p134, %p135
    %p138 = scmp.ne.s32.totalorder %s123, %s137
    %p139 = scmp.eq.s32.totalorder %s22, 0
    %p140 = por %p138, %p139
    %s142 = sadd.s32 %s141, 1
    %p145 = scmp.eq.s32.totalorder %s16, 1
    %p146 = scmp.ne.s32.totalorder %s141, %s143
    %p147 = scmp.eq.s32.totalorder %s16, 0
    %p148 = por %p146, %p147
    %p149 = scmp.ne.s32.totalorder %s141, %s143
    %p150 = scmp.eq.s32.totalorder %s21, 1
    %p151 = por %p149, %p150
    %p152 = scmp.ne.s32.totalorder %s143, %s144
    %p153 = scmp.eq.s32.totalorder %s21, 0
    %p154 = por %p152, %p153
    %p155 = scmp.ne.s32.totalorder %s143, %s144
    %p156 = scmp.eq.s32.totalorder %s22, 1
    %p157 = por %p155, %p156
    %p159 = scmp.ne.s32.totalorder %s144, %s158
    %p160 = scmp.eq.s32.totalorder %s22, 0
    %p161 = por %p159, %p160
    %s163 = sadd.s32 %s162, 1
    %p166 = scmp.eq.s32.totalorder %s16, 1
    %p167 = scmp.ne.s32.totalorder %s162, %s164
    %p168 = scmp.eq.s32.totalorder %s16, 0
    %p169 = por %p167, %p168
    %p170 = scmp.ne.s32.totalorder %s162, %s164
    %p171 = scmp.eq.s32.totalorder %s21, 1
    %p172 = por %p170, %p171
    %p173 = scmp.ne.s32.totalorder %s164, %s165
    %p174 = scmp.eq.s32.totalorder %s21, 0
    %p175 = por %p173, %p174
    %p176 = scmp.ne.s32.totalorder %s164, %s165
    %p177 = scmp.eq.s32.totalorder %s22, 1
    %p178 = por %p176, %p177
    %p180 = scmp.ne.s32.totalorder %s165, %s179
    %p181 = scmp.eq.s32.totalorder %s22, 0
    %p182 = por %p180, %p181
    %s183 = ssub.s32 %s23, %s35
    %s184 = ssub.s32 %s24, %s31
    %s185 = sor.u32 %s183, %s184
    %p186 = scmp.eq.s32.totalorder %s185, 0
    %s188 = sadd.s32 %s187, 1
    %s189 = scalar_select %p186, %s187, %s188
    %p192 = pneg %p186
    %p193 = scmp.eq.s32.totalorder %s16, 1
    %p194 = por %p192, %p193
    %p195 = scmp.ne.s32.totalorder %s187, %s190
    %p196 = scmp.eq.s32.totalorder %s16, 0
    %p197 = por %p195, %p196
    %p198 = scmp.ne.s32.totalorder %s187, %s190
    %p199 = scmp.eq.s32.totalorder %s21, 1
    %p200 = por %p198, %p199
    %p201 = scmp.ne.s32.totalorder %s190, %s191
    %p202 = scmp.eq.s32.totalorder %s21, 0
    %p203 = por %p201, %p202
    %p204 = scmp.ne.s32.totalorder %s190, %s191
    %p205 = scmp.eq.s32.totalorder %s22, 1
    %p206 = por %p204, %p205
    %p208 = scmp.ne.s32.totalorder %s191, %s207
    %p209 = scmp.eq.s32.totalorder %s22, 0
    %p210 = por %p208, %p209
    %p211 = scmp.le.s32.totalorder 1, %s16
    %p212 = scmp.lt.s32.totalorder %s16, 3
    %p213 = pnand %p211, %p212
    %p214 = pneg %p213
    // Predicated region
    $region9: #{_det_model_forward.1} parent=5 // pred_check
      _
    $region10: #{_det_model_forward.1} parent=5 // pred_check_branch
      %216 = sbr.rel (%p213) target = $region12
    $region11: #{_det_model_forward.1} parent=5 // pred_region
      %s217 = ssub.s32 %s16, 1
      // Predicated region
      $region13: #{_det_model_forward.1} parent=11 // pred_check
        %p218 = pneg %p49
      $region14: #{_det_model_forward.1} parent=11 // pred_check_branch
        %220 = sbr.rel (%p218) target = $region16
      $region15: #{_det_model_forward.1} parent=11 // pred_region
        _
      $region16: #{_det_model_forward.1} parent=11 // pred_fallthru
        _
      // Predicated region
      $region17: #{_det_model_forward.1} parent=11 // pred_check
        %p221 = pneg %p70
      $region18: #{_det_model_forward.1} parent=11 // pred_check_branch
        %223 = sbr.rel (%p221) target = $region20
      $region19: #{_det_model_forward.1} parent=11 // pred_region
        _
      $region20: #{_det_model_forward.1} parent=11 // pred_fallthru
        _
      // Predicated region
      $region21: #{_det_model_forward.1} parent=11 // pred_check
        %p224 = pneg %p91
      $region22: #{_det_model_forward.1} parent=11 // pred_check_branch
        %226 = sbr.rel (%p224) target = $region24
      $region23: #{_det_model_forward.1} parent=11 // pred_region
        _
      $region24: #{_det_model_forward.1} parent=11 // pred_fallthru
        _
      // Predicated region
      $region25: #{_det_model_forward.1} parent=11 // pred_check
        %p227 = pneg %p112
      $region26: #{_det_model_forward.1} parent=11 // pred_check_branch
        %229 = sbr.rel (%p227) target = $region28
      $region27: #{_det_model_forward.1} parent=11 // pred_region
        _
      $region28: #{_det_model_forward.1} parent=11 // pred_fallthru
        _
      // Predicated region
      $region29: #{_det_model_forward.1} parent=11 // pred_check
        %p230 = pneg %p133
      $region30: #{_det_model_forward.1} parent=11 // pred_check_branch
        %232 = sbr.rel (%p230) target = $region32
      $region31: #{_det_model_forward.1} parent=11 // pred_region
        _
      $region32: #{_det_model_forward.1} parent=11 // pred_fallthru
        _
      // Predicated region
      $region33: #{_det_model_forward.1} parent=11 // pred_check
        %p233 = pneg %p154
      $region34: #{_det_model_forward.1} parent=11 // pred_check_branch
        %235 = sbr.rel (%p233) target = $region36
      $region35: #{_det_model_forward.1} parent=11 // pred_region
        _
      $region36: #{_det_model_forward.1} parent=11 // pred_fallthru
        _
      // Predicated region
      $region37: #{_det_model_forward.1} parent=11 // pred_check
        %p236 = pneg %p175
      $region38: #{_det_model_forward.1} parent=11 // pred_check_branch
        %238 = sbr.rel (%p236) target = $region40
      $region39: #{_det_model_forward.1} parent=11 // pred_region
        _
      $region40: #{_det_model_forward.1} parent=11 // pred_fallthru
        _
    $region12: #{_det_model_forward.1} parent=5 // pred_fallthru
      _
    %p239 = scmp.lt.s32.totalorder %s16, 2
    // Predicated region
    $region41: #{_det_model_forward.1} parent=5 // pred_check
      %p240 = pneg %p239
    $region42: #{_det_model_forward.1} parent=5 // pred_check_branch
      %242 = sbr.rel (%p240) target = $region44
    $region43: #{_det_model_forward.1} parent=5 // pred_region
      _
    $region44: #{_det_model_forward.1} parent=5 // pred_fallthru
      _
    %p243 = scmp.le.s32.totalorder 1, %s16
    %p244 = scmp.lt.s32.totalorder %s16, 3
    %p245 = pnand %p243, %p244
    %p246 = pneg %p245
    // Predicated region
    $region45: #{_det_model_forward.1} parent=5 // pred_check
      _
    $region46: #{_det_model_forward.1} parent=5 // pred_check_branch
      %248 = sbr.rel (%p245) target = $region48
    $region47: #{_det_model_forward.1} parent=5 // pred_region
      %s249 = ssub.s32 %s16, 1
      %p250 = pneg %p49
      %p251 = pneg %p46
      %p252 = pneg %p70
      %p253 = pneg %p67
      %p254 = pneg %p91
      %p255 = pneg %p88
      %p256 = pneg %p112
      %p257 = pneg %p109
      %p258 = pneg %p133
      %p259 = pneg %p130
      %p260 = pneg %p154
      %p261 = pneg %p151
      %p262 = pneg %p175
      %p263 = pneg %p172
      %p264 = pneg %p203
      %p265 = pneg %p200
      %p266 = scmp.lt.s32.totalorder %s25, 1
      %s267 = scalar_select %p266, %s25, 1
      %p268 = scmp.lt.s32.totalorder %s26, 0
      %s269 = scalar_select %p268, %s26, 0
      %s270 = smul.addr %s269, 16
      %s271 = smul.addr %s267, 16
      %s272 = sadd.s32 %s270, %s271
      %s273 = scalar_lea.vmem %s8, %s272
      %p274 = scmp.lt.s32.totalorder %s25, 1
      %s275 = scalar_select %p274, %s25, 1
      %p276 = scmp.lt.s32.totalorder %s26, 0
      %s277 = scalar_select %p276, %s26, 0
      %s278 = smul.addr %s277, 16
      %s279 = smul.addr %s275, 16
      %s280 = sadd.s32 %s278, %s279
      %s281 = scalar_lea.vmem %s8, %s280
      %s283 = smul.u32 %s26, 2048
      %s284 = sshra.s32 %s283, 7
      %s285 = sand.u32 %s283, 127
      %s286 = smul.u32 %s25, 22
      %s287 = sadd.s32 %s284, %s286
      %s288 = smul.addr %s287, 2
      %s289 = scalar_lea.vmem %s0, %s288
      %p291 = scmp.lt.u32.totalorder 44, 8
      %p292 = pneg %p291
      // Predicated region
      $region49: #{_det_model_forward.1} parent=47 // pred_check
        _
      $region50: #{_det_model_forward.1} parent=47 // pred_check_branch
        %294 = sbr.rel (%p291) target = $region52
      $region51: #{_det_model_forward.1} parent=47 // pred_region
        %s309 = sand.u32 44, 7
        %p310 = scmp.eq.s32.totalorder %s309, 0
        %p311 = pneg %p310
        // Predicated region
        $region64: #{_det_model_forward.1} parent=51 // pred_check
          _
        $region65: #{_det_model_forward.1} parent=51 // pred_check_branch
          %313 = sbr.rel (%p310) target = $region67
        $region66: #{_det_model_forward.1} parent=51 // pred_region
          %s314 = sand.u32 44, 7
          %s315 = ssub.s32 44, %s314
          %s316 = scalar_lea.vmem %s289, %s315
          %s317 = ssub.s32 44, %s314
          %s318 = scalar_lea.vmem [#allocation2], %s317
          loop: start=0, step=1, limit=1
          $region68: #{_det_model_forward.1} parent=66 // loop_pre_header
            _
          $region69: #{_det_model_forward.1} parent=66 // loop_header
            %s320 = sphi 0, %s324
            %p321 = scmp.ge.s32.totalorder %s320, 1
            %s325 = sphi %s289, %s289
            %s326 = sphi [#allocation2], [#allocation2]
          $region70: #{_det_model_forward.1} parent=66 // loop_header_branch
            %323 = sbr.rel (%p321) target = $region74
          $region71: #{_det_model_forward.1} parent=66 // loop_body
            %v327 = vld [vmem:[%s325] sm:$0xff]
            %328 = vst [vmem:[%s326] sm:$0xff] %v327
            %v329 = vld [vmem:[%s325 + $0x8] sm:$0xff]
            %330 = vst [vmem:[%s326 + $0x8] sm:$0xff] %v329
            %v331 = vld [vmem:[%s325 + $0x10] sm:$0xff]
            %332 = vst [vmem:[%s326 + $0x10] sm:$0xff] %v331
            %v333 = vld [vmem:[%s325 + $0x18] sm:$0xff]
            %334 = vst [vmem:[%s326 + $0x18] sm:$0xff] %v333
            %v335 = vld [vmem:[%s325 + $0x20] sm:$0xff]
            %336 = vst [vmem:[%s326 + $0x20] sm:$0xff] %v335
          $region72: #{_det_model_forward.1} parent=66 // loop_footer
            %s324 = sadd.s32 1, %s320
          $region73: #{_det_model_forward.1} parent=66 // loop_footer_branch
            %319 = sbr.rel target = $region69
          $region74: #{_det_model_forward.1} parent=66 // loop_exit
            _
          %s337 = sshllo.u32 0, %s314
          loop: start=0, step=1, limit=1
          $region75: #{_det_model_forward.1} parent=66 // loop_pre_header
            _
          $region76: #{_det_model_forward.1} parent=66 // loop_header
            %s339 = sphi 0, %s343
            %p340 = scmp.ge.s32.totalorder %s339, 1
            %s344 = sphi %s316, %s316
            %s345 = sphi %s318, %s318
          $region77: #{_det_model_forward.1} parent=66 // loop_header_branch
            %342 = sbr.rel (%p340) target = $region81
          $region78: #{_det_model_forward.1} parent=66 // loop_body
            %v346 = vld [vmem:[%s344] sm:%s337]
            %347 = vst [vmem:[%s345] sm:%s337] %v346
          $region79: #{_det_model_forward.1} parent=66 // loop_footer
            %s343 = sadd.s32 1, %s339
          $region80: #{_det_model_forward.1} parent=66 // loop_footer_branch
            %338 = sbr.rel target = $region76
          $region81: #{_det_model_forward.1} parent=66 // loop_exit
            _
        $region67: #{_det_model_forward.1} parent=51 // pred_fallthru
          _
      $region52: #{_det_model_forward.1} parent=47 // pred_fallthru
        _
      // Predicated region
      $region53: #{_det_model_forward.1} parent=47 // pred_check
        %p295 = pneg %p291
      $region54: #{_det_model_forward.1} parent=47 // pred_check_branch
        %297 = sbr.rel (%p295) target = $region56
      $region55: #{_det_model_forward.1} parent=47 // pred_region
        %s298 = sshllo.u32 0, 44
        loop: start=0, step=1, limit=1
        $region57: #{_det_model_forward.1} parent=55 // loop_pre_header
          _
        $region58: #{_det_model_forward.1} parent=55 // loop_header
          %s300 = sphi 0, %s304
          %p301 = scmp.ge.s32.totalorder %s300, 1
          %s305 = sphi %s289, %s289
          %s306 = sphi [#allocation2], [#allocation2]
        $region59: #{_det_model_forward.1} parent=55 // loop_header_branch
          %303 = sbr.rel (%p301) target = $region63
        $region60: #{_det_model_forward.1} parent=55 // loop_body
          %v307 = vld [vmem:[%s305] sm:%s298]
          %308 = vst [vmem:[%s306] sm:%s298] %v307
        $region61: #{_det_model_forward.1} parent=55 // loop_footer
          %s304 = sadd.s32 1, %s300
        $region62: #{_det_model_forward.1} parent=55 // loop_footer_branch
          %299 = sbr.rel target = $region58
        $region63: #{_det_model_forward.1} parent=55 // loop_exit
          _
      $region56: #{_det_model_forward.1} parent=47 // pred_fallthru
        _
      // Predicated region
      $region82: #{_det_model_forward.1} parent=47 // pred_check
        _
      $region83: #{_det_model_forward.1} parent=47 // pred_check_branch
        %350 = sbr.rel (0) target = $region85
      $region84: #{_det_model_forward.1} parent=47 // pred_region
        %351 = vsyncadd [#allocation3], 704
      $region85: #{_det_model_forward.1} parent=47 // pred_fallthru
        _
      %s352 = smul.u32 2, 1
      %s353 = smul.u32 %s352, 22
      %s354 = sshll.u32 %s353, 4
      %355 = dma.done [#allocation3], %s354
      %v356 = vld [vmem:[#allocation2] sm:$0xff]
      %v357 = vld [vmem:[#allocation2 + $0x8] sm:$0xff]
      %v358 = vld [vmem:[#allocation2 + $0x10] sm:$0xff]
      %v359 = vld [vmem:[#allocation2 + $0x18] sm:$0xff]
      %v360 = vld [vmem:[#allocation2 + $0x20] sm:$0xff]
      %v361 = vld [vmem:[#allocation2 + $0x28] sm:$0xf]
      %v367 = vcombine.high %v356, %v356
      %v369 = vunpack.c.l.s4 1983009808
      %v370 = vunpack.c.0.s8 %v369
      %v371 = vlaneseq
      %v372 = vshrl.u32 %v371, 7
      %v373 = vsub.s32 %v370, %v372
      %v374 = vrot.slane %v356, %v373
      %v376 = vunpack.c.l.s4 1983009808
      %v377 = vunpack.c.0.s8 %v376
      %v378 = vlaneseq
      %v379 = vshrl.u32 %v378, 7
      %v380 = vsub.s32 %v377, %v379
      %v381 = vrot.slane %v367, %v380
      %v382 = vcombine.high %v374, %v374
      %v383 = vcombine.high %v381, %v381
      %v384 = vcombine.high %v357, %v357
      %v386 = vunpack.c.l.s4 1983009808
      %v387 = vunpack.c.0.s8 %v386
      %v388 = vlaneseq
      %v389 = vshrl.u32 %v388, 7
      %v390 = vsub.s32 %v387, %v389
      %v391 = vrot.slane %v357, %v390
      %v393 = vunpack.c.l.s4 1983009808
      %v394 = vunpack.c.0.s8 %v393
      %v395 = vlaneseq
      %v396 = vshrl.u32 %v395, 7
      %v397 = vsub.s32 %v394, %v396
      %v398 = vrot.slane %v384, %v397
      %v399 = vcombine.high %v391, %v391
      %v400 = vcombine.high %v398, %v398
      %v401 = vcombine.high %v358, %v358
      %v403 = vunpack.c.l.s4 1983009808
      %v404 = vunpack.c.0.s8 %v403
      %v405 = vlaneseq
      %v406 = vshrl.u32 %v405, 7
      %v407 = vsub.s32 %v404, %v406
      %v408 = vrot.slane %v358, %v407
      %v410 = vunpack.c.l.s4 1983009808
      %v411 = vunpack.c.0.s8 %v410
      %v412 = vlaneseq
      %v413 = vshrl.u32 %v412, 7
      %v414 = vsub.s32 %v411, %v413
      %v415 = vrot.slane %v401, %v414
      %v416 = vcombine.high %v408, %v408
      %v417 = vcombine.high %v415, %v415
      %v418 = vcombine.high %v359, %v359
      %v420 = vunpack.c.l.s4 1983009808
      %v421 = vunpack.c.0.s8 %v420
      %v422 = vlaneseq
      %v423 = vshrl.u32 %v422, 7
      %v424 = vsub.s32 %v421, %v423
      %v425 = vrot.slane %v359, %v424
      %v427 = vunpack.c.l.s4 1983009808
      %v428 = vunpack.c.0.s8 %v427
      %v429 = vlaneseq
      %v430 = vshrl.u32 %v429, 7
      %v431 = vsub.s32 %v428, %v430
      %v432 = vrot.slane %v418, %v431
      %v433 = vcombine.high %v425, %v425
      %v434 = vcombine.high %v432, %v432
      %v435 = vcombine.high %v360, %v360
      %v437 = vunpack.c.l.s4 1983009808
      %v438 = vunpack.c.0.s8 %v437
      %v439 = vlaneseq
      %v440 = vshrl.u32 %v439, 7
      %v441 = vsub.s32 %v438, %v440
      %v442 = vrot.slane %v360, %v441
      %v444 = vunpack.c.l.s4 1983009808
      %v445 = vunpack.c.0.s8 %v444
      %v446 = vlaneseq
      %v447 = vshrl.u32 %v446, 7
      %v448 = vsub.s32 %v445, %v447
      %v449 = vrot.slane %v435, %v448
      %v450 = vcombine.high %v442, %v442
      %v451 = vcombine.low %v356, %v356
      %v453 = vunpack.c.l.s4 1983009808
      %v454 = vunpack.c.0.s8 %v453
      %v455 = vlaneseq
      %v456 = vshrl.u32 %v455, 7
      %v457 = vsub.s32 %v454, %v456
      %v458 = vrot.slane %v451, %v457
      %v459 = vcombine.high %v458, %v458
      %v460 = vcombine.low %v357, %v357
      %v462 = vunpack.c.l.s4 1983009808
      %v463 = vunpack.c.0.s8 %v462
      %v464 = vlaneseq
      %v465 = vshrl.u32 %v464, 7
      %v466 = vsub.s32 %v463, %v465
      %v467 = vrot.slane %v460, %v466
      %v468 = vcombine.high %v467, %v467
      %v469 = vcombine.low %v358, %v358
      %v471 = vunpack.c.l.s4 1983009808
      %v472 = vunpack.c.0.s8 %v471
      %v473 = vlaneseq
      %v474 = vshrl.u32 %v473, 7
      %v475 = vsub.s32 %v472, %v474
      %v476 = vrot.slane %v469, %v475
      %v477 = vcombine.high %v476, %v476
      %v478 = vcombine.low %v359, %v359
      %v480 = vunpack.c.l.s4 1983009808
      %v481 = vunpack.c.0.s8 %v480
      %v482 = vlaneseq
      %v483 = vshrl.u32 %v482, 7
      %v484 = vsub.s32 %v481, %v483
      %v485 = vrot.slane %v478, %v484
      %v486 = vcombine.high %v485, %v485
      %v487 = vcombine.low %v360, %v360
      %v489 = vunpack.c.l.s4 1983009808
      %v490 = vunpack.c.0.s8 %v489
      %v491 = vlaneseq
      %v492 = vshrl.u32 %v491, 7
      %v493 = vsub.s32 %v490, %v492
      %v494 = vrot.slane %v487, %v493
      %v495 = vcombine.high %v494, %v494
      %496 = vrot.lane.b32.xlu0 %v458, 127
      %v497 = vpop.permute.xlu0 %496
      %498 = vrot.lane.b32.xlu0 %v459, 127
      %v499 = vpop.permute.xlu0 %498
      %500 = vrot.lane.b32.xlu0 %v374, 127
      %v501 = vpop.permute.xlu0 %500
      %502 = vrot.lane.b32.xlu0 %v382, 127
      %v503 = vpop.permute.xlu0 %502
      %504 = vrot.lane.b32.xlu0 %v467, 127
      %v505 = vpop.permute.xlu0 %504
      %506 = vrot.lane.b32.xlu0 %v468, 127
      %v507 = vpop.permute.xlu0 %506
      %508 = vrot.lane.b32.xlu0 %v391, 127
      %v509 = vpop.permute.xlu0 %508
      %510 = vrot.lane.b32.xlu0 %v399, 127
      %v511 = vpop.permute.xlu0 %510
      %512 = vrot.lane.b32.xlu0 %v476, 127
      %v513 = vpop.permute.xlu0 %512
      %514 = vrot.lane.b32.xlu0 %v477, 127
      %v515 = vpop.permute.xlu0 %514
      %516 = vrot.lane.b32.xlu0 %v408, 127
      %v517 = vpop.permute.xlu0 %516
      %518 = vrot.lane.b32.xlu0 %v416, 127
      %v519 = vpop.permute.xlu0 %518
      %520 = vrot.lane.b32.xlu0 %v485, 127
      %v521 = vpop.permute.xlu0 %520
      %522 = vrot.lane.b32.xlu0 %v486, 127
      %v523 = vpop.permute.xlu0 %522
      %524 = vrot.lane.b32.xlu0 %v425, 127
      %v525 = vpop.permute.xlu0 %524
      %526 = vrot.lane.b32.xlu0 %v433, 127
      %v527 = vpop.permute.xlu0 %526
      %528 = vrot.lane.b32.xlu0 %v494, 127
      %v529 = vpop.permute.xlu0 %528
      %530 = vrot.lane.b32.xlu0 %v495, 127
      %v531 = vpop.permute.xlu0 %530
      %532 = vrot.lane.b32.xlu0 %v442, 127
      %v533 = vpop.permute.xlu0 %532
      %534 = vrot.lane.b32.xlu0 %v450, 127
      %v535 = vpop.permute.xlu0 %534
      %vm536 = vcmask 1039360
      %v537 = vsel %vm536, %v497, %v499
      %v538 = vsel %vm536, %v499, %v501
      %v539 = vsel %vm536, %v501, %v503
      %v540 = vsel %vm536, %v503, %v505
      %v541 = vsel %vm536, %v505, %v507
      %v542 = vsel %vm536, %v507, %v509
      %v543 = vsel %vm536, %v509, %v511
      %v544 = vsel %vm536, %v511, %v513
      %v545 = vsel %vm536, %v513, %v515
      %v546 = vsel %vm536, %v515, %v517
      %v547 = vsel %vm536, %v517, %v519
      %v548 = vsel %vm536, %v519, %v521
      %v549 = vsel %vm536, %v521, %v523
      %v550 = vsel %vm536, %v523, %v525
      %v551 = vsel %vm536, %v525, %v527
      %v552 = vsel %vm536, %v527, %v529
      %v553 = vsel %vm536, %v529, %v531
      %v554 = vsel %vm536, %v531, %v533
      %v555 = vsel %vm536, %v533, %v535
      %v556 = vcombine.low %v374, %v374
      %v557 = vcombine.low %v381, %v381
      %v558 = vcombine.low %v391, %v391
      %v559 = vcombine.low %v398, %v398
      %v560 = vcombine.low %v408, %v408
      %v561 = vcombine.low %v415, %v415
      %v562 = vcombine.low %v425, %v425
      %v563 = vcombine.low %v432, %v432
      %v564 = vcombine.low %v442, %v442
      %v565 = vcombine.low %v449, %v449
      %566 = vrot.lane.b32.xlu0 %v556, 126
      %v567 = vpop.permute.xlu0 %566
      %568 = vrot.lane.b32.xlu0 %v374, 126
      %v569 = vpop.permute.xlu0 %568
      %570 = vrot.lane.b32.xlu0 %v557, 126
      %v571 = vpop.permute.xlu0 %570
      %572 = vrot.lane.b32.xlu0 %v381, 126
      %v573 = vpop.permute.xlu0 %572
      %574 = vrot.lane.b32.xlu0 %v558, 126
      %v575 = vpop.permute.xlu0 %574
      %576 = vrot.lane.b32.xlu0 %v391, 126
      %v577 = vpop.permute.xlu0 %576
      %578 = vrot.lane.b32.xlu0 %v559, 126
      %v579 = vpop.permute.xlu0 %578
      %580 = vrot.lane.b32.xlu0 %v398, 126
      %v581 = vpop.permute.xlu0 %580
      %582 = vrot.lane.b32.xlu0 %v560, 126
      %v583 = vpop.permute.xlu0 %582
      %584 = vrot.lane.b32.xlu0 %v408, 126
      %v585 = vpop.permute.xlu0 %584
      %586 = vrot.lane.b32.xlu0 %v561, 126
      %v587 = vpop.permute.xlu0 %586
      %588 = vrot.lane.b32.xlu0 %v415, 126
      %v589 = vpop.permute.xlu0 %588
      %590 = vrot.lane.b32.xlu0 %v562, 126
      %v591 = vpop.permute.xlu0 %590
      %592 = vrot.lane.b32.xlu0 %v425, 126
      %v593 = vpop.permute.xlu0 %592
      %594 = vrot.lane.b32.xlu0 %v563, 126
      %v595 = vpop.permute.xlu0 %594
      %596 = vrot.lane.b32.xlu0 %v432, 126
      %v597 = vpop.permute.xlu0 %596
      %598 = vrot.lane.b32.xlu0 %v564, 126
      %v599 = vpop.permute.xlu0 %598
      %600 = vrot.lane.b32.xlu0 %v442, 126
      %v601 = vpop.permute.xlu0 %600
      %602 = vrot.lane.b32.xlu0 %v565, 126
      %v603 = vpop.permute.xlu0 %602
      %604 = vrot.lane.b32.xlu0 %v449, 126
      %v605 = vpop.permute.xlu0 %604
      %vm606 = vcmask 1031168
      %v607 = vsel %vm606, %v567, %v569
      %v608 = vsel %vm606, %v569, %v571
      %v609 = vsel %vm606, %v571, %v573
      %v610 = vsel %vm606, %v573, %v575
      %v611 = vsel %vm606, %v575, %v577
      %v612 = vsel %vm606, %v577, %v579
      %v613 = vsel %vm606, %v579, %v581
      %v614 = vsel %vm606, %v581, %v583
      %v615 = vsel %vm606, %v583, %v585
      %v616 = vsel %vm606, %v585, %v587
      %v617 = vsel %vm606, %v587, %v589
      %v618 = vsel %vm606, %v589, %v591
      %v619 = vsel %vm606, %v591, %v593
      %v620 = vsel %vm606, %v593, %v595
      %v621 = vsel %vm606, %v595, %v597
      %v622 = vsel %vm606, %v597, %v599
      %v623 = vsel %vm606, %v599, %v601
      %v624 = vsel %vm606, %v601, %v603
      %v625 = vsel %vm606, %v603, %v605
      %v626 = vcombine.low %v467, %v467
      %v627 = vcombine.low %v476, %v476
      %v628 = vcombine.low %v485, %v485
      %v629 = vcombine.low %v494, %v494
      %v631 = vcombine.high %v449, %v449
      %v633 = vunpack.c.l.s4 1983009808
      %v634 = vunpack.c.0.s8 %v633
      %v635 = vlaneseq
      %v636 = vshrl.u32 %v635, 7
      %v637 = vsub.s32 %v634, %v636
      %v638 = vrot.slane %v361, %v637
      %639 = vrot.lane.b32.xlu0 %v381, 127
      %v640 = vpop.permute.xlu0 %639
      %641 = vrot.lane.b32.xlu0 %v383, 127
      %v642 = vpop.permute.xlu0 %641
      %643 = vrot.lane.b32.xlu0 %v398, 127
      %v644 = vpop.permute.xlu0 %643
      %645 = vrot.lane.b32.xlu0 %v400, 127
      %v646 = vpop.permute.xlu0 %645
      %647 = vrot.lane.b32.xlu0 %v415, 127
      %v648 = vpop.permute.xlu0 %647
      %649 = vrot.lane.b32.xlu0 %v417, 127
      %v650 = vpop.permute.xlu0 %649
      %651 = vrot.lane.b32.xlu0 %v432, 127
      %v652 = vpop.permute.xlu0 %651
      %653 = vrot.lane.b32.xlu0 %v434, 127
      %v654 = vpop.permute.xlu0 %653
      %655 = vrot.lane.b32.xlu0 %v449, 127
      %v656 = vpop.permute.xlu0 %655
      %657 = vrot.lane.b32.xlu0 %v631, 127
      %v658 = vpop.permute.xlu0 %657
      %659 = vrot.lane.b32.xlu0 %v638, 127
      %v660 = vpop.permute.xlu0 %659
      %v661 = vsel %vm536, %v503, %v640
      %v662 = vsel %vm536, %v640, %v642
      %v663 = vsel %vm536, %v642, %v509
      %v664 = vsel %vm536, %v511, %v644
      %v665 = vsel %vm536, %v644, %v646
      %v666 = vsel %vm536, %v646, %v517
      %v667 = vsel %vm536, %v519, %v648
      %v668 = vsel %vm536, %v648, %v650
      %v669 = vsel %vm536, %v650, %v525
      %v670 = vsel %vm536, %v527, %v652
      %v671 = vsel %vm536, %v652, %v654
      %v672 = vsel %vm536, %v654, %v533
      %v673 = vsel %vm536, %v535, %v656
      %v674 = vsel %vm536, %v656, %v658
      %v675 = vsel %vm536, %v658, %v660
      %v676 = vcombine.low %v361, %v361
      %v678 = vunpack.c.l.s4 1983009808
      %v679 = vunpack.c.0.s8 %v678
      %v680 = vlaneseq
      %v681 = vshrl.u32 %v680, 7
      %v682 = vsub.s32 %v679, %v681
      %v683 = vrot.slane %v676, %v682
      %684 = vrot.lane.b32.xlu0 %v459, 126
      %v685 = vpop.permute.xlu0 %684
      %686 = vrot.lane.b32.xlu0 %v382, 126
      %v687 = vpop.permute.xlu0 %686
      %688 = vrot.lane.b32.xlu0 %v467, 126
      %v689 = vpop.permute.xlu0 %688
      %690 = vrot.lane.b32.xlu0 %v468, 126
      %v691 = vpop.permute.xlu0 %690
      %692 = vrot.lane.b32.xlu0 %v399, 126
      %v693 = vpop.permute.xlu0 %692
      %694 = vrot.lane.b32.xlu0 %v476, 126
      %v695 = vpop.permute.xlu0 %694
      %696 = vrot.lane.b32.xlu0 %v477, 126
      %v697 = vpop.permute.xlu0 %696
      %698 = vrot.lane.b32.xlu0 %v416, 126
      %v699 = vpop.permute.xlu0 %698
      %700 = vrot.lane.b32.xlu0 %v485, 126
      %v701 = vpop.permute.xlu0 %700
      %702 = vrot.lane.b32.xlu0 %v486, 126
      %v703 = vpop.permute.xlu0 %702
      %704 = vrot.lane.b32.xlu0 %v433, 126
      %v705 = vpop.permute.xlu0 %704
      %706 = vrot.lane.b32.xlu0 %v494, 126
      %v707 = vpop.permute.xlu0 %706
      %708 = vrot.lane.b32.xlu0 %v495, 126
      %v709 = vpop.permute.xlu0 %708
      %710 = vrot.lane.b32.xlu0 %v450, 126
      %v711 = vpop.permute.xlu0 %710
      %712 = vrot.lane.b32.xlu0 %v683, 126
      %v713 = vpop.permute.xlu0 %712
      %v714 = vsel %vm606, %v685, %v569
      %v715 = vsel %vm606, %v569, %v687
      %v716 = vsel %vm606, %v687, %v689
      %v717 = vsel %vm606, %v689, %v691
      %v718 = vsel %vm606, %v691, %v577
      %v719 = vsel %vm606, %v577, %v693
      %v720 = vsel %vm606, %v693, %v695
      %v721 = vsel %vm606, %v695, %v697
      %v722 = vsel %vm606, %v697, %v585
      %v723 = vsel %vm606, %v585, %v699
      %v724 = vsel %vm606, %v699, %v701
      %v725 = vsel %vm606, %v701, %v703
      %v726 = vsel %vm606, %v703, %v593
      %v727 = vsel %vm606, %v593, %v705
      %v728 = vsel %vm606, %v705, %v707
      %v729 = vsel %vm606, %v707, %v709
      %v730 = vsel %vm606, %v709, %v601
      %v731 = vsel %vm606, %v601, %v711
      %v732 = vsel %vm606, %v711, %v713
      %v733 = vcombine.low %v638, %v638
      %v734 = vcombine.low %v683, %v683
      %735 = vrot.lane.b32.xlu0 %v556, 127
      %v736 = vpop.permute.xlu0 %735
      %737 = vrot.lane.b32.xlu0 %v626, 127
      %v738 = vpop.permute.xlu0 %737
      %739 = vrot.lane.b32.xlu0 %v558, 127
      %v740 = vpop.permute.xlu0 %739
      %741 = vrot.lane.b32.xlu0 %v627, 127
      %v742 = vpop.permute.xlu0 %741
      %743 = vrot.lane.b32.xlu0 %v560, 127
      %v744 = vpop.permute.xlu0 %743
      %745 = vrot.lane.b32.xlu0 %v628, 127
      %v746 = vpop.permute.xlu0 %745
      %747 = vrot.lane.b32.xlu0 %v562, 127
      %v748 = vpop.permute.xlu0 %747
      %749 = vrot.lane.b32.xlu0 %v629, 127
      %v750 = vpop.permute.xlu0 %749
      %751 = vrot.lane.b32.xlu0 %v564, 127
      %v752 = vpop.permute.xlu0 %751
      %753 = vrot.lane.b32.xlu0 %v734, 127
      %v754 = vpop.permute.xlu0 %753
      %755 = vrot.lane.b32.xlu0 %v683, 127
      %v756 = vpop.permute.xlu0 %755
      %v757 = vsel %vm536, %v736, %v501
      %v758 = vsel %vm536, %v501, %v738
      %v759 = vsel %vm536, %v738, %v505
      %v760 = vsel %vm536, %v505, %v740
      %v761 = vsel %vm536, %v740, %v509
      %v762 = vsel %vm536, %v509, %v742
      %v763 = vsel %vm536, %v742, %v513
      %v764 = vsel %vm536, %v513, %v744
      %v765 = vsel %vm536, %v744, %v517
      %v766 = vsel %vm536, %v517, %v746
      %v767 = vsel %vm536, %v746, %v521
      %v768 = vsel %vm536, %v521, %v748
      %v769 = vsel %vm536, %v748, %v525
      %v770 = vsel %vm536, %v525, %v750
      %v771 = vsel %vm536, %v750, %v529
      %v772 = vsel %vm536, %v529, %v752
      %v773 = vsel %vm536, %v752, %v533
      %v774 = vsel %vm536, %v533, %v754
      %v775 = vsel %vm536, %v754, %v756
      %v776 = vcombine.high %v638, %v638
      %777 = vrot.lane.b32.xlu0 %v383, 126
      %v778 = vpop.permute.xlu0 %777
      %779 = vrot.lane.b32.xlu0 %v400, 126
      %v780 = vpop.permute.xlu0 %779
      %781 = vrot.lane.b32.xlu0 %v417, 126
      %v782 = vpop.permute.xlu0 %781
      %783 = vrot.lane.b32.xlu0 %v434, 126
      %v784 = vpop.permute.xlu0 %783
      %785 = vrot.lane.b32.xlu0 %v631, 126
      %v786 = vpop.permute.xlu0 %785
      %787 = vrot.lane.b32.xlu0 %v638, 126
      %v788 = vpop.permute.xlu0 %787
      %789 = vrot.lane.b32.xlu0 %v776, 126
      %v790 = vpop.permute.xlu0 %789
      %v791 = vsel %vm606, %v573, %v778
      %v792 = vsel %vm606, %v778, %v577
      %v793 = vsel %vm606, %v693, %v581
      %v794 = vsel %vm606, %v581, %v780
      %v795 = vsel %vm606, %v780, %v585
      %v796 = vsel %vm606, %v699, %v589
      %v797 = vsel %vm606, %v589, %v782
      %v798 = vsel %vm606, %v782, %v593
      %v799 = vsel %vm606, %v705, %v597
      %v800 = vsel %vm606, %v597, %v784
      %v801 = vsel %vm606, %v784, %v601
      %v802 = vsel %vm606, %v711, %v605
      %v803 = vsel %vm606, %v605, %v786
      %v804 = vsel %vm606, %v786, %v788
      %v805 = vsel %vm606, %v788, %v790
      %vm806 = vcmask 1041408
      %v809 = vsel %vm806, %v374, %v537
      %v812 = vsel %vm806, %v382, %v538
      %v815 = vsel %vm806, %v381, %v539
      %v818 = vsel %vm806, %v383, %v540
      %v821 = vsel %vm806, %v391, %v541
      %v824 = vsel %vm806, %v399, %v542
      %v827 = vsel %vm806, %v398, %v543
      %v830 = vsel %vm806, %v400, %v544
      %v833 = vsel %vm806, %v408, %v545
      %v836 = vsel %vm806, %v416, %v546
      %v839 = vsel %vm806, %v415, %v547
      %v842 = vsel %vm806, %v417, %v548
      %v845 = vsel %vm806, %v425, %v549
      %v848 = vsel %vm806, %v433, %v550
      %v851 = vsel %vm806, %v432, %v551
      %v854 = vsel %vm806, %v434, %v552
      %v857 = vsel %vm806, %v442, %v553
      %v860 = vsel %vm806, %v450, %v554
      %v863 = vsel %vm806, %v449, %v555
      %vm864 = vcmask 1043456
      %v866 = vsel %vm864, %v809, %v607
      %v868 = vsel %vm864, %v812, %v608
      %v870 = vsel %vm864, %v815, %v609
      %v872 = vsel %vm864, %v818, %v610
      %v874 = vsel %vm864, %v821, %v611
      %v876 = vsel %vm864, %v824, %v612
      %v878 = vsel %vm864, %v827, %v613
      %v880 = vsel %vm864, %v830, %v614
      %v882 = vsel %vm864, %v833, %v615
      %v884 = vsel %vm864, %v836, %v616
      %v886 = vsel %vm864, %v839, %v617
      %v888 = vsel %vm864, %v842, %v618
      %v890 = vsel %vm864, %v845, %v619
      %v892 = vsel %vm864, %v848, %v620
      %v894 = vsel %vm864, %v851, %v621
      %v896 = vsel %vm864, %v854, %v622
      %v898 = vsel %vm864, %v857, %v623
      %v900 = vsel %vm864, %v860, %v624
      %v902 = vsel %vm864, %v863, %v625
      %vm903 = vcmask 1045504
      %v905 = vsel %vm903, %v866, %v458
      %v908 = vsel %vm903, %v868, %v556
      %v910 = vsel %vm903, %v870, %v374
      %v913 = vsel %vm903, %v872, %v626
      %v916 = vsel %vm903, %v874, %v467
      %v919 = vsel %vm903, %v876, %v558
      %v921 = vsel %vm903, %v878, %v391
      %v924 = vsel %vm903, %v880, %v627
      %v927 = vsel %vm903, %v882, %v476
      %v930 = vsel %vm903, %v884, %v560
      %v932 = vsel %vm903, %v886, %v408
      %v935 = vsel %vm903, %v888, %v628
      %v938 = vsel %vm903, %v890, %v485
      %v941 = vsel %vm903, %v892, %v562
      %v943 = vsel %vm903, %v894, %v425
      %v946 = vsel %vm903, %v896, %v629
      %v949 = vsel %vm903, %v898, %v494
      %v952 = vsel %vm903, %v900, %v564
      %v954 = vsel %vm903, %v902, %v442
      %v958 = vsel %vm806, %v661, %v714
      %v961 = vsel %vm806, %v662, %v715
      %v964 = vsel %vm806, %v663, %v716
      %v966 = vsel %vm806, %v543, %v717
      %v969 = vsel %vm806, %v664, %v718
      %v972 = vsel %vm806, %v665, %v719
      %v975 = vsel %vm806, %v666, %v720
      %v977 = vsel %vm806, %v547, %v721
      %v980 = vsel %vm806, %v667, %v722
      %v983 = vsel %vm806, %v668, %v723
      %v986 = vsel %vm806, %v669, %v724
      %v988 = vsel %vm806, %v551, %v725
      %v991 = vsel %vm806, %v670, %v726
      %v994 = vsel %vm806, %v671, %v727
      %v997 = vsel %vm806, %v672, %v728
      %v999 = vsel %vm806, %v555, %v729
      %v1002 = vsel %vm806, %v673, %v730
      %v1005 = vsel %vm806, %v674, %v731
      %v1008 = vsel %vm806, %v675, %v732
      %v1010 = vsel %vm864, %v958, %v557
      %v1011 = vsel %vm864, %v961, %v381
      %v1012 = vsel %vm864, %v964, %v558
      %v1013 = vsel %vm864, %v966, %v391
      %v1015 = vsel %vm864, %v969, %v559
      %v1016 = vsel %vm864, %v972, %v398
      %v1017 = vsel %vm864, %v975, %v560
      %v1018 = vsel %vm864, %v977, %v408
      %v1020 = vsel %vm864, %v980, %v561
      %v1021 = vsel %vm864, %v983, %v415
      %v1022 = vsel %vm864, %v986, %v562
      %v1023 = vsel %vm864, %v988, %v425
      %v1025 = vsel %vm864, %v991, %v563
      %v1026 = vsel %vm864, %v994, %v432
      %v1027 = vsel %vm864, %v997, %v564
      %v1028 = vsel %vm864, %v999, %v442
      %v1030 = vsel %vm864, %v1002, %v565
      %v1031 = vsel %vm864, %v1005, %v449
      %v1033 = vsel %vm864, %v1008, %v733
      %v1035 = vsel %vm903, %v1010, %v757
      %v1038 = vsel %vm903, %v1011, %v758
      %v1041 = vsel %vm903, %v1012, %v759
      %v1044 = vsel %vm903, %v1013, %v760
      %v1047 = vsel %vm903, %v1015, %v761
      %v1050 = vsel %vm903, %v1016, %v762
      %v1053 = vsel %vm903, %v1017, %v763
      %v1056 = vsel %vm903, %v1018, %v764
      %v1059 = vsel %vm903, %v1020, %v765
      %v1062 = vsel %vm903, %v1021, %v766
      %v1065 = vsel %vm903, %v1022, %v767
      %v1068 = vsel %vm903, %v1023, %v768
      %v1071 = vsel %vm903, %v1025, %v769
      %v1074 = vsel %vm903, %v1026, %v770
      %v1077 = vsel %vm903, %v1027, %v771
      %v1080 = vsel %vm903, %v1028, %v772
      %v1083 = vsel %vm903, %v1030, %v773
      %v1086 = vsel %vm903, %v1031, %v774
      %v1089 = vsel %vm903, %v1033, %v775
      %v1091 = vld [vmem:[%s2] sm:$0xf]
      %v1092 = vld [vmem:[%s3] sm:$0xff]
      %1094 = vset.pattern.permute.xlu0 0
      %1095 = vperm.xlu0 %1094, %v1092
      %v1096 = vpop.permute.xlu0 %1095
      %vm1098 = vcmask 293888
      %v1100 = vsel %vm1098, %v1091, 0
      %v1103 = vsel %vm806, %v791, 0
      %v1106 = vsel %vm806, %v792, 0
      %v1108 = vsel %vm806, %v719, 0
      %v1111 = vsel %vm806, %v793, 0
      %v1114 = vsel %vm806, %v794, 0
      %v1117 = vsel %vm806, %v795, 0
      %v1119 = vsel %vm806, %v723, 0
      %v1122 = vsel %vm806, %v796, 0
      %v1125 = vsel %vm806, %v797, 0
      %v1128 = vsel %vm806, %v798, 0
      %v1130 = vsel %vm806, %v727, 0
      %v1133 = vsel %vm806, %v799, 0
      %v1136 = vsel %vm806, %v800, 0
      %v1139 = vsel %vm806, %v801, 0
      %v1141 = vsel %vm806, %v731, 0
      %v1144 = vsel %vm806, %v802, 0
      %v1147 = vsel %vm806, %v803, 0
      %v1150 = vsel %vm806, %v804, 0
      %v1153 = vsel %vm806, %v805, 0
      %1155 = vmatprep.subr.bf16.mxu0 %v908
      %1156 = vmatpush1.bf16.msra.mxu0 %v905
      %1157 = vmatprep.subr.bf16.mxu0 %v1038
      %1158 = vmatpush1.bf16.msra.mxu0 %v1035
      %1159 = vmatprep.subr.bf16.mxu0 %v1106
      %1160 = vmatpush1.bf16.msra.mxu0 %v1103
      %1161 = vmatprep.subr.bf16.mxu0 0
      %1162 = vmatpush1.bf16.msra.mxu0 0
      %1163 = vmatprep.subr.bf16.mxu0 0
      %1164 = vmatpush1.bf16.msra.mxu0 0
      %1165 = vmatprep.subr.bf16.mxu0 0
      %1166 = vmatpush1.bf16.msra.mxu0 0
      %1167 = vmatprep.subr.bf16.mxu0 0
      %1168 = vmatpush1.bf16.msra.mxu0 0
      %1169 = vmatprep.subr.bf16.mxu0 0
      %1170 = vmatpush1.bf16.msra.mxu0 0
      %1171 = vmatprep.subr.bf16.mxu0 0
      %1172 = vmatpush1.bf16.msra.mxu0 0
      %1173 = vmatprep.subr.bf16.mxu0 0
      %1174 = vmatpush1.bf16.msra.mxu0 0
      %1175 = vmatprep.subr.bf16.mxu0 0
      %1176 = vmatpush1.bf16.msra.mxu0 0
      %1177 = vmatprep.subr.bf16.mxu0 0
      %1178 = vmatpush1.bf16.msra.mxu0 0
      %1179 = vmatprep.subr.bf16.mxu0 0
      %1180 = vmatpush1.bf16.msra.mxu0 0
      %1181 = vmatprep.subr.bf16.mxu0 0
      %1182 = vmatpush1.bf16.msra.mxu0 0
      %1183 = vmatprep.subr.bf16.mxu0 0
      %1184 = vmatpush1.bf16.msra.mxu0 0
      %1185 = vmatprep.subr.bf16.mxu0 0
      %1186 = vmatpush1.bf16.msra.mxu0 0
      %1187 = vmatprep.mubr.bf16.mxu0 0
      %1188 = vmatmul.mubr.bf16.gmra.mrb[0].mxu0 %v1100
      %v1189 = vpop.f32.mrb[0].mxu0
      %v1190 = vadd.f32 %v1096, %v1189
      %v1191 = vpop.f32.mrb[0].mxu0
      %v1192 = vadd.f32 %v1096, %v1191
      %v1193 = vpop.f32.mrb[0].mxu0
      %v1194 = vpop.f32.mrb[0].mxu0
      %1195 = vdwg.mxu0
      %1196 = vmatprep.subr.bf16.mxu0 %v913
      %1197 = vmatpush1.bf16.msra.mxu0 %v910
      %1198 = vmatprep.subr.bf16.mxu0 %v1044
      %1199 = vmatpush1.bf16.msra.mxu0 %v1041
      %1200 = vmatprep.subr.bf16.mxu0 %v1111
      %1201 = vmatpush1.bf16.msra.mxu0 %v1108
      %1202 = vmatprep.subr.bf16.mxu0 0
      %1203 = vmatpush1.bf16.msra.mxu0 0
      %1204 = vmatprep.subr.bf16.mxu0 0
      %1205 = vmatpush1.bf16.msra.mxu0 0
      %1206 = vmatprep.subr.bf16.mxu0 0
      %1207 = vmatpush1.bf16.msra.mxu0 0
      %1208 = vmatprep.subr.bf16.mxu0 0
      %1209 = vmatpush1.bf16.msra.mxu0 0
      %1210 = vmatprep.subr.bf16.mxu0 0
      %1211 = vmatpush1.bf16.msra.mxu0 0
      %1212 = vmatprep.subr.bf16.mxu0 0
      %1213 = vmatpush1.bf16.msra.mxu0 0
      %1214 = vmatprep.subr.bf16.mxu0 0
      %1215 = vmatpush1.bf16.msra.mxu0 0
      %1216 = vmatprep.subr.bf16.mxu0 0
      %1217 = vmatpush1.bf16.msra.mxu0 0
      %1218 = vmatprep.subr.bf16.mxu0 0
      %1219 = vmatpush1.bf16.msra.mxu0 0
      %1220 = vmatprep.subr.bf16.mxu0 0
      %1221 = vmatpush1.bf16.msra.mxu0 0
      %1222 = vmatprep.subr.bf16.mxu0 0
      %1223 = vmatpush1.bf16.msra.mxu0 0
      %1224 = vmatprep.subr.bf16.mxu0 0
      %1225 = vmatpush1.bf16.msra.mxu0 0
      %1226 = vmatprep.subr.bf16.mxu0 0
      %1227 = vmatpush1.bf16.msra.mxu0 0
      %1228 = vmatprep.mubr.bf16.mxu0 0
      %1229 = vmatmul.mubr.bf16.gmra.mrb[0].mxu0 %v1100
      %v1230 = vpop.f32.mrb[0].mxu0
      %v1231 = vadd.f32 %v1096, %v1230
      %v1232 = vpop.f32.mrb[0].mxu0
      %v1233 = vadd.f32 %v1096, %v1232
      %v1234 = vpop.f32.mrb[0].mxu0
      %v1235 = vpop.f32.mrb[0].mxu0
      %1236 = vdwg.mxu0
      %1237 = vmatprep.subr.bf16.mxu0 %v919
      %1238 = vmatpush1.bf16.msra.mxu0 %v916
      %1239 = vmatprep.subr.bf16.mxu0 %v1050
      %1240 = vmatpush1.bf16.msra.mxu0 %v1047
      %1241 = vmatprep.subr.bf16.mxu0 %v1117
      %1242 = vmatpush1.bf16.msra.mxu0 %v1114
      %1243 = vmatprep.subr.bf16.mxu0 0
      %1244 = vmatpush1.bf16.msra.mxu0 0
      %1245 = vmatprep.subr.bf16.mxu0 0
      %1246 = vmatpush1.bf16.msra.mxu0 0
      %1247 = vmatprep.subr.bf16.mxu0 0
      %1248 = vmatpush1.bf16.msra.mxu0 0
      %1249 = vmatprep.subr.bf16.mxu0 0
      %1250 = vmatpush1.bf16.msra.mxu0 0
      %1251 = vmatprep.subr.bf16.mxu0 0
      %1252 = vmatpush1.bf16.msra.mxu0 0
      %1253 = vmatprep.subr.bf16.mxu0 0
      %1254 = vmatpush1.bf16.msra.mxu0 0
      %1255 = vmatprep.subr.bf16.mxu0 0
      %1256 = vmatpush1.bf16.msra.mxu0 0
      %1257 = vmatprep.subr.bf16.mxu0 0
      %1258 = vmatpush1.bf16.msra.mxu0 0
      %1259 = vmatprep.subr.bf16.mxu0 0
      %1260 = vmatpush1.bf16.msra.mxu0 0
      %1261 = vmatprep.subr.bf16.mxu0 0
      %1262 = vmatpush1.bf16.msra.mxu0 0
      %1263 = vmatprep.subr.bf16.mxu0 0
      %1264 = vmatpush1.bf16.msra.mxu0 0
      %1265 = vmatprep.subr.bf16.mxu0 0
      %1266 = vmatpush1.bf16.msra.mxu0 0
      %1267 = vmatprep.subr.bf16.mxu0 0
      %1268 = vmatpush1.bf16.msra.mxu0 0
      %1269 = vmatprep.mubr.bf16.mxu0 0
      %1270 = vmatmul.mubr.bf16.gmra.mrb[0].mxu0 %v1100
      %v1271 = vpop.f32.mrb[0].mxu0
      %v1272 = vadd.f32 %v1096, %v1271
      %v1273 = vpop.f32.mrb[0].mxu0
      %v1274 = vadd.f32 %v1096, %v1273
      %v1275 = vpop.f32.mrb[0].mxu0
      %v1276 = vpop.f32.mrb[0].mxu0
      %1277 = vdwg.mxu0
      %1278 = vmatprep.subr.bf16.mxu0 %v924
      %1279 = vmatpush1.bf16.msra.mxu0 %v921
      %1280 = vmatprep.subr.bf16.mxu0 %v1056
      %1281 = vmatpush1.bf16.msra.mxu0 %v1053
      %1282 = vmatprep.subr.bf16.mxu0 %v1122
      %1283 = vmatpush1.bf16.msra.mxu0 %v1119
      %1284 = vmatprep.subr.bf16.mxu0 0
      %1285 = vmatpush1.bf16.msra.mxu0 0
      %1286 = vmatprep.subr.bf16.mxu0 0
      %1287 = vmatpush1.bf16.msra.mxu0 0
      %1288 = vmatprep.subr.bf16.mxu0 0
      %1289 = vmatpush1.bf16.msra.mxu0 0
      %1290 = vmatprep.subr.bf16.mxu0 0
      %1291 = vmatpush1.bf16.msra.mxu0 0
      %1292 = vmatprep.subr.bf16.mxu0 0
      %1293 = vmatpush1.bf16.msra.mxu0 0
      %1294 = vmatprep.subr.bf16.mxu0 0
      %1295 = vmatpush1.bf16.msra.mxu0 0
      %1296 = vmatprep.subr.bf16.mxu0 0
      %1297 = vmatpush1.bf16.msra.mxu0 0
      %1298 = vmatprep.subr.bf16.mxu0 0
      %1299 = vmatpush1.bf16.msra.mxu0 0
      %1300 = vmatprep.subr.bf16.mxu0 0
      %1301 = vmatpush1.bf16.msra.mxu0 0
      %1302 = vmatprep.subr.bf16.mxu0 0
      %1303 = vmatpush1.bf16.msra.mxu0 0
      %1304 = vmatprep.subr.bf16.mxu0 0
      %1305 = vmatpush1.bf16.msra.mxu0 0
      %1306 = vmatprep.subr.bf16.mxu0 0
      %1307 = vmatpush1.bf16.msra.mxu0 0
      %1308 = vmatprep.subr.bf16.mxu0 0
      %1309 = vmatpush1.bf16.msra.mxu0 0
      %1310 = vmatprep.mubr.bf16.mxu0 0
      %1311 = vmatmul.mubr.bf16.gmra.mrb[0].mxu0 %v1100
      %v1312 = vpop.f32.mrb[0].mxu0
      %v1313 = vadd.f32 %v1096, %v1312
      %v1314 = vpop.f32.mrb[0].mxu0
      %v1315 = vadd.f32 %v1096, %v1314
      %v1316 = vpop.f32.mrb[0].mxu0
      %v1317 = vpop.f32.mrb[0].mxu0
      %1318 = vdwg.mxu0
      %1319 = vmatprep.subr.bf16.mxu0 %v930
      %1320 = vmatpush1.bf16.msra.mxu0 %v927
      %1321 = vmatprep.subr.bf16.mxu0 %v1062
      %1322 = vmatpush1.bf16.msra.mxu0 %v1059
      %1323 = vmatprep.subr.bf16.mxu0 %v1128
      %1324 = vmatpush1.bf16.msra.mxu0 %v1125
      %1325 = vmatprep.subr.bf16.mxu0 0
      %1326 = vmatpush1.bf16.msra.mxu0 0
      %1327 = vmatprep.subr.bf16.mxu0 0
      %1328 = vmatpush1.bf16.msra.mxu0 0
      %1329 = vmatprep.subr.bf16.mxu0 0
      %1330 = vmatpush1.bf16.msra.mxu0 0
      %1331 = vmatprep.subr.bf16.mxu0 0
      %1332 = vmatpush1.bf16.msra.mxu0 0
      %1333 = vmatprep.subr.bf16.mxu0 0
      %1334 = vmatpush1.bf16.msra.mxu0 0
      %1335 = vmatprep.subr.bf16.mxu0 0
      %1336 = vmatpush1.bf16.msra.mxu0 0
      %1337 = vmatprep.subr.bf16.mxu0 0
      %1338 = vmatpush1.bf16.msra.mxu0 0
      %1339 = vmatprep.subr.bf16.mxu0 0
      %1340 = vmatpush1.bf16.msra.mxu0 0
      %1341 = vmatprep.subr.bf16.mxu0 0
      %1342 = vmatpush1.bf16.msra.mxu0 0
      %1343 = vmatprep.subr.bf16.mxu0 0
      %1344 = vmatpush1.bf16.msra.mxu0 0
      %1345 = vmatprep.subr.bf16.mxu0 0
      %1346 = vmatpush1.bf16.msra.mxu0 0
      %1347 = vmatprep.subr.bf16.mxu0 0
      %1348 = vmatpush1.bf16.msra.mxu0 0
      %1349 = vmatprep.subr.bf16.mxu0 0
      %1350 = vmatpush1.bf16.msra.mxu0 0
      %1351 = vmatprep.mubr.bf16.mxu0 0
      %1352 = vmatmul.mubr.bf16.gmra.mrb[0].mxu0 %v1100
      %v1353 = vpop.f32.mrb[0].mxu0
      %v1354 = vadd.f32 %v1096, %v1353
      %v1355 = vpop.f32.mrb[0].mxu0
      %v1356 = vadd.f32 %v1096, %v1355
      %v1357 = vpop.f32.mrb[0].mxu0
      %v1358 = vpop.f32.mrb[0].mxu0
      %1359 = vdwg.mxu0
      %1360 = vmatprep.subr.bf16.mxu0 %v935
      %1361 = vmatpush1.bf16.msra.mxu0 %v932
      %1362 = vmatprep.subr.bf16.mxu0 %v1068
      %1363 = vmatpush1.bf16.msra.mxu0 %v1065
      %1364 = vmatprep.subr.bf16.mxu0 %v1133
      %1365 = vmatpush1.bf16.msra.mxu0 %v1130
      %1366 = vmatprep.subr.bf16.mxu0 0
      %1367 = vmatpush1.bf16.msra.mxu0 0
      %1368 = vmatprep.subr.bf16.mxu0 0
      %1369 = vmatpush1.bf16.msra.mxu0 0
      %1370 = vmatprep.subr.bf16.mxu0 0
      %1371 = vmatpush1.bf16.msra.mxu0 0
      %1372 = vmatprep.subr.bf16.mxu0 0
      %1373 = vmatpush1.bf16.msra.mxu0 0
      %1374 = vmatprep.subr.bf16.mxu0 0
      %1375 = vmatpush1.bf16.msra.mxu0 0
      %1376 = vmatprep.subr.bf16.mxu0 0
      %1377 = vmatpush1.bf16.msra.mxu0 0
      %1378 = vmatprep.subr.bf16.mxu0 0
      %1379 = vmatpush1.bf16.msra.mxu0 0
      %1380 = vmatprep.subr.bf16.mxu0 0
      %1381 = vmatpush1.bf16.msra.mxu0 0
      %1382 = vmatprep.subr.bf16.mxu0 0
      %1383 = vmatpush1.bf16.msra.mxu0 0
      %1384 = vmatprep.subr.bf16.mxu0 0
      %1385 = vmatpush1.bf16.msra.mxu0 0
      %1386 = vmatprep.subr.bf16.mxu0 0
      %1387 = vmatpush1.bf16.msra.mxu0 0
      %1388 = vmatprep.subr.bf16.mxu0 0
      %1389 = vmatpush1.bf16.msra.mxu0 0
      %1390 = vmatprep.subr.bf16.mxu0 0
      %1391 = vmatpush1.bf16.msra.mxu0 0
      %1392 = vmatprep.mubr.bf16.mxu0 0
      %1393 = vmatmul.mubr.bf16.gmra.mrb[0].mxu0 %v1100
      %v1394 = vpop.f32.mrb[0].mxu0
      %v1395 = vadd.f32 %v1096, %v1394
      %v1396 = vpop.f32.mrb[0].mxu0
      %v1397 = vadd.f32 %v1096, %v1396
      %v1398 = vpop.f32.mrb[0].mxu0
      %v1399 = vpop.f32.mrb[0].mxu0
      %1400 = vdwg.mxu0
      %1401 = vmatprep.subr.bf16.mxu0 %v941
      %1402 = vmatpush1.bf16.msra.mxu0 %v938
      %1403 = vmatprep.subr.bf16.mxu0 %v1074
      %1404 = vmatpush1.bf16.msra.mxu0 %v1071
      %1405 = vmatprep.subr.bf16.mxu0 %v1139
      %1406 = vmatpush1.bf16.msra.mxu0 %v1136
      %1407 = vmatprep.subr.bf16.mxu0 0
      %1408 = vmatpush1.bf16.msra.mxu0 0
      %1409 = vmatprep.subr.bf16.mxu0 0
      %1410 = vmatpush1.bf16.msra.mxu0 0
      %1411 = vmatprep.subr.bf16.mxu0 0
      %1412 = vmatpush1.bf16.msra.mxu0 0
      %1413 = vmatprep.subr.bf16.mxu0 0
      %1414 = vmatpush1.bf16.msra.mxu0 0
      %1415 = vmatprep.subr.bf16.mxu0 0
      %1416 = vmatpush1.bf16.msra.mxu0 0
      %1417 = vmatprep.subr.bf16.mxu0 0
      %1418 = vmatpush1.bf16.msra.mxu0 0
      %1419 = vmatprep.subr.bf16.mxu0 0
      %1420 = vmatpush1.bf16.msra.mxu0 0
      %1421 = vmatprep.subr.bf16.mxu0 0
      %1422 = vmatpush1.bf16.msra.mxu0 0
      %1423 = vmatprep.subr.bf16.mxu0 0
      %1424 = vmatpush1.bf16.msra.mxu0 0
      %1425 = vmatprep.subr.bf16.mxu0 0
      %1426 = vmatpush1.bf16.msra.mxu0 0
      %1427 = vmatprep.subr.bf16.mxu0 0
      %1428 = vmatpush1.bf16.msra.mxu0 0
      %1429 = vmatprep.subr.bf16.mxu0 0
      %1430 = vmatpush1.bf16.msra.mxu0 0
      %1431 = vmatprep.subr.bf16.mxu0 0
      %1432 = vmatpush1.bf16.msra.mxu0 0
      %1433 = vmatprep.mubr.bf16.mxu0 0
      %1434 = vmatmul.mubr.bf16.gmra.mrb[0].mxu0 %v1100
      %v1435 = vpop.f32.mrb[0].mxu0
      %v1436 = vadd.f32 %v1096, %v1435
      %v1437 = vpop.f32.mrb[0].mxu0
      %v1438 = vadd.f32 %v1096, %v1437
      %v1439 = vpop.f32.mrb[0].mxu0
      %v1440 = vpop.f32.mrb[0].mxu0
      %1441 = vdwg.mxu0
      %1442 = vmatprep.subr.bf16.mxu0 %v946
      %1443 = vmatpush1.bf16.msra.mxu0 %v943
      %1444 = vmatprep.subr.bf16.mxu0 %v1080
      %1445 = vmatpush1.bf16.msra.mxu0 %v1077
      %1446 = vmatprep.subr.bf16.mxu0 %v1144
      %1447 = vmatpush1.bf16.msra.mxu0 %v1141
      %1448 = vmatprep.subr.bf16.mxu0 0
      %1449 = vmatpush1.bf16.msra.mxu0 0
      %1450 = vmatprep.subr.bf16.mxu0 0
      %1451 = vmatpush1.bf16.msra.mxu0 0
      %1452 = vmatprep.subr.bf16.mxu0 0
      %1453 = vmatpush1.bf16.msra.mxu0 0
      %1454 = vmatprep.subr.bf16.mxu0 0
      %1455 = vmatpush1.bf16.msra.mxu0 0
      %1456 = vmatprep.subr.bf16.mxu0 0
      %1457 = vmatpush1.bf16.msra.mxu0 0
      %1458 = vmatprep.subr.bf16.mxu0 0
      %1459 = vmatpush1.bf16.msra.mxu0 0
      %1460 = vmatprep.subr.bf16.mxu0 0
      %1461 = vmatpush1.bf16.msra.mxu0 0
      %1462 = vmatprep.subr.bf16.mxu0 0
      %1463 = vmatpush1.bf16.msra.mxu0 0
      %1464 = vmatprep.subr.bf16.mxu0 0
      %1465 = vmatpush1.bf16.msra.mxu0 0
      %1466 = vmatprep.subr.bf16.mxu0 0
      %1467 = vmatpush1.bf16.msra.mxu0 0
      %1468 = vmatprep.subr.bf16.mxu0 0
      %1469 = vmatpush1.bf16.msra.mxu0 0
      %1470 = vmatprep.subr.bf16.mxu0 0
      %1471 = vmatpush1.bf16.msra.mxu0 0
      %1472 = vmatprep.subr.bf16.mxu0 0
      %1473 = vmatpush1.bf16.msra.mxu0 0
      %1474 = vmatprep.mubr.bf16.mxu0 0
      %1475 = vmatmul.mubr.bf16.gmra.mrb[0].mxu0 %v1100
      %v1476 = vpop.f32.mrb[0].mxu0
      %v1477 = vadd.f32 %v1096, %v1476
      %v1478 = vpop.f32.mrb[0].mxu0
      %v1479 = vadd.f32 %v1096, %v1478
      %v1480 = vpop.f32.mrb[0].mxu0
      %v1481 = vpop.f32.mrb[0].mxu0
      %1482 = vdwg.mxu0
      %1483 = vmatprep.subr.bf16.mxu0 %v952
      %1484 = vmatpush1.bf16.msra.mxu0 %v949
      %1485 = vmatprep.subr.bf16.mxu0 %v1086
      %1486 = vmatpush1.bf16.msra.mxu0 %v1083
      %1487 = vmatprep.subr.bf16.mxu0 %v1150
      %1488 = vmatpush1.bf16.msra.mxu0 %v1147
      %1489 = vmatprep.subr.bf16.mxu0 0
      %1490 = vmatpush1.bf16.msra.mxu0 0
      %1491 = vmatprep.subr.bf16.mxu0 0
      %1492 = vmatpush1.bf16.msra.mxu0 0
      %1493 = vmatprep.subr.bf16.mxu0 0
      %1494 = vmatpush1.bf16.msra.mxu0 0
      %1495 = vmatprep.subr.bf16.mxu0 0
      %1496 = vmatpush1.bf16.msra.mxu0 0
      %1497 = vmatprep.subr.bf16.mxu0 0
      %1498 = vmatpush1.bf16.msra.mxu0 0
      %1499 = vmatprep.subr.bf16.mxu0 0
      %1500 = vmatpush1.bf16.msra.mxu0 0
      %1501 = vmatprep.subr.bf16.mxu0 0
      %1502 = vmatpush1.bf16.msra.mxu0 0
      %1503 = vmatprep.subr.bf16.mxu0 0
      %1504 = vmatpush1.bf16.msra.mxu0 0
      %1505 = vmatprep.subr.bf16.mxu0 0
      %1506 = vmatpush1.bf16.msra.mxu0 0
      %1507 = vmatprep.subr.bf16.mxu0 0
      %1508 = vmatpush1.bf16.msra.mxu0 0
      %1509 = vmatprep.subr.bf16.mxu0 0
      %1510 = vmatpush1.bf16.msra.mxu0 0
      %1511 = vmatprep.subr.bf16.mxu0 0
      %1512 = vmatpush1.bf16.msra.mxu0 0
      %1513 = vmatprep.subr.bf16.mxu0 0
      %1514 = vmatpush1.bf16.msra.mxu0 0
      %1515 = vmatprep.mubr.bf16.mxu0 0
      %1516 = vmatmul.mubr.bf16.gmra.mrb[0].mxu0 %v1100
      %v1517 = vpop.f32.mrb[0].mxu0
      %v1518 = vadd.f32 %v1096, %v1517
      %v1519 = vpop.f32.mrb[0].mxu0
      %v1520 = vadd.f32 %v1096, %v1519
      %v1521 = vpop.f32.mrb[0].mxu0
      %v1522 = vpop.f32.mrb[0].mxu0
      %1523 = vdwg.mxu0
      %1524 = vmatprep.subr.bf16.mxu0 0
      %1525 = vmatpush1.bf16.msra.mxu0 %v954
      %1526 = vmatprep.subr.bf16.mxu0 0
      %1527 = vmatpush1.bf16.msra.mxu0 %v1089
      %1528 = vmatprep.subr.bf16.mxu0 0
      %1529 = vmatpush1.bf16.msra.mxu0 %v1153
      %1530 = vmatprep.subr.bf16.mxu0 0
      %1531 = vmatpush1.bf16.msra.mxu0 0
      %1532 = vmatprep.subr.bf16.mxu0 0
      %1533 = vmatpush1.bf16.msra.mxu0 0
      %1534 = vmatprep.subr.bf16.mxu0 0
      %1535 = vmatpush1.bf16.msra.mxu0 0
      %1536 = vmatprep.subr.bf16.mxu0 0
      %1537 = vmatpush1.bf16.msra.mxu0 0
      %1538 = vmatprep.subr.bf16.mxu0 0
      %1539 = vmatpush1.bf16.msra.mxu0 0
      %1540 = vmatprep.subr.bf16.mxu0 0
      %1541 = vmatpush1.bf16.msra.mxu0 0
      %1542 = vmatprep.subr.bf16.mxu0 0
      %1543 = vmatpush1.bf16.msra.mxu0 0
      %1544 = vmatprep.subr.bf16.mxu0 0
      %1545 = vmatpush1.bf16.msra.mxu0 0
      %1546 = vmatprep.subr.bf16.mxu0 0
      %1547 = vmatpush1.bf16.msra.mxu0 0
      %1548 = vmatprep.subr.bf16.mxu0 0
      %1549 = vmatpush1.bf16.msra.mxu0 0
      %1550 = vmatprep.subr.bf16.mxu0 0
      %1551 = vmatpush1.bf16.msra.mxu0 0
      %1552 = vmatprep.subr.bf16.mxu0 0
      %1553 = vmatpush1.bf16.msra.mxu0 0
      %1554 = vmatprep.subr.bf16.mxu0 0
      %1555 = vmatpush1.bf16.msra.mxu0 0
      %1556 = vmatprep.mubr.bf16.mxu0 0
      %1557 = vmatmul.mubr.bf16.gmra.mrb[0].mxu0 %v1100
      %v1558 = vpop.f32.mrb[0].mxu0
      %v1559 = vadd.f32 %v1096, %v1558
      %v1560 = vpop.f32.mrb[0].mxu0
      %v1561 = vpop.f32.mrb[0].mxu0
      %v1562 = vpop.f32.mrb[0].mxu0
      %1563 = vdwg.mxu0
      %v1564 = vmax.f32 %v1190, 0.0
      %v1565 = vmax.f32 %v1192, 0.0
      %v1566 = vmax.f32 %v1231, 0.0
      %v1567 = vmax.f32 %v1233, 0.0
      %v1568 = vmax.f32 %v1272, 0.0
      %v1569 = vmax.f32 %v1274, 0.0
      %v1570 = vmax.f32 %v1313, 0.0
      %v1571 = vmax.f32 %v1315, 0.0
      %v1572 = vmax.f32 %v1354, 0.0
      %v1573 = vmax.f32 %v1356, 0.0
      %v1574 = vmax.f32 %v1395, 0.0
      %v1575 = vmax.f32 %v1397, 0.0
      %v1576 = vmax.f32 %v1436, 0.0
      %v1577 = vmax.f32 %v1438, 0.0
      %v1578 = vmax.f32 %v1477, 0.0
      %v1579 = vmax.f32 %v1479, 0.0
      %v1580 = vmax.f32 %v1518, 0.0
      %v1581 = vmax.f32 %v1520, 0.0
      %v1582 = vmax.f32 %v1559, 0.0
      %v1583 = vpack.c.bf16 %v1564, %v1564
      %v1584 = vpack.c.bf16 %v1565, %v1565
      %v1585 = vpack.c.bf16 %v1566, %v1566
      %v1586 = vpack.c.bf16 %v1567, %v1567
      %v1587 = vpack.c.bf16 %v1568, %v1568
      %v1588 = vpack.c.bf16 %v1569, %v1569
      %v1589 = vpack.c.bf16 %v1570, %v1570
      %v1590 = vpack.c.bf16 %v1571, %v1571
      %v1591 = vpack.c.bf16 %v1572, %v1572
      %v1592 = vpack.c.bf16 %v1573, %v1573
      %v1593 = vpack.c.bf16 %v1574, %v1574
      %v1594 = vpack.c.bf16 %v1575, %v1575
      %v1595 = vpack.c.bf16 %v1576, %v1576
      %v1596 = vpack.c.bf16 %v1577, %v1577
      %v1597 = vpack.c.bf16 %v1578, %v1578
      %v1598 = vpack.c.bf16 %v1579, %v1579
      %v1599 = vpack.c.bf16 %v1580, %v1580
      %v1600 = vpack.c.bf16 %v1581, %v1581
      %v1601 = vpack.c.bf16 %v1582, %v1582
      %v1602 = vld [vmem:[%s4] sm:$0xf]
      %v1603 = vld [vmem:[%s4 + $0x4] sm:$0xf]
      %v1604 = vld [vmem:[%s5] sm:$0xff]
      %v1605 = vld [vmem:[%s5 + $0x8] sm:$0xff]
      %1607 = vset.pattern.permute.xlu0 0
      %1608 = vperm.xlu0 %1607, %v1604
      %v1609 = vpop.permute.xlu0 %1608
      %1612 = vset.pattern.permute.xlu0 0
      %1613 = vperm.xlu0 %1612, %v1605
      %v1614 = vpop.permute.xlu0 %1613
      %v1618 = vunpack.c.l.b16 %v1602
      %v1619 = vunpack.c.l.b16 %v1603
      %v1620 = vpack.c.b16 %v1619, %v1618
      %vm1621 = vcmask 64512
      %v1623 = vsel %vm1621, %v1620, 0
      %v1626 = vsel %vm864, %v1583, 0
      %v1629 = vsel %vm864, %v1584, 0
      %v1632 = vsel %vm864, %v1585, 0
      %v1635 = vsel %vm864, %v1586, 0
      %v1638 = vsel %vm864, %v1587, 0
      %v1641 = vsel %vm864, %v1588, 0
      %v1644 = vsel %vm864, %v1589, 0
      %v1647 = vsel %vm864, %v1590, 0
      %v1650 = vsel %vm864, %v1591, 0
      %v1653 = vsel %vm864, %v1592, 0
      %v1656 = vsel %vm864, %v1593, 0
      %v1659 = vsel %vm864, %v1594, 0
      %v1662 = vsel %vm864, %v1595, 0
      %v1665 = vsel %vm864, %v1596, 0
      %v1668 = vsel %vm864, %v1597, 0
      %v1671 = vsel %vm864, %v1598, 0
      %v1674 = vsel %vm864, %v1599, 0
      %v1677 = vsel %vm864, %v1600, 0
      %v1680 = vsel %vm864, %v1601, 0
      %1682 = vmatprep.subr.bf16.mxu0 %v1629
      %1683 = vmatpush1.bf16.msra.mxu0 %v1626
      %1684 = vmatprep.subr.bf16.mxu0 0
      %1685 = vmatpush1.bf16.msra.mxu0 0
      %1686 = vmatprep.subr.bf16.mxu0 0
      %1687 = vmatpush1.bf16.msra.mxu0 0
      %1688 = vmatprep.subr.bf16.mxu0 0
      %1689 = vmatpush1.bf16.msra.mxu0 0
      %1690 = vmatprep.subr.bf16.mxu0 0
      %1691 = vmatpush1.bf16.msra.mxu0 0
      %1692 = vmatprep.subr.bf16.mxu0 0
      %1693 = vmatpush1.bf16.msra.mxu0 0
      %1694 = vmatprep.subr.bf16.mxu0 0
      %1695 = vmatpush1.bf16.msra.mxu0 0
      %1696 = vmatprep.subr.bf16.mxu0 0
      %1697 = vmatpush1.bf16.msra.mxu0 0
      %1698 = vmatprep.subr.bf16.mxu0 0
      %1699 = vmatpush1.bf16.msra.mxu0 0
      %1700 = vmatprep.subr.bf16.mxu0 0
      %1701 = vmatpush1.bf16.msra.mxu0 0
      %1702 = vmatprep.subr.bf16.mxu0 0
      %1703 = vmatpush1.bf16.msra.mxu0 0
      %1704 = vmatprep.subr.bf16.mxu0 0
      %1705 = vmatpush1.bf16.msra.mxu0 0
      %1706 = vmatprep.subr.bf16.mxu0 0
      %1707 = vmatpush1.bf16.msra.mxu0 0
      %1708 = vmatprep.subr.bf16.mxu0 0
      %1709 = vmatpush1.bf16.msra.mxu0 0
      %1710 = vmatprep.subr.bf16.mxu0 0
      %1711 = vmatpush1.bf16.msra.mxu0 0
      %1712 = vmatprep.subr.bf16.mxu0 0
      %1713 = vmatpush1.bf16.msra.mxu0 0
      %1714 = vmatprep.mubr.bf16.mxu0 0
      %1715 = vmatmul.mubr.bf16.gmra.mrb[0].mxu0 %v1623
      %v1716 = vpop.f32.mrb[0].mxu0
      %v1717 = vadd.f32 %v1609, %v1716
      %v1718 = vpop.f32.mrb[0].mxu0
      %v1719 = vadd.f32 %v1609, %v1718
      %v1720 = vpop.f32.mrb[0].mxu0
      %v1721 = vadd.f32 %v1614, %v1720
      %v1722 = vpop.f32.mrb[0].mxu0
      %v1723 = vadd.f32 %v1614, %v1722
      %1724 = vdwg.mxu0
      %1725 = vmatprep.subr.bf16.mxu0 %v1635
      %1726 = vmatpush1.bf16.msra.mxu0 %v1632
      %1727 = vmatprep.subr.bf16.mxu0 0
      %1728 = vmatpush1.bf16.msra.mxu0 0
      %1729 = vmatprep.subr.bf16.mxu0 0
      %1730 = vmatpush1.bf16.msra.mxu0 0
      %1731 = vmatprep.subr.bf16.mxu0 0
      %1732 = vmatpush1.bf16.msra.mxu0 0
      %1733 = vmatprep.subr.bf16.mxu0 0
      %1734 = vmatpush1.bf16.msra.mxu0 0
      %1735 = vmatprep.subr.bf16.mxu0 0
      %1736 = vmatpush1.bf16.msra.mxu0 0
      %1737 = vmatprep.subr.bf16.mxu0 0
      %1738 = vmatpush1.bf16.msra.mxu0 0
      %1739 = vmatprep.subr.bf16.mxu0 0
      %1740 = vmatpush1.bf16.msra.mxu0 0
      %1741 = vmatprep.subr.bf16.mxu0 0
      %1742 = vmatpush1.bf16.msra.mxu0 0
      %1743 = vmatprep.subr.bf16.mxu0 0
      %1744 = vmatpush1.bf16.msra.mxu0 0
      %1745 = vmatprep.subr.bf16.mxu0 0
      %1746 = vmatpush1.bf16.msra.mxu0 0
      %1747 = vmatprep.subr.bf16.mxu0 0
      %1748 = vmatpush1.bf16.msra.mxu0 0
      %1749 = vmatprep.subr.bf16.mxu0 0
      %1750 = vmatpush1.bf16.msra.mxu0 0
      %1751 = vmatprep.subr.bf16.mxu0 0
      %1752 = vmatpush1.bf16.msra.mxu0 0
      %1753 = vmatprep.subr.bf16.mxu0 0
      %1754 = vmatpush1.bf16.msra.mxu0 0
      %1755 = vmatprep.subr.bf16.mxu0 0
      %1756 = vmatpush1.bf16.msra.mxu0 0
      %1757 = vmatprep.mubr.bf16.mxu0 0
      %1758 = vmatmul.mubr.bf16.gmra.mrb[0].mxu0 %v1623
      %v1759 = vpop.f32.mrb[0].mxu0
      %v1760 = vadd.f32 %v1609, %v1759
      %v1761 = vpop.f32.mrb[0].mxu0
      %v1762 = vadd.f32 %v1609, %v1761
      %v1763 = vpop.f32.mrb[0].mxu0
      %v1764 = vadd.f32 %v1614, %v1763
      %v1765 = vpop.f32.mrb[0].mxu0
      %v1766 = vadd.f32 %v1614, %v1765
      %1767 = vdwg.mxu0
      %1768 = vmatprep.subr.bf16.mxu0 %v1641
      %1769 = vmatpush1.bf16.msra.mxu0 %v1638
      %1770 = vmatprep.subr.bf16.mxu0 0
      %1771 = vmatpush1.bf16.msra.mxu0 0
      %1772 = vmatprep.subr.bf16.mxu0 0
      %1773 = vmatpush1.bf16.msra.mxu0 0
      %1774 = vmatprep.subr.bf16.mxu0 0
      %1775 = vmatpush1.bf16.msra.mxu0 0
      %1776 = vmatprep.subr.bf16.mxu0 0
      %1777 = vmatpush1.bf16.msra.mxu0 0
      %1778 = vmatprep.subr.bf16.mxu0 0
      %1779 = vmatpush1.bf16.msra.mxu0 0
      %1780 = vmatprep.subr.bf16.mxu0 0
      %1781 = vmatpush1.bf16.msra.mxu0 0
      %1782 = vmatprep.subr.bf16.mxu0 0
      %1783 = vmatpush1.bf16.msra.mxu0 0
      %1784 = vmatprep.subr.bf16.mxu0 0
      %1785 = vmatpush1.bf16.msra.mxu0 0
      %1786 = vmatprep.subr.bf16.mxu0 0
      %1787 = vmatpush1.bf16.msra.mxu0 0
      %1788 = vmatprep.subr.bf16.mxu0 0
      %1789 = vmatpush1.bf16.msra.mxu0 0
      %1790 = vmatprep.subr.bf16.mxu0 0
      %1791 = vmatpush1.bf16.msra.mxu0 0
      %1792 = vmatprep.subr.bf16.mxu0 0
      %1793 = vmatpush1.bf16.msra.mxu0 0
      %1794 = vmatprep.subr.bf16.mxu0 0
      %1795 = vmatpush1.bf16.msra.mxu0 0
      %1796 = vmatprep.subr.bf16.mxu0 0
      %1797 = vmatpush1.bf16.msra.mxu0 0
      %1798 = vmatprep.subr.bf16.mxu0 0
      %1799 = vmatpush1.bf16.msra.mxu0 0
      %1800 = vmatprep.mubr.bf16.mxu0 0
      %1801 = vmatmul.mubr.bf16.gmra.mrb[0].mxu0 %v1623
      %v1802 = vpop.f32.mrb[0].mxu0
      %v1803 = vadd.f32 %v1609, %v1802
      %v1804 = vpop.f32.mrb[0].mxu0
      %v1805 = vadd.f32 %v1609, %v1804
      %v1806 = vpop.f32.mrb[0].mxu0
      %v1807 = vadd.f32 %v1614, %v1806
      %v1808 = vpop.f32.mrb[0].mxu0
      %v1809 = vadd.f32 %v1614, %v1808
      %1810 = vdwg.mxu0
      %1811 = vmatprep.subr.bf16.mxu0 %v1647
      %1812 = vmatpush1.bf16.msra.mxu0 %v1644
      %1813 = vmatprep.subr.bf16.mxu0 0
      %1814 = vmatpush1.bf16.msra.mxu0 0
      %1815 = vmatprep.subr.bf16.mxu0 0
      %1816 = vmatpush1.bf16.msra.mxu0 0
      %1817 = vmatprep.subr.bf16.mxu0 0
      %1818 = vmatpush1.bf16.msra.mxu0 0
      %1819 = vmatprep.subr.bf16.mxu0 0
      %1820 = vmatpush1.bf16.msra.mxu0 0
      %1821 = vmatprep.subr.bf16.mxu0 0
      %1822 = vmatpush1.bf16.msra.mxu0 0
      %1823 = vmatprep.subr.bf16.mxu0 0
      %1824 = vmatpush1.bf16.msra.mxu0 0
      %1825 = vmatprep.subr.bf16.mxu0 0
      %1826 = vmatpush1.bf16.msra.mxu0 0
      %1827 = vmatprep.subr.bf16.mxu0 0
      %1828 = vmatpush1.bf16.msra.mxu0 0
      %1829 = vmatprep.subr.bf16.mxu0 0
      %1830 = vmatpush1.bf16.msra.mxu0 0
      %1831 = vmatprep.subr.bf16.mxu0 0
      %1832 = vmatpush1.bf16.msra.mxu0 0
      %1833 = vmatprep.subr.bf16.mxu0 0
      %1834 = vmatpush1.bf16.msra.mxu0 0
      %1835 = vmatprep.subr.bf16.mxu0 0
      %1836 = vmatpush1.bf16.msra.mxu0 0
      %1837 = vmatprep.subr.bf16.mxu0 0
      %1838 = vmatpush1.bf16.msra.mxu0 0
      %1839 = vmatprep.subr.bf16.mxu0 0
      %1840 = vmatpush1.bf16.msra.mxu0 0
      %1841 = vmatprep.subr.bf16.mxu0 0
      %1842 = vmatpush1.bf16.msra.mxu0 0
      %1843 = vmatprep.mubr.bf16.mxu0 0
      %1844 = vmatmul.mubr.bf16.gmra.mrb[0].mxu0 %v1623
      %v1845 = vpop.f32.mrb[0].mxu0
      %v1846 = vadd.f32 %v1609, %v1845
      %v1847 = vpop.f32.mrb[0].mxu0
      %v1848 = vadd.f32 %v1609, %v1847
      %v1849 = vpop.f32.mrb[0].mxu0
      %v1850 = vadd.f32 %v1614, %v1849
      %v1851 = vpop.f32.mrb[0].mxu0
      %v1852 = vadd.f32 %v1614, %v1851
      %1853 = vdwg.mxu0
      %1854 = vmatprep.subr.bf16.mxu0 %v1653
      %1855 = vmatpush1.bf16.msra.mxu0 %v1650
      %1856 = vmatprep.subr.bf16.mxu0 0
      %1857 = vmatpush1.bf16.msra.mxu0 0
      %1858 = vmatprep.subr.bf16.mxu0 0
      %1859 = vmatpush1.bf16.msra.mxu0 0
      %1860 = vmatprep.subr.bf16.mxu0 0
      %1861 = vmatpush1.bf16.msra.mxu0 0
      %1862 = vmatprep.subr.bf16.mxu0 0
      %1863 = vmatpush1.bf16.msra.mxu0 0
      %1864 = vmatprep.subr.bf16.mxu0 0
      %1865 = vmatpush1.bf16.msra.mxu0 0
      %1866 = vmatprep.subr.bf16.mxu0 0
      %1867 = vmatpush1.bf16.msra.mxu0 0
      %1868 = vmatprep.subr.bf16.mxu0 0
      %1869 = vmatpush1.bf16.msra.mxu0 0
      %1870 = vmatprep.subr.bf16.mxu0 0
      %1871 = vmatpush1.bf16.msra.mxu0 0
      %1872 = vmatprep.subr.bf16.mxu0 0
      %1873 = vmatpush1.bf16.msra.mxu0 0
      %1874 = vmatprep.subr.bf16.mxu0 0
      %1875 = vmatpush1.bf16.msra.mxu0 0
      %1876 = vmatprep.subr.bf16.mxu0 0
      %1877 = vmatpush1.bf16.msra.mxu0 0
      %1878 = vmatprep.subr.bf16.mxu0 0
      %1879 = vmatpush1.bf16.msra.mxu0 0
      %1880 = vmatprep.subr.bf16.mxu0 0
      %1881 = vmatpush1.bf16.msra.mxu0 0
      %1882 = vmatprep.subr.bf16.mxu0 0
      %1883 = vmatpush1.bf16.msra.mxu0 0
      %1884 = vmatprep.subr.bf16.mxu0 0
      %1885 = vmatpush1.bf16.msra.mxu0 0
      %1886 = vmatprep.mubr.bf16.mxu0 0
      %1887 = vmatmul.mubr.bf16.gmra.mrb[0].mxu0 %v1623
      %v1888 = vpop.f32.mrb[0].mxu0
      %v1889 = vadd.f32 %v1609, %v1888
      %v1890 = vpop.f32.mrb[0].mxu0
      %v1891 = vadd.f32 %v1609, %v1890
      %v1892 = vpop.f32.mrb[0].mxu0
      %v1893 = vadd.f32 %v1614, %v1892
      %v1894 = vpop.f32.mrb[0].mxu0
      %v1895 = vadd.f32 %v1614, %v1894
      %1896 = vdwg.mxu0
      %1897 = vmatprep.subr.bf16.mxu0 %v1659
      %1898 = vmatpush1.bf16.msra.mxu0 %v1656
      %1899 = vmatprep.subr.bf16.mxu0 0
      %1900 = vmatpush1.bf16.msra.mxu0 0
      %1901 = vmatprep.subr.bf16.mxu0 0
      %1902 = vmatpush1.bf16.msra.mxu0 0
      %1903 = vmatprep.subr.bf16.mxu0 0
      %1904 = vmatpush1.bf16.msra.mxu0 0
      %1905 = vmatprep.subr.bf16.mxu0 0
      %1906 = vmatpush1.bf16.msra.mxu0 0
      %1907 = vmatprep.subr.bf16.mxu0 0
      %1908 = vmatpush1.bf16.msra.mxu0 0
      %1909 = vmatprep.subr.bf16.mxu0 0
      %1910 = vmatpush1.bf16.msra.mxu0 0
      %1911 = vmatprep.subr.bf16.mxu0 0
      %1912 = vmatpush1.bf16.msra.mxu0 0
      %1913 = vmatprep.subr.bf16.mxu0 0
      %1914 = vmatpush1.bf16.msra.mxu0 0
      %1915 = vmatprep.subr.bf16.mxu0 0
      %1916 = vmatpush1.bf16.msra.mxu0 0
      %1917 = vmatprep.subr.bf16.mxu0 0
      %1918 = vmatpush1.bf16.msra.mxu0 0
      %1919 = vmatprep.subr.bf16.mxu0 0
      %1920 = vmatpush1.bf16.msra.mxu0 0
      %1921 = vmatprep.subr.bf16.mxu0 0
      %1922 = vmatpush1.bf16.msra.mxu0 0
      %1923 = vmatprep.subr.bf16.mxu0 0
      %1924 = vmatpush1.bf16.msra.mxu0 0
      %1925 = vmatprep.subr.bf16.mxu0 0
      %1926 = vmatpush1.bf16.msra.mxu0 0
      %1927 = vmatprep.subr.bf16.mxu0 0
      %1928 = vmatpush1.bf16.msra.mxu0 0
      %1929 = vmatprep.mubr.bf16.mxu0 0
      %1930 = vmatmul.mubr.bf16.gmra.mrb[0].mxu0 %v1623
      %v1931 = vpop.f32.mrb[0].mxu0
      %v1932 = vadd.f32 %v1609, %v1931
      %v1933 = vpop.f32.mrb[0].mxu0
      %v1934 = vadd.f32 %v1609, %v1933
      %v1935 = vpop.f32.mrb[0].mxu0
      %v1936 = vadd.f32 %v1614, %v1935
      %v1937 = vpop.f32.mrb[0].mxu0
      %v1938 = vadd.f32 %v1614, %v1937
      %1939 = vdwg.mxu0
      %1940 = vmatprep.subr.bf16.mxu0 %v1665
      %1941 = vmatpush1.bf16.msra.mxu0 %v1662
      %1942 = vmatprep.subr.bf16.mxu0 0
      %1943 = vmatpush1.bf16.msra.mxu0 0
      %1944 = vmatprep.subr.bf16.mxu0 0
      %1945 = vmatpush1.bf16.msra.mxu0 0
      %1946 = vmatprep.subr.bf16.mxu0 0
      %1947 = vmatpush1.bf16.msra.mxu0 0
      %1948 = vmatprep.subr.bf16.mxu0 0
      %1949 = vmatpush1.bf16.msra.mxu0 0
      %1950 = vmatprep.subr.bf16.mxu0 0
      %1951 = vmatpush1.bf16.msra.mxu0 0
      %1952 = vmatprep.subr.bf16.mxu0 0
      %1953 = vmatpush1.bf16.msra.mxu0 0
      %1954 = vmatprep.subr.bf16.mxu0 0
      %1955 = vmatpush1.bf16.msra.mxu0 0
      %1956 = vmatprep.subr.bf16.mxu0 0
      %1957 = vmatpush1.bf16.msra.mxu0 0
      %1958 = vmatprep.subr.bf16.mxu0 0
      %1959 = vmatpush1.bf16.msra.mxu0 0
      %1960 = vmatprep.subr.bf16.mxu0 0
      %1961 = vmatpush1.bf16.msra.mxu0 0
      %1962 = vmatprep.subr.bf16.mxu0 0
      %1963 = vmatpush1.bf16.msra.mxu0 0
      %1964 = vmatprep.subr.bf16.mxu0 0
      %1965 = vmatpush1.bf16.msra.mxu0 0
      %1966 = vmatprep.subr.bf16.mxu0 0
      %1967 = vmatpush1.bf16.msra.mxu0 0
      %1968 = vmatprep.subr.bf16.mxu0 0
      %1969 = vmatpush1.bf16.msra.mxu0 0
      %1970 = vmatprep.subr.bf16.mxu0 0
      %1971 = vmatpush1.bf16.msra.mxu0 0
      %1972 = vmatprep.mubr.bf16.mxu0 0
      %1973 = vmatmul.mubr.bf16.gmra.mrb[0].mxu0 %v1623
      %v1974 = vpop.f32.mrb[0].mxu0
      %v1975 = vadd.f32 %v1609, %v1974
      %v1976 = vpop.f32.mrb[0].mxu0
      %v1977 = vadd.f32 %v1609, %v1976
      %v1978 = vpop.f32.mrb[0].mxu0
      %v1979 = vadd.f32 %v1614, %v1978
      %v1980 = vpop.f32.mrb[0].mxu0
      %v1981 = vadd.f32 %v1614, %v1980
      %1982 = vdwg.mxu0
      %1983 = vmatprep.subr.bf16.mxu0 %v1671
      %1984 = vmatpush1.bf16.msra.mxu0 %v1668
      %1985 = vmatprep.subr.bf16.mxu0 0
      %1986 = vmatpush1.bf16.msra.mxu0 0
      %1987 = vmatprep.subr.bf16.mxu0 0
      %1988 = vmatpush1.bf16.msra.mxu0 0
      %1989 = vmatprep.subr.bf16.mxu0 0
      %1990 = vmatpush1.bf16.msra.mxu0 0
      %1991 = vmatprep.subr.bf16.mxu0 0
      %1992 = vmatpush1.bf16.msra.mxu0 0
      %1993 = vmatprep.subr.bf16.mxu0 0
      %1994 = vmatpush1.bf16.msra.mxu0 0
      %1995 = vmatprep.subr.bf16.mxu0 0
      %1996 = vmatpush1.bf16.msra.mxu0 0
      %1997 = vmatprep.subr.bf16.mxu0 0
      %1998 = vmatpush1.bf16.msra.mxu0 0
      %1999 = vmatprep.subr.bf16.mxu0 0
      %2000 = vmatpush1.bf16.msra.mxu0 0
      %2001 = vmatprep.subr.bf16.mxu0 0
      %2002 = vmatpush1.bf16.msra.mxu0 0
      %2003 = vmatprep.subr.bf16.mxu0 0
      %2004 = vmatpush1.bf16.msra.mxu0 0
      %2005 = vmatprep.subr.bf16.mxu0 0
      %2006 = vmatpush1.bf16.msra.mxu0 0
      %2007 = vmatprep.subr.bf16.mxu0 0
      %2008 = vmatpush1.bf16.msra.mxu0 0
      %2009 = vmatprep.subr.bf16.mxu0 0
      %2010 = vmatpush1.bf16.msra.mxu0 0
      %2011 = vmatprep.subr.bf16.mxu0 0
      %2012 = vmatpush1.bf16.msra.mxu0 0
      %2013 = vmatprep.subr.bf16.mxu0 0
      %2014 = vmatpush1.bf16.msra.mxu0 0
      %2015 = vmatprep.mubr.bf16.mxu0 0
      %2016 = vmatmul.mubr.bf16.gmra.mrb[0].mxu0 %v1623
      %v2017 = vpop.f32.mrb[0].mxu0
      %v2018 = vadd.f32 %v1609, %v2017
      %v2019 = vpop.f32.mrb[0].mxu0
      %v2020 = vadd.f32 %v1609, %v2019
      %v2021 = vpop.f32.mrb[0].mxu0
      %v2022 = vadd.f32 %v1614, %v2021
      %v2023 = vpop.f32.mrb[0].mxu0
      %v2024 = vadd.f32 %v1614, %v2023
      %2025 = vdwg.mxu0
      %2026 = vmatprep.subr.bf16.mxu0 %v1677
      %2027 = vmatpush1.bf16.msra.mxu0 %v1674
      %2028 = vmatprep.subr.bf16.mxu0 0
      %2029 = vmatpush1.bf16.msra.mxu0 0
      %2030 = vmatprep.subr.bf16.mxu0 0
      %2031 = vmatpush1.bf16.msra.mxu0 0
      %2032 = vmatprep.subr.bf16.mxu0 0
      %2033 = vmatpush1.bf16.msra.mxu0 0
      %2034 = vmatprep.subr.bf16.mxu0 0
      %2035 = vmatpush1.bf16.msra.mxu0 0
      %2036 = vmatprep.subr.bf16.mxu0 0
      %2037 = vmatpush1.bf16.msra.mxu0 0
      %2038 = vmatprep.subr.bf16.mxu0 0
      %2039 = vmatpush1.bf16.msra.mxu0 0
      %2040 = vmatprep.subr.bf16.mxu0 0
      %2041 = vmatpush1.bf16.msra.mxu0 0
      %2042 = vmatprep.subr.bf16.mxu0 0
      %2043 = vmatpush1.bf16.msra.mxu0 0
      %2044 = vmatprep.subr.bf16.mxu0 0
      %2045 = vmatpush1.bf16.msra.mxu0 0
      %2046 = vmatprep.subr.bf16.mxu0 0
      %2047 = vmatpush1.bf16.msra.mxu0 0
      %2048 = vmatprep.subr.bf16.mxu0 0
      %2049 = vmatpush1.bf16.msra.mxu0 0
      %2050 = vmatprep.subr.bf16.mxu0 0
      %2051 = vmatpush1.bf16.msra.mxu0 0
      %2052 = vmatprep.subr.bf16.mxu0 0
      %2053 = vmatpush1.bf16.msra.mxu0 0
      %2054 = vmatprep.subr.bf16.mxu0 0
      %2055 = vmatpush1.bf16.msra.mxu0 0
      %2056 = vmatprep.subr.bf16.mxu0 0
      %2057 = vmatpush1.bf16.msra.mxu0 0
      %2058 = vmatprep.mubr.bf16.mxu0 0
      %2059 = vmatmul.mubr.bf16.gmra.mrb[0].mxu0 %v1623
      %v2060 = vpop.f32.mrb[0].mxu0
      %v2061 = vadd.f32 %v1609, %v2060
      %v2062 = vpop.f32.mrb[0].mxu0
      %v2063 = vadd.f32 %v1609, %v2062
      %v2064 = vpop.f32.mrb[0].mxu0
      %v2065 = vadd.f32 %v1614, %v2064
      %v2066 = vpop.f32.mrb[0].mxu0
      %v2067 = vadd.f32 %v1614, %v2066
      %2068 = vdwg.mxu0
      %2069 = vmatprep.subr.bf16.mxu0 0
      %2070 = vmatpush1.bf16.msra.mxu0 %v1680
      %2071 = vmatprep.subr.bf16.mxu0 0
      %2072 = vmatpush1.bf16.msra.mxu0 0
      %2073 = vmatprep.subr.bf16.mxu0 0
      %2074 = vmatpush1.bf16.msra.mxu0 0
      %2075 = vmatprep.subr.bf16.mxu0 0
      %2076 = vmatpush1.bf16.msra.mxu0 0
      %2077 = vmatprep.subr.bf16.mxu0 0
      %2078 = vmatpush1.bf16.msra.mxu0 0
      %2079 = vmatprep.subr.bf16.mxu0 0
      %2080 = vmatpush1.bf16.msra.mxu0 0
      %2081 = vmatprep.subr.bf16.mxu0 0
      %2082 = vmatpush1.bf16.msra.mxu0 0
      %2083 = vmatprep.subr.bf16.mxu0 0
      %2084 = vmatpush1.bf16.msra.mxu0 0
      %2085 = vmatprep.subr.bf16.mxu0 0
      %2086 = vmatpush1.bf16.msra.mxu0 0
      %2087 = vmatprep.subr.bf16.mxu0 0
      %2088 = vmatpush1.bf16.msra.mxu0 0
      %2089 = vmatprep.subr.bf16.mxu0 0
      %2090 = vmatpush1.bf16.msra.mxu0 0
      %2091 = vmatprep.subr.bf16.mxu0 0
      %2092 = vmatpush1.bf16.msra.mxu0 0
      %2093 = vmatprep.subr.bf16.mxu0 0
      %2094 = vmatpush1.bf16.msra.mxu0 0
      %2095 = vmatprep.subr.bf16.mxu0 0
      %2096 = vmatpush1.bf16.msra.mxu0 0
      %2097 = vmatprep.subr.bf16.mxu0 0
      %2098 = vmatpush1.bf16.msra.mxu0 0
      %2099 = vmatprep.subr.bf16.mxu0 0
      %2100 = vmatpush1.bf16.msra.mxu0 0
      %2101 = vmatprep.mubr.bf16.mxu0 0
      %2102 = vmatmul.mubr.bf16.gmra.mrb[0].mxu0 %v1623
      %v2103 = vpop.f32.mrb[0].mxu0
      %v2104 = vadd.f32 %v1609, %v2103
      %v2105 = vpop.f32.mrb[0].mxu0
      %v2106 = vpop.f32.mrb[0].mxu0
      %v2107 = vadd.f32 %v1614, %v2106
      %v2108 = vpop.f32.mrb[0].mxu0
      %2109 = vdwg.mxu0
      %v2110 = vmax.f32 %v1717, 0.0
      %v2111 = vmax.f32 %v1719, 0.0
      %v2112 = vmax.f32 %v1760, 0.0
      %v2113 = vmax.f32 %v1762, 0.0
      %v2114 = vmax.f32 %v1803, 0.0
      %v2115 = vmax.f32 %v1805, 0.0
      %v2116 = vmax.f32 %v1846, 0.0
      %v2117 = vmax.f32 %v1848, 0.0
      %v2118 = vmax.f32 %v1889, 0.0
      %v2119 = vmax.f32 %v1891, 0.0
      %v2120 = vmax.f32 %v1932, 0.0
      %v2121 = vmax.f32 %v1934, 0.0
      %v2122 = vmax.f32 %v1975, 0.0
      %v2123 = vmax.f32 %v1977, 0.0
      %v2124 = vmax.f32 %v2018, 0.0
      %v2125 = vmax.f32 %v2020, 0.0
      %v2126 = vmax.f32 %v2061, 0.0
      %v2127 = vmax.f32 %v2063, 0.0
      %v2128 = vmax.f32 %v2104, 0.0
      %v2129 = vmax.f32 %v1721, 0.0
      %v2130 = vmax.f32 %v1723, 0.0
      %v2131 = vmax.f32 %v1764, 0.0
      %v2132 = vmax.f32 %v1766, 0.0
      %v2133 = vmax.f32 %v1807, 0.0
      %v2134 = vmax.f32 %v1809, 0.0
      %v2135 = vmax.f32 %v1850, 0.0
      %v2136 = vmax.f32 %v1852, 0.0
      %v2137 = vmax.f32 %v1893, 0.0
      %v2138 = vmax.f32 %v1895, 0.0
      %v2139 = vmax.f32 %v1936, 0.0
      %v2140 = vmax.f32 %v1938, 0.0
      %v2141 = vmax.f32 %v1979, 0.0
      %v2142 = vmax.f32 %v1981, 0.0
      %v2143 = vmax.f32 %v2022, 0.0
      %v2144 = vmax.f32 %v2024, 0.0
      %v2145 = vmax.f32 %v2065, 0.0
      %v2146 = vmax.f32 %v2067, 0.0
      %v2147 = vmax.f32 %v2107, 0.0
      %v2148 = vlaneseq
      %v2149 = vand.u32 %v2148, 127
      %v2150 = vadd.s32 %v2149, 128
      %v2151 = vadd.s32 %v2149, 256
      %v2152 = vadd.s32 %v2149, 384
      %v2153 = vadd.s32 %v2149, 512
      %v2154 = vadd.s32 %v2149, 640
      %v2155 = vadd.s32 %v2149, 768
      %v2156 = vadd.s32 %v2149, 896
      %v2157 = vadd.s32 %v2149, 1024
      %v2158 = vadd.s32 %v2149, 1152
      %v2159 = vadd.s32 %v2149, 1280
      %v2160 = vadd.s32 %v2149, 1408
      %v2161 = vadd.s32 %v2149, 1536
      %v2162 = vadd.s32 %v2149, 1664
      %v2163 = vadd.s32 %v2149, 1792
      %v2164 = vadd.s32 %v2149, 1920
      %v2165 = vadd.s32 %v2149, 2048
      %v2166 = vadd.s32 %v2149, 2176
      %v2167 = vadd.s32 %v2149, 2304
      %s2168 = smul.u32 %s26, 16
      %s2169 = ssub.s32 1, %s2168
      %s2170 = smul.u32 %s2169, 128
      %v2171 = vstv %s2170
      %vm2172 = vcmp.ge.s32.totalorder %v2149, %v2171
      %vm2173 = vcmp.ge.s32.totalorder %v2150, %v2171
      %vm2174 = vcmp.ge.s32.totalorder %v2151, %v2171
      %vm2175 = vcmp.ge.s32.totalorder %v2152, %v2171
      %vm2176 = vcmp.ge.s32.totalorder %v2153, %v2171
      %vm2177 = vcmp.ge.s32.totalorder %v2154, %v2171
      %vm2178 = vcmp.ge.s32.totalorder %v2155, %v2171
      %vm2179 = vcmp.ge.s32.totalorder %v2156, %v2171
      %vm2180 = vcmp.ge.s32.totalorder %v2157, %v2171
      %vm2181 = vcmp.ge.s32.totalorder %v2158, %v2171
      %vm2182 = vcmp.ge.s32.totalorder %v2159, %v2171
      %vm2183 = vcmp.ge.s32.totalorder %v2160, %v2171
      %vm2184 = vcmp.ge.s32.totalorder %v2161, %v2171
      %vm2185 = vcmp.ge.s32.totalorder %v2162, %v2171
      %vm2186 = vcmp.ge.s32.totalorder %v2163, %v2171
      %vm2187 = vcmp.ge.s32.totalorder %v2164, %v2171
      %vm2188 = vcmp.ge.s32.totalorder %v2165, %v2171
      %vm2189 = vcmp.ge.s32.totalorder %v2166, %v2171
      %vm2190 = vcmp.ge.s32.totalorder %v2167, %v2171
      %s2191 = sadd.s32 %s2170, 2048
      %v2192 = vstv %s2191
      %vm2193 = vcmp.lt.s32.totalorder %v2149, %v2192
      %vm2194 = vcmp.lt.s32.totalorder %v2150, %v2192
      %vm2195 = vcmp.lt.s32.totalorder %v2151, %v2192
      %vm2196 = vcmp.lt.s32.totalorder %v2152, %v2192
      %vm2197 = vcmp.lt.s32.totalorder %v2153, %v2192
      %vm2198 = vcmp.lt.s32.totalorder %v2154, %v2192
      %vm2199 = vcmp.lt.s32.totalorder %v2155, %v2192
      %vm2200 = vcmp.lt.s32.totalorder %v2156, %v2192
      %vm2201 = vcmp.lt.s32.totalorder %v2157, %v2192
      %vm2202 = vcmp.lt.s32.totalorder %v2158, %v2192
      %vm2203 = vcmp.lt.s32.totalorder %v2159, %v2192
      %vm2204 = vcmp.lt.s32.totalorder %v2160, %v2192
      %vm2205 = vcmp.lt.s32.totalorder %v2161, %v2192
      %vm2206 = vcmp.lt.s32.totalorder %v2162, %v2192
      %vm2207 = vcmp.lt.s32.totalorder %v2163, %v2192
      %vm2208 = vcmp.lt.s32.totalorder %v2164, %v2192
      %vm2209 = vcmp.lt.s32.totalorder %v2165, %v2192
      %vm2210 = vcmp.lt.s32.totalorder %v2166, %v2192
      %vm2211 = vcmp.lt.s32.totalorder %v2167, %v2192
      %vm2212 = vmand %vm2172, %vm2193
      %vm2213 = vmand %vm2173, %vm2194
      %vm2214 = vmand %vm2174, %vm2195
      %vm2215 = vmand %vm2175, %vm2196
      %vm2216 = vmand %vm2176, %vm2197
      %vm2217 = vmand %vm2177, %vm2198
      %vm2218 = vmand %vm2178, %vm2199
      %vm2219 = vmand %vm2179, %vm2200
      %vm2220 = vmand %vm2180, %vm2201
      %vm2221 = vmand %vm2181, %vm2202
      %vm2222 = vmand %vm2182, %vm2203
      %vm2223 = vmand %vm2183, %vm2204
      %vm2224 = vmand %vm2184, %vm2205
      %vm2225 = vmand %vm2185, %vm2206
      %vm2226 = vmand %vm2186, %vm2207
      %vm2227 = vmand %vm2187, %vm2208
      %vm2228 = vmand %vm2188, %vm2209
      %vm2229 = vmand %vm2189, %vm2210
      %vm2230 = vmand %vm2190, %vm2211
      %v2231 = vld [vmem:[%s1] sm:$0xff]
      %v2232 = vld [vmem:[%s1 + $0x8] sm:$0xff]
      %v2233 = vld [vmem:[%s1 + $0x10] sm:$0x7]
      %v2237 = vlaneseq
      %v2238 = vshrl.u32 %v2237, 7
      %v2239 = vsub.s32 0, %v2238
      %v2240 = vrot.slane %v2231, %v2239
      %v2241 = vlaneseq
      %v2242 = vshrl.u32 %v2241, 7
      %v2243 = vsub.s32 1, %v2242
      %v2244 = vrot.slane %v2231, %v2243
      %v2245 = vlaneseq
      %v2246 = vshrl.u32 %v2245, 7
      %v2247 = vsub.s32 2, %v2246
      %v2248 = vrot.slane %v2231, %v2247
      %v2249 = vlaneseq
      %v2250 = vshrl.u32 %v2249, 7
      %v2251 = vsub.s32 3, %v2250
      %v2252 = vrot.slane %v2231, %v2251
      %v2253 = vlaneseq
      %v2254 = vshrl.u32 %v2253, 7
      %v2255 = vsub.s32 4, %v2254
      %v2256 = vrot.slane %v2231, %v2255
      %v2257 = vlaneseq
      %v2258 = vshrl.u32 %v2257, 7
      %v2259 = vsub.s32 5, %v2258
      %v2260 = vrot.slane %v2231, %v2259
      %v2261 = vlaneseq
      %v2262 = vshrl.u32 %v2261, 7
      %v2263 = vsub.s32 6, %v2262
      %v2264 = vrot.slane %v2231, %v2263
      %v2265 = vlaneseq
      %v2266 = vshrl.u32 %v2265, 7
      %v2267 = vsub.s32 7, %v2266
      %v2268 = vrot.slane %v2231, %v2267
      %v2269 = vlaneseq
      %v2270 = vshrl.u32 %v2269, 7
      %v2271 = vsub.s32 0, %v2270
      %v2272 = vrot.slane %v2232, %v2271
      %v2273 = vlaneseq
      %v2274 = vshrl.u32 %v2273, 7
      %v2275 = vsub.s32 1, %v2274
      %v2276 = vrot.slane %v2232, %v2275
      %v2277 = vlaneseq
      %v2278 = vshrl.u32 %v2277, 7
      %v2279 = vsub.s32 2, %v2278
      %v2280 = vrot.slane %v2232, %v2279
      %v2281 = vlaneseq
      %v2282 = vshrl.u32 %v2281, 7
      %v2283 = vsub.s32 3, %v2282
      %v2284 = vrot.slane %v2232, %v2283
      %v2285 = vlaneseq
      %v2286 = vshrl.u32 %v2285, 7
      %v2287 = vsub.s32 4, %v2286
      %v2288 = vrot.slane %v2232, %v2287
      %v2289 = vlaneseq
      %v2290 = vshrl.u32 %v2289, 7
      %v2291 = vsub.s32 5, %v2290
      %v2292 = vrot.slane %v2232, %v2291
      %v2293 = vlaneseq
      %v2294 = vshrl.u32 %v2293, 7
      %v2295 = vsub.s32 6, %v2294
      %v2296 = vrot.slane %v2232, %v2295
      %v2297 = vlaneseq
      %v2298 = vshrl.u32 %v2297, 7
      %v2299 = vsub.s32 7, %v2298
      %v2300 = vrot.slane %v2232, %v2299
      %v2301 = vlaneseq
      %v2302 = vshrl.u32 %v2301, 7
      %v2303 = vsub.s32 0, %v2302
      %v2304 = vrot.slane %v2233, %v2303
      %v2305 = vlaneseq
      %v2306 = vshrl.u32 %v2305, 7
      %v2307 = vsub.s32 1, %v2306
      %v2308 = vrot.slane %v2233, %v2307
      %v2309 = vlaneseq
      %v2310 = vshrl.u32 %v2309, 7
      %v2311 = vsub.s32 2, %v2310
      %v2312 = vrot.slane %v2233, %v2311
      %v2332 = vsel %vm2212, %v2240, 0.0
      %v2333 = vsel %vm2213, %v2244, 0.0
      %v2334 = vsel %vm2214, %v2248, 0.0
      %v2335 = vsel %vm2215, %v2252, 0.0
      %v2336 = vsel %vm2216, %v2256, 0.0
      %v2337 = vsel %vm2217, %v2260, 0.0
      %v2338 = vsel %vm2218, %v2264, 0.0
      %v2339 = vsel %vm2219, %v2268, 0.0
      %v2340 = vsel %vm2220, %v2272, 0.0
      %v2341 = vsel %vm2221, %v2276, 0.0
      %v2342 = vsel %vm2222, %v2280, 0.0
      %v2343 = vsel %vm2223, %v2284, 0.0
      %v2344 = vsel %vm2224, %v2288, 0.0
      %v2345 = vsel %vm2225, %v2292, 0.0
      %v2346 = vsel %vm2226, %v2296, 0.0
      %v2347 = vsel %vm2227, %v2300, 0.0
      %v2348 = vsel %vm2228, %v2304, 0.0
      %v2349 = vsel %vm2229, %v2308, 0.0
      %v2350 = vsel %vm2230, %v2312, 0.0
      %v2351 = vlaneseq
      %v2352 = vshrl.u32 %v2351, 7
      %v2353 = vsub.s32 0, %v2352
      %v2354 = vrot.slane %v2332, %v2353
      %v2355 = vlaneseq
      %v2356 = vshrl.u32 %v2355, 7
      %v2357 = vsub.s32 0, %v2356
      %v2358 = vrot.slane %v2333, %v2357
      %v2359 = vlaneseq
      %v2360 = vshrl.u32 %v2359, 7
      %v2361 = vsub.s32 0, %v2360
      %v2362 = vrot.slane %v2334, %v2361
      %v2363 = vlaneseq
      %v2364 = vshrl.u32 %v2363, 7
      %v2365 = vsub.s32 0, %v2364
      %v2366 = vrot.slane %v2335, %v2365
      %v2367 = vlaneseq
      %v2368 = vshrl.u32 %v2367, 7
      %v2369 = vsub.s32 0, %v2368
      %v2370 = vrot.slane %v2336, %v2369
      %v2371 = vlaneseq
      %v2372 = vshrl.u32 %v2371, 7
      %v2373 = vsub.s32 0, %v2372
      %v2374 = vrot.slane %v2337, %v2373
      %v2375 = vlaneseq
      %v2376 = vshrl.u32 %v2375, 7
      %v2377 = vsub.s32 0, %v2376
      %v2378 = vrot.slane %v2338, %v2377
      %v2379 = vlaneseq
      %v2380 = vshrl.u32 %v2379, 7
      %v2381 = vsub.s32 0, %v2380
      %v2382 = vrot.slane %v2339, %v2381
      %v2383 = vlaneseq
      %v2384 = vshrl.u32 %v2383, 7
      %v2385 = vsub.s32 0, %v2384
      %v2386 = vrot.slane %v2340, %v2385
      %v2387 = vlaneseq
      %v2388 = vshrl.u32 %v2387, 7
      %v2389 = vsub.s32 0, %v2388
      %v2390 = vrot.slane %v2341, %v2389
      %v2391 = vlaneseq
      %v2392 = vshrl.u32 %v2391, 7
      %v2393 = vsub.s32 0, %v2392
      %v2394 = vrot.slane %v2342, %v2393
      %v2395 = vlaneseq
      %v2396 = vshrl.u32 %v2395, 7
      %v2397 = vsub.s32 0, %v2396
      %v2398 = vrot.slane %v2343, %v2397
      %v2399 = vlaneseq
      %v2400 = vshrl.u32 %v2399, 7
      %v2401 = vsub.s32 0, %v2400
      %v2402 = vrot.slane %v2344, %v2401
      %v2403 = vlaneseq
      %v2404 = vshrl.u32 %v2403, 7
      %v2405 = vsub.s32 0, %v2404
      %v2406 = vrot.slane %v2345, %v2405
      %v2407 = vlaneseq
      %v2408 = vshrl.u32 %v2407, 7
      %v2409 = vsub.s32 0, %v2408
      %v2410 = vrot.slane %v2346, %v2409
      %v2411 = vlaneseq
      %v2412 = vshrl.u32 %v2411, 7
      %v2413 = vsub.s32 0, %v2412
      %v2414 = vrot.slane %v2347, %v2413
      %v2415 = vlaneseq
      %v2416 = vshrl.u32 %v2415, 7
      %v2417 = vsub.s32 0, %v2416
      %v2418 = vrot.slane %v2348, %v2417
      %v2419 = vlaneseq
      %v2420 = vshrl.u32 %v2419, 7
      %v2421 = vsub.s32 0, %v2420
      %v2422 = vrot.slane %v2349, %v2421
      %v2423 = vlaneseq
      %v2424 = vshrl.u32 %v2423, 7
      %v2425 = vsub.s32 0, %v2424
      %v2426 = vrot.slane %v2350, %v2425
      %v2427 = vmul.f32 %v2110, %v2354
      %v2428 = vmul.f32 %v2111, %v2358
      %v2429 = vmul.f32 %v2112, %v2362
      %v2430 = vmul.f32 %v2113, %v2366
      %v2431 = vmul.f32 %v2114, %v2370
      %v2432 = vmul.f32 %v2115, %v2374
      %v2433 = vmul.f32 %v2116, %v2378
      %v2434 = vmul.f32 %v2117, %v2382
      %v2435 = vmul.f32 %v2118, %v2386
      %v2436 = vmul.f32 %v2119, %v2390
      %v2437 = vmul.f32 %v2120, %v2394
      %v2438 = vmul.f32 %v2121, %v2398
      %v2439 = vmul.f32 %v2122, %v2402
      %v2440 = vmul.f32 %v2123, %v2406
      %v2441 = vmul.f32 %v2124, %v2410
      %v2442 = vmul.f32 %v2125, %v2414
      %v2443 = vmul.f32 %v2126, %v2418
      %v2444 = vmul.f32 %v2127, %v2422
      %v2445 = vmul.f32 %v2128, %v2426
      %v2446 = vmul.f32 %v2129, %v2354
      %v2447 = vmul.f32 %v2130, %v2358
      %v2448 = vmul.f32 %v2131, %v2362
      %v2449 = vmul.f32 %v2132, %v2366
      %v2450 = vmul.f32 %v2133, %v2370
      %v2451 = vmul.f32 %v2134, %v2374
      %v2452 = vmul.f32 %v2135, %v2378
      %v2453 = vmul.f32 %v2136, %v2382
      %v2454 = vmul.f32 %v2137, %v2386
      %v2455 = vmul.f32 %v2138, %v2390
      %v2456 = vmul.f32 %v2139, %v2394
      %v2457 = vmul.f32 %v2140, %v2398
      %v2458 = vmul.f32 %v2141, %v2402
      %v2459 = vmul.f32 %v2142, %v2406
      %v2460 = vmul.f32 %v2143, %v2410
      %v2461 = vmul.f32 %v2144, %v2414
      %v2462 = vmul.f32 %v2145, %v2418
      %v2463 = vmul.f32 %v2146, %v2422
      %v2464 = vmul.f32 %v2147, %v2426
      %v2465 = vpack.c.bf16 %v2446, %v2427
      %v2466 = vpack.c.bf16 %v2447, %v2428
      %v2467 = vpack.c.bf16 %v2448, %v2429
      %v2468 = vpack.c.bf16 %v2449, %v2430
      %v2469 = vpack.c.bf16 %v2450, %v2431
      %v2470 = vpack.c.bf16 %v2451, %v2432
      %v2471 = vpack.c.bf16 %v2452, %v2433
      %v2472 = vpack.c.bf16 %v2453, %v2434
      %v2473 = vpack.c.bf16 %v2454, %v2435
      %v2474 = vpack.c.bf16 %v2455, %v2436
      %v2475 = vpack.c.bf16 %v2456, %v2437
      %v2476 = vpack.c.bf16 %v2457, %v2438
      %v2477 = vpack.c.bf16 %v2458, %v2439
      %v2478 = vpack.c.bf16 %v2459, %v2440
      %v2479 = vpack.c.bf16 %v2460, %v2441
      %v2480 = vpack.c.bf16 %v2461, %v2442
      %v2481 = vpack.c.bf16 %v2462, %v2443
      %v2482 = vpack.c.bf16 %v2463, %v2444
      %v2483 = vpack.c.bf16 %v2464, %v2445
      %2501 = vrot.lane.b32.xlu0 %v2465, 127
      %v2502 = vpop.permute.xlu0 %2501
      %2503 = vrot.lane.b32.xlu0 %v2466, 127
      %v2504 = vpop.permute.xlu0 %2503
      %2505 = vrot.lane.b32.xlu0 %v2467, 127
      %v2506 = vpop.permute.xlu0 %2505
      %2507 = vrot.lane.b32.xlu0 %v2468, 127
      %v2508 = vpop.permute.xlu0 %2507
      %2509 = vrot.lane.b32.xlu0 %v2469, 127
      %v2510 = vpop.permute.xlu0 %2509
      %2511 = vrot.lane.b32.xlu0 %v2470, 127
      %v2512 = vpop.permute.xlu0 %2511
      %2513 = vrot.lane.b32.xlu0 %v2471, 127
      %v2514 = vpop.permute.xlu0 %2513
      %2515 = vrot.lane.b32.xlu0 %v2472, 127
      %v2516 = vpop.permute.xlu0 %2515
      %2517 = vrot.lane.b32.xlu0 %v2473, 127
      %v2518 = vpop.permute.xlu0 %2517
      %2519 = vrot.lane.b32.xlu0 %v2474, 127
      %v2520 = vpop.permute.xlu0 %2519
      %2521 = vrot.lane.b32.xlu0 %v2475, 127
      %v2522 = vpop.permute.xlu0 %2521
      %2523 = vrot.lane.b32.xlu0 %v2476, 127
      %v2524 = vpop.permute.xlu0 %2523
      %2525 = vrot.lane.b32.xlu0 %v2477, 127
      %v2526 = vpop.permute.xlu0 %2525
      %2527 = vrot.lane.b32.xlu0 %v2478, 127
      %v2528 = vpop.permute.xlu0 %2527
      %2529 = vrot.lane.b32.xlu0 %v2479, 127
      %v2530 = vpop.permute.xlu0 %2529
      %2531 = vrot.lane.b32.xlu0 %v2480, 127
      %v2532 = vpop.permute.xlu0 %2531
      %2533 = vrot.lane.b32.xlu0 %v2481, 127
      %v2534 = vpop.permute.xlu0 %2533
      %v2535 = vsel %vm536, %v2502, %v2504
      %v2536 = vsel %vm536, %v2504, %v2506
      %v2537 = vsel %vm536, %v2506, %v2508
      %v2538 = vsel %vm536, %v2508, %v2510
      %v2539 = vsel %vm536, %v2510, %v2512
      %v2540 = vsel %vm536, %v2512, %v2514
      %v2541 = vsel %vm536, %v2514, %v2516
      %v2542 = vsel %vm536, %v2516, %v2518
      %v2543 = vsel %vm536, %v2518, %v2520
      %v2544 = vsel %vm536, %v2520, %v2522
      %v2545 = vsel %vm536, %v2522, %v2524
      %v2546 = vsel %vm536, %v2524, %v2526
      %v2547 = vsel %vm536, %v2526, %v2528
      %v2548 = vsel %vm536, %v2528, %v2530
      %v2549 = vsel %vm536, %v2530, %v2532
      %v2550 = vsel %vm536, %v2532, %v2534
      %2567 = vrot.lane.b32.xlu0 %v2465, 126
      %v2568 = vpop.permute.xlu0 %2567
      %2569 = vrot.lane.b32.xlu0 %v2466, 126
      %v2570 = vpop.permute.xlu0 %2569
      %2571 = vrot.lane.b32.xlu0 %v2467, 126
      %v2572 = vpop.permute.xlu0 %2571
      %2573 = vrot.lane.b32.xlu0 %v2468, 126
      %v2574 = vpop.permute.xlu0 %2573
      %2575 = vrot.lane.b32.xlu0 %v2469, 126
      %v2576 = vpop.permute.xlu0 %2575
      %2577 = vrot.lane.b32.xlu0 %v2470, 126
      %v2578 = vpop.permute.xlu0 %2577
      %2579 = vrot.lane.b32.xlu0 %v2471, 126
      %v2580 = vpop.permute.xlu0 %2579
      %2581 = vrot.lane.b32.xlu0 %v2472, 126
      %v2582 = vpop.permute.xlu0 %2581
      %2583 = vrot.lane.b32.xlu0 %v2473, 126
      %v2584 = vpop.permute.xlu0 %2583
      %2585 = vrot.lane.b32.xlu0 %v2474, 126
      %v2586 = vpop.permute.xlu0 %2585
      %2587 = vrot.lane.b32.xlu0 %v2475, 126
      %v2588 = vpop.permute.xlu0 %2587
      %2589 = vrot.lane.b32.xlu0 %v2476, 126
      %v2590 = vpop.permute.xlu0 %2589
      %2591 = vrot.lane.b32.xlu0 %v2477, 126
      %v2592 = vpop.permute.xlu0 %2591
      %2593 = vrot.lane.b32.xlu0 %v2478, 126
      %v2594 = vpop.permute.xlu0 %2593
      %2595 = vrot.lane.b32.xlu0 %v2479, 126
      %v2596 = vpop.permute.xlu0 %2595
      %2597 = vrot.lane.b32.xlu0 %v2480, 126
      %v2598 = vpop.permute.xlu0 %2597
      %2599 = vrot.lane.b32.xlu0 %v2481, 126
      %v2600 = vpop.permute.xlu0 %2599
      %v2601 = vsel %vm606, %v2568, %v2570
      %v2602 = vsel %vm606, %v2570, %v2572
      %v2603 = vsel %vm606, %v2572, %v2574
      %v2604 = vsel %vm606, %v2574, %v2576
      %v2605 = vsel %vm606, %v2576, %v2578
      %v2606 = vsel %vm606, %v2578, %v2580
      %v2607 = vsel %vm606, %v2580, %v2582
      %v2608 = vsel %vm606, %v2582, %v2584
      %v2609 = vsel %vm606, %v2584, %v2586
      %v2610 = vsel %vm606, %v2586, %v2588
      %v2611 = vsel %vm606, %v2588, %v2590
      %v2612 = vsel %vm606, %v2590, %v2592
      %v2613 = vsel %vm606, %v2592, %v2594
      %v2614 = vsel %vm606, %v2594, %v2596
      %v2615 = vsel %vm606, %v2596, %v2598
      %v2616 = vsel %vm606, %v2598, %v2600
      %2634 = vrot.lane.b32.xlu0 %v2482, 127
      %v2635 = vpop.permute.xlu0 %2634
      %v2636 = vsel %vm536, %v2534, %v2635
      %2638 = vrot.lane.b32.xlu0 %v2482, 126
      %v2639 = vpop.permute.xlu0 %2638
      %v2640 = vsel %vm606, %v2600, %v2639
      %2643 = vrot.lane.b32.xlu0 %v2483, 127
      %v2644 = vpop.permute.xlu0 %2643
      %v2645 = vsel %vm536, %v2635, %v2644
      %2647 = vrot.lane.b32.xlu0 %v2483, 126
      %v2648 = vpop.permute.xlu0 %2647
      %v2649 = vsel %vm606, %v2639, %v2648
      %v2651 = vld [vmem:[%s6] sm:$0xff]
      %v2653 = vunpack.c.l.b16 %v2651
      %v2654 = vunpack.c.h.b16 %v2651
      %v2655 = vpack.c.b16 %v2653, %v2653
      %v2656 = vpack.c.b16 %v2654, %v2654
      %vm2658 = vcmask 130048
      %v2660 = vsel %vm2658, %v2656, 0
      %2662 = vmatprep.subr.bf16.mxu0 %v2466
      %2663 = vmatpush1.bf16.msra.mxu0 %v2465
      %2664 = vmatprep.subr.bf16.mxu0 %v2536
      %2665 = vmatpush1.bf16.msra.mxu0 %v2535
      %2666 = vmatprep.subr.bf16.mxu0 %v2602
      %2667 = vmatpush1.bf16.msra.mxu0 %v2601
      %2668 = vmatprep.subr.bf16.mxu0 %v2467
      %2669 = vmatpush1.bf16.msra.mxu0 %v2466
      %2670 = vmatprep.subr.bf16.mxu0 %v2537
      %2671 = vmatpush1.bf16.msra.mxu0 %v2536
      %2672 = vmatprep.subr.bf16.mxu0 %v2603
      %2673 = vmatpush1.bf16.msra.mxu0 %v2602
      %2674 = vmatprep.subr.bf16.mxu0 %v2468
      %2675 = vmatpush1.bf16.msra.mxu0 %v2467
      %2676 = vmatprep.subr.bf16.mxu0 %v2538
      %2677 = vmatpush1.bf16.msra.mxu0 %v2537
      %2678 = vmatprep.subr.bf16.mxu0 %v2604
      %2679 = vmatpush1.bf16.msra.mxu0 %v2603
      %2680 = vmatprep.subr.bf16.mxu0 0
      %2681 = vmatpush1.bf16.msra.mxu0 0
      %2682 = vmatprep.subr.bf16.mxu0 0
      %2683 = vmatpush1.bf16.msra.mxu0 0
      %2684 = vmatprep.subr.bf16.mxu0 0
      %2685 = vmatpush1.bf16.msra.mxu0 0
      %2686 = vmatprep.subr.bf16.mxu0 0
      %2687 = vmatpush1.bf16.msra.mxu0 0
      %2688 = vmatprep.subr.bf16.mxu0 0
      %2689 = vmatpush1.bf16.msra.mxu0 0
      %2690 = vmatprep.subr.bf16.mxu0 0
      %2691 = vmatpush1.bf16.msra.mxu0 0
      %2692 = vmatprep.subr.bf16.mxu0 0
      %2693 = vmatpush1.bf16.msra.mxu0 0
      %2694 = vmatprep.mubr.bf16.mxu0 %v2660
      %2695 = vmatmul.mubr.bf16.gmra.mrb[0].mxu0 %v2655
      %v2696 = vpop.f32.mrb[0].mxu0
      %v2697 = vadd.f32 0.0, %v2696
      %v2698 = vpop.f32.mrb[0].mxu0
      %v2699 = vadd.f32 0.0, %v2698
      %v2700 = vpop.f32.mrb[0].mxu0
      %v2701 = vpop.f32.mrb[0].mxu0
      %2702 = vdwg.mxu0
      %2703 = vmatprep.subr.bf16.mxu0 %v2468
      %2704 = vmatpush1.bf16.msra.mxu0 %v2467
      %2705 = vmatprep.subr.bf16.mxu0 %v2538
      %2706 = vmatpush1.bf16.msra.mxu0 %v2537
      %2707 = vmatprep.subr.bf16.mxu0 %v2604
      %2708 = vmatpush1.bf16.msra.mxu0 %v2603
      %2709 = vmatprep.subr.bf16.mxu0 %v2469
      %2710 = vmatpush1.bf16.msra.mxu0 %v2468
      %2711 = vmatprep.subr.bf16.mxu0 %v2539
      %2712 = vmatpush1.bf16.msra.mxu0 %v2538
      %2713 = vmatprep.subr.bf16.mxu0 %v2605
      %2714 = vmatpush1.bf16.msra.mxu0 %v2604
      %2715 = vmatprep.subr.bf16.mxu0 %v2470
      %2716 = vmatpush1.bf16.msra.mxu0 %v2469
      %2717 = vmatprep.subr.bf16.mxu0 %v2540
      %2718 = vmatpush1.bf16.msra.mxu0 %v2539
      %2719 = vmatprep.subr.bf16.mxu0 %v2606
      %2720 = vmatpush1.bf16.msra.mxu0 %v2605
      %2721 = vmatprep.subr.bf16.mxu0 0
      %2722 = vmatpush1.bf16.msra.mxu0 0
      %2723 = vmatprep.subr.bf16.mxu0 0
      %2724 = vmatpush1.bf16.msra.mxu0 0
      %2725 = vmatprep.subr.bf16.mxu0 0
      %2726 = vmatpush1.bf16.msra.mxu0 0
      %2727 = vmatprep.subr.bf16.mxu0 0
      %2728 = vmatpush1.bf16.msra.mxu0 0
      %2729 = vmatprep.subr.bf16.mxu0 0
      %2730 = vmatpush1.bf16.msra.mxu0 0
      %2731 = vmatprep.subr.bf16.mxu0 0
      %2732 = vmatpush1.bf16.msra.mxu0 0
      %2733 = vmatprep.subr.bf16.mxu0 0
      %2734 = vmatpush1.bf16.msra.mxu0 0
      %2735 = vmatprep.mubr.bf16.mxu0 %v2660
      %2736 = vmatmul.mubr.bf16.gmra.mrb[0].mxu0 %v2655
      %v2737 = vpop.f32.mrb[0].mxu0
      %v2738 = vadd.f32 0.0, %v2737
      %v2739 = vpop.f32.mrb[0].mxu0
      %v2740 = vadd.f32 0.0, %v2739
      %v2741 = vpop.f32.mrb[0].mxu0
      %v2742 = vpop.f32.mrb[0].mxu0
      %2743 = vdwg.mxu0
      %2744 = vmatprep.subr.bf16.mxu0 %v2470
      %2745 = vmatpush1.bf16.msra.mxu0 %v2469
      %2746 = vmatprep.subr.bf16.mxu0 %v2540
      %2747 = vmatpush1.bf16.msra.mxu0 %v2539
      %2748 = vmatprep.subr.bf16.mxu0 %v2606
      %2749 = vmatpush1.bf16.msra.mxu0 %v2605
      %2750 = vmatprep.subr.bf16.mxu0 %v2471
      %2751 = vmatpush1.bf16.msra.mxu0 %v2470
      %2752 = vmatprep.subr.bf16.mxu0 %v2541
      %2753 = vmatpush1.bf16.msra.mxu0 %v2540
      %2754 = vmatprep.subr.bf16.mxu0 %v2607
      %2755 = vmatpush1.bf16.msra.mxu0 %v2606
      %2756 = vmatprep.subr.bf16.mxu0 %v2472
      %2757 = vmatpush1.bf16.msra.mxu0 %v2471
      %2758 = vmatprep.subr.bf16.mxu0 %v2542
      %2759 = vmatpush1.bf16.msra.mxu0 %v2541
      %2760 = vmatprep.subr.bf16.mxu0 %v2608
      %2761 = vmatpush1.bf16.msra.mxu0 %v2607
      %2762 = vmatprep.subr.bf16.mxu0 0
      %2763 = vmatpush1.bf16.msra.mxu0 0
      %2764 = vmatprep.subr.bf16.mxu0 0
      %2765 = vmatpush1.bf16.msra.mxu0 0
      %2766 = vmatprep.subr.bf16.mxu0 0
      %2767 = vmatpush1.bf16.msra.mxu0 0
      %2768 = vmatprep.subr.bf16.mxu0 0
      %2769 = vmatpush1.bf16.msra.mxu0 0
      %2770 = vmatprep.subr.bf16.mxu0 0
      %2771 = vmatpush1.bf16.msra.mxu0 0
      %2772 = vmatprep.subr.bf16.mxu0 0
      %2773 = vmatpush1.bf16.msra.mxu0 0
      %2774 = vmatprep.subr.bf16.mxu0 0
      %2775 = vmatpush1.bf16.msra.mxu0 0
      %2776 = vmatprep.mubr.bf16.mxu0 %v2660
      %2777 = vmatmul.mubr.bf16.gmra.mrb[0].mxu0 %v2655
      %v2778 = vpop.f32.mrb[0].mxu0
      %v2779 = vadd.f32 0.0, %v2778
      %v2780 = vpop.f32.mrb[0].mxu0
      %v2781 = vadd.f32 0.0, %v2780
      %v2782 = vpop.f32.mrb[0].mxu0
      %v2783 = vpop.f32.mrb[0].mxu0
      %2784 = vdwg.mxu0
      %2785 = vmatprep.subr.bf16.mxu0 %v2472
      %2786 = vmatpush1.bf16.msra.mxu0 %v2471
      %2787 = vmatprep.subr.bf16.mxu0 %v2542
      %2788 = vmatpush1.bf16.msra.mxu0 %v2541
      %2789 = vmatprep.subr.bf16.mxu0 %v2608
      %2790 = vmatpush1.bf16.msra.mxu0 %v2607
      %2791 = vmatprep.subr.bf16.mxu0 %v2473
      %2792 = vmatpush1.bf16.msra.mxu0 %v2472
      %2793 = vmatprep.subr.bf16.mxu0 %v2543
      %2794 = vmatpush1.bf16.msra.mxu0 %v2542
      %2795 = vmatprep.subr.bf16.mxu0 %v2609
      %2796 = vmatpush1.bf16.msra.mxu0 %v2608
      %2797 = vmatprep.subr.bf16.mxu0 %v2474
      %2798 = vmatpush1.bf16.msra.mxu0 %v2473
      %2799 = vmatprep.subr.bf16.mxu0 %v2544
      %2800 = vmatpush1.bf16.msra.mxu0 %v2543
      %2801 = vmatprep.subr.bf16.mxu0 %v2610
      %2802 = vmatpush1.bf16.msra.mxu0 %v2609
      %2803 = vmatprep.subr.bf16.mxu0 0
      %2804 = vmatpush1.bf16.msra.mxu0 0
      %2805 = vmatprep.subr.bf16.mxu0 0
      %2806 = vmatpush1.bf16.msra.mxu0 0
      %2807 = vmatprep.subr.bf16.mxu0 0
      %2808 = vmatpush1.bf16.msra.mxu0 0
      %2809 = vmatprep.subr.bf16.mxu0 0
      %2810 = vmatpush1.bf16.msra.mxu0 0
      %2811 = vmatprep.subr.bf16.mxu0 0
      %2812 = vmatpush1.bf16.msra.mxu0 0
      %2813 = vmatprep.subr.bf16.mxu0 0
      %2814 = vmatpush1.bf16.msra.mxu0 0
      %2815 = vmatprep.subr.bf16.mxu0 0
      %2816 = vmatpush1.bf16.msra.mxu0 0
      %2817 = vmatprep.mubr.bf16.mxu0 %v2660
      %2818 = vmatmul.mubr.bf16.gmra.mrb[0].mxu0 %v2655
      %v2819 = vpop.f32.mrb[0].mxu0
      %v2820 = vadd.f32 0.0, %v2819
      %v2821 = vpop.f32.mrb[0].mxu0
      %v2822 = vadd.f32 0.0, %v2821
      %v2823 = vpop.f32.mrb[0].mxu0
      %v2824 = vpop.f32.mrb[0].mxu0
      %2825 = vdwg.mxu0
      %2826 = vmatprep.subr.bf16.mxu0 %v2474
      %2827 = vmatpush1.bf16.msra.mxu0 %v2473
      %2828 = vmatprep.subr.bf16.mxu0 %v2544
      %2829 = vmatpush1.bf16.msra.mxu0 %v2543
      %2830 = vmatprep.subr.bf16.mxu0 %v2610
      %2831 = vmatpush1.bf16.msra.mxu0 %v2609
      %2832 = vmatprep.subr.bf16.mxu0 %v2475
      %2833 = vmatpush1.bf16.msra.mxu0 %v2474
      %2834 = vmatprep.subr.bf16.mxu0 %v2545
      %2835 = vmatpush1.bf16.msra.mxu0 %v2544
      %2836 = vmatprep.subr.bf16.mxu0 %v2611
      %2837 = vmatpush1.bf16.msra.mxu0 %v2610
      %2838 = vmatprep.subr.bf16.mxu0 %v2476
      %2839 = vmatpush1.bf16.msra.mxu0 %v2475
      %2840 = vmatprep.subr.bf16.mxu0 %v2546
      %2841 = vmatpush1.bf16.msra.mxu0 %v2545
      %2842 = vmatprep.subr.bf16.mxu0 %v2612
      %2843 = vmatpush1.bf16.msra.mxu0 %v2611
      %2844 = vmatprep.subr.bf16.mxu0 0
      %2845 = vmatpush1.bf16.msra.mxu0 0
      %2846 = vmatprep.subr.bf16.mxu0 0
      %2847 = vmatpush1.bf16.msra.mxu0 0
      %2848 = vmatprep.subr.bf16.mxu0 0
      %2849 = vmatpush1.bf16.msra.mxu0 0
      %2850 = vmatprep.subr.bf16.mxu0 0
      %2851 = vmatpush1.bf16.msra.mxu0 0
      %2852 = vmatprep.subr.bf16.mxu0 0
      %2853 = vmatpush1.bf16.msra.mxu0 0
      %2854 = vmatprep.subr.bf16.mxu0 0
      %2855 = vmatpush1.bf16.msra.mxu0 0
      %2856 = vmatprep.subr.bf16.mxu0 0
      %2857 = vmatpush1.bf16.msra.mxu0 0
      %2858 = vmatprep.mubr.bf16.mxu0 %v2660
      %2859 = vmatmul.mubr.bf16.gmra.mrb[0].mxu0 %v2655
      %v2860 = vpop.f32.mrb[0].mxu0
      %v2861 = vadd.f32 0.0, %v2860
      %v2862 = vpop.f32.mrb[0].mxu0
      %v2863 = vadd.f32 0.0, %v2862
      %v2864 = vpop.f32.mrb[0].mxu0
      %v2865 = vpop.f32.mrb[0].mxu0
      %2866 = vdwg.mxu0
      %2867 = vmatprep.subr.bf16.mxu0 %v2476
      %2868 = vmatpush1.bf16.msra.mxu0 %v2475
      %2869 = vmatprep.subr.bf16.mxu0 %v2546
      %2870 = vmatpush1.bf16.msra.mxu0 %v2545
      %2871 = vmatprep.subr.bf16.mxu0 %v2612
      %2872 = vmatpush1.bf16.msra.mxu0 %v2611
      %2873 = vmatprep.subr.bf16.mxu0 %v2477
      %2874 = vmatpush1.bf16.msra.mxu0 %v2476
      %2875 = vmatprep.subr.bf16.mxu0 %v2547
      %2876 = vmatpush1.bf16.msra.mxu0 %v2546
      %2877 = vmatprep.subr.bf16.mxu0 %v2613
      %2878 = vmatpush1.bf16.msra.mxu0 %v2612
      %2879 = vmatprep.subr.bf16.mxu0 %v2478
      %2880 = vmatpush1.bf16.msra.mxu0 %v2477
      %2881 = vmatprep.subr.bf16.mxu0 %v2548
      %2882 = vmatpush1.bf16.msra.mxu0 %v2547
      %2883 = vmatprep.subr.bf16.mxu0 %v2614
      %2884 = vmatpush1.bf16.msra.mxu0 %v2613
      %2885 = vmatprep.subr.bf16.mxu0 0
      %2886 = vmatpush1.bf16.msra.mxu0 0
      %2887 = vmatprep.subr.bf16.mxu0 0
      %2888 = vmatpush1.bf16.msra.mxu0 0
      %2889 = vmatprep.subr.bf16.mxu0 0
      %2890 = vmatpush1.bf16.msra.mxu0 0
      %2891 = vmatprep.subr.bf16.mxu0 0
      %2892 = vmatpush1.bf16.msra.mxu0 0
      %2893 = vmatprep.subr.bf16.mxu0 0
      %2894 = vmatpush1.bf16.msra.mxu0 0
      %2895 = vmatprep.subr.bf16.mxu0 0
      %2896 = vmatpush1.bf16.msra.mxu0 0
      %2897 = vmatprep.subr.bf16.mxu0 0
      %2898 = vmatpush1.bf16.msra.mxu0 0
      %2899 = vmatprep.mubr.bf16.mxu0 %v2660
      %2900 = vmatmul.mubr.bf16.gmra.mrb[0].mxu0 %v2655
      %v2901 = vpop.f32.mrb[0].mxu0
      %v2902 = vadd.f32 0.0, %v2901
      %v2903 = vpop.f32.mrb[0].mxu0
      %v2904 = vadd.f32 0.0, %v2903
      %v2905 = vpop.f32.mrb[0].mxu0
      %v2906 = vpop.f32.mrb[0].mxu0
      %2907 = vdwg.mxu0
      %2908 = vmatprep.subr.bf16.mxu0 %v2478
      %2909 = vmatpush1.bf16.msra.mxu0 %v2477
      %2910 = vmatprep.subr.bf16.mxu0 %v2548
      %2911 = vmatpush1.bf16.msra.mxu0 %v2547
      %2912 = vmatprep.subr.bf16.mxu0 %v2614
      %2913 = vmatpush1.bf16.msra.mxu0 %v2613
      %2914 = vmatprep.subr.bf16.mxu0 %v2479
      %2915 = vmatpush1.bf16.msra.mxu0 %v2478
      %2916 = vmatprep.subr.bf16.mxu0 %v2549
      %2917 = vmatpush1.bf16.msra.mxu0 %v2548
      %2918 = vmatprep.subr.bf16.mxu0 %v2615
      %2919 = vmatpush1.bf16.msra.mxu0 %v2614
      %2920 = vmatprep.subr.bf16.mxu0 %v2480
      %2921 = vmatpush1.bf16.msra.mxu0 %v2479
      %2922 = vmatprep.subr.bf16.mxu0 %v2550
      %2923 = vmatpush1.bf16.msra.mxu0 %v2549
      %2924 = vmatprep.subr.bf16.mxu0 %v2616
      %2925 = vmatpush1.bf16.msra.mxu0 %v2615
      %2926 = vmatprep.subr.bf16.mxu0 0
      %2927 = vmatpush1.bf16.msra.mxu0 0
      %2928 = vmatprep.subr.bf16.mxu0 0
      %2929 = vmatpush1.bf16.msra.mxu0 0
      %2930 = vmatprep.subr.bf16.mxu0 0
      %2931 = vmatpush1.bf16.msra.mxu0 0
      %2932 = vmatprep.subr.bf16.mxu0 0
      %2933 = vmatpush1.bf16.msra.mxu0 0
      %2934 = vmatprep.subr.bf16.mxu0 0
      %2935 = vmatpush1.bf16.msra.mxu0 0
      %2936 = vmatprep.subr.bf16.mxu0 0
      %2937 = vmatpush1.bf16.msra.mxu0 0
      %2938 = vmatprep.subr.bf16.mxu0 0
      %2939 = vmatpush1.bf16.msra.mxu0 0
      %2940 = vmatprep.mubr.bf16.mxu0 %v2660
      %2941 = vmatmul.mubr.bf16.gmra.mrb[0].mxu0 %v2655
      %v2942 = vpop.f32.mrb[0].mxu0
      %v2943 = vadd.f32 0.0, %v2942
      %v2944 = vpop.f32.mrb[0].mxu0
      %v2945 = vadd.f32 0.0, %v2944
      %v2946 = vpop.f32.mrb[0].mxu0
      %v2947 = vpop.f32.mrb[0].mxu0
      %2948 = vdwg.mxu0
      %2949 = vmatprep.subr.bf16.mxu0 %v2480
      %2950 = vmatpush1.bf16.msra.mxu0 %v2479
      %2951 = vmatprep.subr.bf16.mxu0 %v2550
      %2952 = vmatpush1.bf16.msra.mxu0 %v2549
      %2953 = vmatprep.subr.bf16.mxu0 %v2616
      %2954 = vmatpush1.bf16.msra.mxu0 %v2615
      %2955 = vmatprep.subr.bf16.mxu0 %v2481
      %2956 = vmatpush1.bf16.msra.mxu0 %v2480
      %2957 = vmatprep.subr.bf16.mxu0 %v2636
      %2958 = vmatpush1.bf16.msra.mxu0 %v2550
      %2959 = vmatprep.subr.bf16.mxu0 %v2640
      %2960 = vmatpush1.bf16.msra.mxu0 %v2616
      %2961 = vmatprep.subr.bf16.mxu0 %v2482
      %2962 = vmatpush1.bf16.msra.mxu0 %v2481
      %2963 = vmatprep.subr.bf16.mxu0 %v2645
      %2964 = vmatpush1.bf16.msra.mxu0 %v2636
      %2965 = vmatprep.subr.bf16.mxu0 %v2649
      %2966 = vmatpush1.bf16.msra.mxu0 %v2640
      %2967 = vmatprep.subr.bf16.mxu0 0
      %2968 = vmatpush1.bf16.msra.mxu0 0
      %2969 = vmatprep.subr.bf16.mxu0 0
      %2970 = vmatpush1.bf16.msra.mxu0 0
      %2971 = vmatprep.subr.bf16.mxu0 0
      %2972 = vmatpush1.bf16.msra.mxu0 0
      %2973 = vmatprep.subr.bf16.mxu0 0
      %2974 = vmatpush1.bf16.msra.mxu0 0
      %2975 = vmatprep.subr.bf16.mxu0 0
      %2976 = vmatpush1.bf16.msra.mxu0 0
      %2977 = vmatprep.subr.bf16.mxu0 0
      %2978 = vmatpush1.bf16.msra.mxu0 0
      %2979 = vmatprep.subr.bf16.mxu0 0
      %2980 = vmatpush1.bf16.msra.mxu0 0
      %2981 = vmatprep.mubr.bf16.mxu0 %v2660
      %2982 = vmatmul.mubr.bf16.gmra.mrb[0].mxu0 %v2655
      %v2983 = vpop.f32.mrb[0].mxu0
      %v2984 = vadd.f32 0.0, %v2983
      %v2985 = vpop.f32.mrb[0].mxu0
      %v2986 = vadd.f32 0.0, %v2985
      %v2987 = vpop.f32.mrb[0].mxu0
      %v2988 = vpop.f32.mrb[0].mxu0
      %2989 = vdwg.mxu0
      %v2990 = vld [vmem:[#allocation4] sm:$0x1]
      %2992 = vset.pattern.permute.xlu0 0
      %2993 = vperm.xlu0 %2992, %v2990
      %v2994 = vpop.permute.xlu0 %2993
      %v2996 = vlaneseq
      %v2997 = vshrl.u32 %v2996, 7
      %v2998 = vsub.s32 0, %v2997
      %v2999 = vrot.slane %v2994, %v2998
      %v3000 = vadd.f32 %v2697, %v2999
      %v3001 = vadd.f32 %v2699, %v2999
      %v3002 = vadd.f32 %v2738, %v2999
      %v3003 = vadd.f32 %v2740, %v2999
      %v3004 = vadd.f32 %v2779, %v2999
      %v3005 = vadd.f32 %v2781, %v2999
      %v3006 = vadd.f32 %v2820, %v2999
      %v3007 = vadd.f32 %v2822, %v2999
      %v3008 = vadd.f32 %v2861, %v2999
      %v3009 = vadd.f32 %v2863, %v2999
      %v3010 = vadd.f32 %v2902, %v2999
      %v3011 = vadd.f32 %v2904, %v2999
      %v3012 = vadd.f32 %v2943, %v2999
      %v3013 = vadd.f32 %v2945, %v2999
      %v3014 = vadd.f32 %v2984, %v2999
      %v3015 = vadd.f32 %v2986, %v2999
      %v3016 = vxor.u32 %v3000, 2147483648
      %v3017 = vxor.u32 %v3001, 2147483648
      %v3018 = vxor.u32 %v3002, 2147483648
      %v3019 = vxor.u32 %v3003, 2147483648
      %v3020 = vxor.u32 %v3004, 2147483648
      %v3021 = vxor.u32 %v3005, 2147483648
      %v3022 = vxor.u32 %v3006, 2147483648
      %v3023 = vxor.u32 %v3007, 2147483648
      %v3024 = vxor.u32 %v3008, 2147483648
      %v3025 = vxor.u32 %v3009, 2147483648
      %v3026 = vxor.u32 %v3010, 2147483648
      %v3027 = vxor.u32 %v3011, 2147483648
      %v3028 = vxor.u32 %v3012, 2147483648
      %v3029 = vxor.u32 %v3013, 2147483648
      %v3030 = vxor.u32 %v3014, 2147483648
      %v3031 = vxor.u32 %v3015, 2147483648
      %v3032 = vmul.f32 %v3016, 1.442695
      %v3033 = vpow.pop %v3032
      %v3034 = vmul.f32 %v3017, 1.442695
      %v3035 = vpow.pop %v3034
      %v3036 = vmul.f32 %v3018, 1.442695
      %v3037 = vpow.pop %v3036
      %v3038 = vmul.f32 %v3019, 1.442695
      %v3039 = vpow.pop %v3038
      %v3040 = vmul.f32 %v3020, 1.442695
      %v3041 = vpow.pop %v3040
      %v3042 = vmul.f32 %v3021, 1.442695
      %v3043 = vpow.pop %v3042
      %v3044 = vmul.f32 %v3022, 1.442695
      %v3045 = vpow.pop %v3044
      %v3046 = vmul.f32 %v3023, 1.442695
      %v3047 = vpow.pop %v3046
      %v3048 = vmul.f32 %v3024, 1.442695
      %v3049 = vpow.pop %v3048
      %v3050 = vmul.f32 %v3025, 1.442695
      %v3051 = vpow.pop %v3050
      %v3052 = vmul.f32 %v3026, 1.442695
      %v3053 = vpow.pop %v3052
      %v3054 = vmul.f32 %v3027, 1.442695
      %v3055 = vpow.pop %v3054
      %v3056 = vmul.f32 %v3028, 1.442695
      %v3057 = vpow.pop %v3056
      %v3058 = vmul.f32 %v3029, 1.442695
      %v3059 = vpow.pop %v3058
      %v3060 = vmul.f32 %v3030, 1.442695
      %v3061 = vpow.pop %v3060
      %v3062 = vmul.f32 %v3031, 1.442695
      %v3063 = vpow.pop %v3062
      %v3064 = vadd.f32 %v3033, 1.0
      %v3065 = vadd.f32 %v3035, 1.0
      %v3066 = vadd.f32 %v3037, 1.0
      %v3067 = vadd.f32 %v3039, 1.0
      %v3068 = vadd.f32 %v3041, 1.0
      %v3069 = vadd.f32 %v3043, 1.0
      %v3070 = vadd.f32 %v3045, 1.0
      %v3071 = vadd.f32 %v3047, 1.0
      %v3072 = vadd.f32 %v3049, 1.0
      %v3073 = vadd.f32 %v3051, 1.0
      %v3074 = vadd.f32 %v3053, 1.0
      %v3075 = vadd.f32 %v3055, 1.0
      %v3076 = vadd.f32 %v3057, 1.0
      %v3077 = vadd.f32 %v3059, 1.0
      %v3078 = vadd.f32 %v3061, 1.0
      %v3079 = vadd.f32 %v3063, 1.0
      %v3080 = vrcp.pop %v3064
      %v3081 = vmul.f32 1.0, %v3080
      %v3082 = vrcp.pop %v3065
      %v3083 = vmul.f32 1.0, %v3082
      %v3084 = vrcp.pop %v3066
      %v3085 = vmul.f32 1.0, %v3084
      %v3086 = vrcp.pop %v3067
      %v3087 = vmul.f32 1.0, %v3086
      %v3088 = vrcp.pop %v3068
      %v3089 = vmul.f32 1.0, %v3088
      %v3090 = vrcp.pop %v3069
      %v3091 = vmul.f32 1.0, %v3090
      %v3092 = vrcp.pop %v3070
      %v3093 = vmul.f32 1.0, %v3092
      %v3094 = vrcp.pop %v3071
      %v3095 = vmul.f32 1.0, %v3094
      %v3096 = vrcp.pop %v3072
      %v3097 = vmul.f32 1.0, %v3096
      %v3098 = vrcp.pop %v3073
      %v3099 = vmul.f32 1.0, %v3098
      %v3100 = vrcp.pop %v3074
      %v3101 = vmul.f32 1.0, %v3100
      %v3102 = vrcp.pop %v3075
      %v3103 = vmul.f32 1.0, %v3102
      %v3104 = vrcp.pop %v3076
      %v3105 = vmul.f32 1.0, %v3104
      %v3106 = vrcp.pop %v3077
      %v3107 = vmul.f32 1.0, %v3106
      %v3108 = vrcp.pop %v3078
      %v3109 = vmul.f32 1.0, %v3108
      %v3110 = vrcp.pop %v3079
      %v3111 = vmul.f32 1.0, %v3110
      %v3128 = vcombine.low %v3081, %v3083
      %v3129 = vcombine.low %v3085, %v3087
      %v3130 = vcombine.low %v3089, %v3091
      %v3131 = vcombine.low %v3093, %v3095
      %v3133 = vunpack.c.l.s4 1966171168
      %v3134 = vunpack.c.0.s8 %v3133
      %v3135 = vlaneseq
      %v3136 = vshrl.u32 %v3135, 7
      %v3137 = vsub.s32 %v3134, %v3136
      %v3138 = vrot.slane %v3128, %v3137
      %v3140 = vunpack.c.l.s4 1966171168
      %v3141 = vunpack.c.0.s8 %v3140
      %v3142 = vlaneseq
      %v3143 = vshrl.u32 %v3142, 7
      %v3144 = vsub.s32 %v3141, %v3143
      %v3145 = vrot.slane %v3129, %v3144
      %v3147 = vunpack.c.l.s4 1966171168
      %v3148 = vunpack.c.0.s8 %v3147
      %v3149 = vlaneseq
      %v3150 = vshrl.u32 %v3149, 7
      %v3151 = vsub.s32 %v3148, %v3150
      %v3152 = vrot.slane %v3130, %v3151
      %v3154 = vunpack.c.l.s4 1966171168
      %v3155 = vunpack.c.0.s8 %v3154
      %v3156 = vlaneseq
      %v3157 = vshrl.u32 %v3156, 7
      %v3158 = vsub.s32 %v3155, %v3157
      %v3159 = vrot.slane %v3131, %v3158
      %v3160 = vcombine.low %v3138, %v3145
      %v3161 = vcombine.low %v3152, %v3159
      %v3163 = vunpack.c.l.s4 1966171168
      %v3164 = vunpack.c.0.s8 %v3163
      %v3165 = vlaneseq
      %v3166 = vshrl.u32 %v3165, 7
      %v3167 = vsub.s32 %v3164, %v3166
      %v3168 = vrot.slane %v3160, %v3167
      %v3170 = vunpack.c.l.s4 1966171168
      %v3171 = vunpack.c.0.s8 %v3170
      %v3172 = vlaneseq
      %v3173 = vshrl.u32 %v3172, 7
      %v3174 = vsub.s32 %v3171, %v3173
      %v3175 = vrot.slane %v3161, %v3174
      %v3176 = vcombine.low %v3168, %v3175
      %v3177 = vcombine.low %v3097, %v3099
      %v3178 = vcombine.low %v3101, %v3103
      %v3179 = vcombine.low %v3105, %v3107
      %v3180 = vcombine.low %v3109, %v3111
      %v3182 = vunpack.c.l.s4 1966171168
      %v3183 = vunpack.c.0.s8 %v3182
      %v3184 = vlaneseq
      %v3185 = vshrl.u32 %v3184, 7
      %v3186 = vsub.s32 %v3183, %v3185
      %v3187 = vrot.slane %v3177, %v3186
      %v3189 = vunpack.c.l.s4 1966171168
      %v3190 = vunpack.c.0.s8 %v3189
      %v3191 = vlaneseq
      %v3192 = vshrl.u32 %v3191, 7
      %v3193 = vsub.s32 %v3190, %v3192
      %v3194 = vrot.slane %v3178, %v3193
      %v3196 = vunpack.c.l.s4 1966171168
      %v3197 = vunpack.c.0.s8 %v3196
      %v3198 = vlaneseq
      %v3199 = vshrl.u32 %v3198, 7
      %v3200 = vsub.s32 %v3197, %v3199
      %v3201 = vrot.slane %v3179, %v3200
      %v3203 = vunpack.c.l.s4 1966171168
      %v3204 = vunpack.c.0.s8 %v3203
      %v3205 = vlaneseq
      %v3206 = vshrl.u32 %v3205, 7
      %v3207 = vsub.s32 %v3204, %v3206
      %v3208 = vrot.slane %v3180, %v3207
      %v3209 = vcombine.low %v3187, %v3194
      %v3210 = vcombine.low %v3201, %v3208
      %v3212 = vunpack.c.l.s4 1966171168
      %v3213 = vunpack.c.0.s8 %v3212
      %v3214 = vlaneseq
      %v3215 = vshrl.u32 %v3214, 7
      %v3216 = vsub.s32 %v3213, %v3215
      %v3217 = vrot.slane %v3209, %v3216
      %v3219 = vunpack.c.l.s4 1966171168
      %v3220 = vunpack.c.0.s8 %v3219
      %v3221 = vlaneseq
      %v3222 = vshrl.u32 %v3221, 7
      %v3223 = vsub.s32 %v3220, %v3222
      %v3224 = vrot.slane %v3210, %v3223
      %v3225 = vcombine.low %v3217, %v3224
      %3228 = vst [vmem:[%s281] sm:$0xff] %v3176
      %3229 = vst [vmem:[%s281 + $0x8] sm:$0xff] %v3225
      %p3230 = scmp.lt.s32.totalorder %s25, 1
      %s3231 = scalar_select %p3230, %s25, 1
      %p3232 = scmp.lt.s32.totalorder %s26, 0
      %s3233 = scalar_select %p3232, %s26, 0
      %s3234 = smul.addr %s3233, 16
      %s3235 = smul.addr %s3231, 16
      %s3236 = sadd.s32 %s3234, %s3235
      %s3237 = scalar_lea.vmem %s8, %s3236
      // Predicated region
      $region86: #{_det_model_forward.1} parent=47 // pred_check
        %p3238 = pneg %p200
      $region87: #{_det_model_forward.1} parent=47 // pred_check_branch
        %3240 = sbr.rel (%p3238) target = $region89
      $region88: #{_det_model_forward.1} parent=47 // pred_region
        _
      $region89: #{_det_model_forward.1} parent=47 // pred_fallthru
        _
    $region48: #{_det_model_forward.1} parent=5 // pred_fallthru
      _
    %p3241 = scmp.le.s32.totalorder 2, %s16
    // Predicated region
    $region90: #{_det_model_forward.1} parent=5 // pred_check
      %p3242 = pneg %p3241
    $region91: #{_det_model_forward.1} parent=5 // pred_check_branch
      %3244 = sbr.rel (%p3242) target = $region93
    $region92: #{_det_model_forward.1} parent=5 // pred_region
      %s3245 = ssub.s32 %s16, 2
      // Predicated region
      $region94: #{_det_model_forward.1} parent=92 // pred_check
        %p3246 = pneg %p206
      $region95: #{_det_model_forward.1} parent=92 // pred_check_branch
        %3248 = sbr.rel (%p3246) target = $region97
      $region96: #{_det_model_forward.1} parent=92 // pred_region
        %p3249 = scmp.lt.s32.totalorder %s27, 1
        %s3250 = scalar_select %p3249, %s27, 1
        %p3251 = scmp.lt.s32.totalorder %s28, 0
        %s3252 = scalar_select %p3251, %s28, 0
        %s3253 = smul.addr %s3252, 16
        %s3254 = smul.addr %s3250, 16
        %s3255 = sadd.s32 %s3253, %s3254
        %s3256 = scalar_lea.vmem %s8, %s3255
      $region97: #{_det_model_forward.1} parent=92 // pred_fallthru
        _
    $region93: #{_det_model_forward.1} parent=5 // pred_fallthru
      _
  $region6: #{_det_model_forward.1} parent=0 // loop_footer
    %s20 = sadd.s32 1, %s16
  $region7: #{_det_model_forward.1} parent=0 // loop_footer_branch
    %15 = sbr.rel target = $region3
  $region8: #{_det_model_forward.1} parent=0 // loop_exit
    _
  %3257 = vsyncmov [#allocation3]
  %s3258 = vpop.sfrf %3257
  %p3259 = scmp.eq.s32.totalorder %s3258, 0
  %p3260 = pneg %p3259
  %3262 = shalt.err (%p3260)

</llo_original>
